<compile_context>
chip_gen: v6e
topology: v6e:2x2x1
jax: 0.10.0
libtpu: 0.0.40
codegen_flags: <defaults>
</compile_context>

<pallas_src>
import jax
import jax.numpy as jnp
from jax.experimental import pallas as pl
from jax.experimental.pallas import tpu as pltpu


# ----------------------------- Pallas kernels -----------------------------

def conv_pool_relu_kernel(a_ref, w_ref, b_ref, o_ref):
    """a_ref: [4, ROWS, KKC] tap-major im2col patches for a group of images'
    pooled positions; w_ref: [KKC, Cout]; b_ref: [1, Cout]; o_ref: [ROWS, Cout].
    Computes relu(maxpool2x2(conv(x)+b)) for this tile, fully in VMEM."""
    w = w_ref[...]
    # Four MXU matmuls (one per pool-window tap); ROWS is kept large via
    # image grouping so each dot has good MXU occupancy.
    d0 = jnp.dot(a_ref[0], w, preferred_element_type=jnp.float32)
    d1 = jnp.dot(a_ref[1], w, preferred_element_type=jnp.float32)
    d2 = jnp.dot(a_ref[2], w, preferred_element_type=jnp.float32)
    d3 = jnp.dot(a_ref[3], w, preferred_element_type=jnp.float32)
    pooled = jnp.maximum(jnp.maximum(d0, d1), jnp.maximum(d2, d3))
    o_ref[...] = jnp.maximum(pooled + b_ref[...], 0.0).astype(o_ref.dtype)


def fc_fused_kernel(x_ref, w1_ref, b1_ref, w2_ref, b2_ref, o_ref):
    """fc1 + relu + fc2 + log_softmax in one body; the [tile_m, 128] hidden
    activation never leaves VMEM. fc2 is padded to 128 output columns whose
    bias is -1e30, so they vanish from the softmax denominator."""
    h = jnp.dot(x_ref[...], w1_ref[...], preferred_element_type=jnp.float32)
    h = jnp.maximum(h + b1_ref[...], 0.0)
    logits = jnp.dot(h, w2_ref[...],
                     preferred_element_type=jnp.float32) + b2_ref[...]
    m = jnp.max(logits, axis=1, keepdims=True)
    s = logits - m
    lse = jnp.log(jnp.sum(jnp.exp(s), axis=1, keepdims=True))
    o_ref[...] = (s - lse).astype(o_ref.dtype)


# ------------------------------ tiling helper ------------------------------

def _largest_divisor_leq(n, cap):
    for d in range(min(n, cap), 0, -1):
        if n % d == 0:
            return d
    return 1


# ----------------------------- Pallas wrappers -----------------------------

def conv_pool_relu(a_taps, w_mat, b_row, phw, imgs_per_block):
    """a_taps: [4, B*phw, KKC]; returns pooled+relu'd conv: [B*phw, Cout]."""
    _, M, KKC = a_taps.shape
    Cout = w_mat.shape[1]
    rows = imgs_per_block * phw           # pooled positions per grid block
    n_blocks = M // rows
    return pl.pallas_call(
        conv_pool_relu_kernel,
        out_shape=jax.ShapeDtypeStruct((M, Cout), jnp.float32),
        grid=(n_blocks,),
        in_specs=[
            pl.BlockSpec((4, rows, KKC), lambda b: (0, b, 0)),
            pl.BlockSpec((KKC, Cout), lambda b: (0, 0)),
            pl.BlockSpec((1, Cout), lambda b: (0, 0)),
        ],
        out_specs=pl.BlockSpec((rows, Cout), lambda b: (b, 0)),
        compiler_params=pltpu.CompilerParams(
            dimension_semantics=("parallel",)),
    )(a_taps, w_mat, b_row)


def fc_head(x, w1, b1, w2p, b2p):
    """Fused fc1+relu+fc2+log_softmax. Output is [M, 128] (padded); caller
    slices the 10 real classes."""
    M, K1 = x.shape
    H = w1.shape[1]
    Np = w2p.shape[1]
    tile_m = _largest_divisor_leq(M, 512)   # real row-grid for large batches
    return pl.pallas_call(
        fc_fused_kernel,
        out_shape=jax.ShapeDtypeStruct((M, Np), jnp.float32),
        grid=(M // tile_m,),
        in_specs=[
            pl.BlockSpec((tile_m, K1), lambda i: (i, 0)),
            pl.BlockSpec((K1, H), lambda i: (0, 0)),
            pl.BlockSpec((1, H), lambda i: (0, 0)),
            pl.BlockSpec((H, Np), lambda i: (0, 0)),
            pl.BlockSpec((1, Np), lambda i: (0, 0)),
        ],
        out_specs=pl.BlockSpec((tile_m, Np), lambda i: (i, 0)),
        compiler_params=pltpu.CompilerParams(
            dimension_semantics=("parallel",)),
    )(x, w1, b1, w2p, b2p)


# ------------------------------- glue / model -------------------------------

def im2col_pool_taps(x_nhwc, K, pad_k_to=None):
    """Tap-major im2col for a fused conv+2x2-pool: returns
    a[t, b*PH*PW + p, :] = patch of the conv output position belonging to
    pooled position p with window-tap t.  Shape [4, B*PH*PW, K*K*C]."""
    B, H, W, C = x_nhwc.shape
    OH, OW = H - K + 1, W - K + 1
    PH, PW = OH // 2, OW // 2
    cols = [x_nhwc[:, i:i + OH, j:j + OW, :] for i in range(K) for j in range(K)]
    p = jnp.stack(cols, axis=3).reshape(B, OH, OW, K * K * C)
    taps = [p[:, di::2, dj::2, :] for di in (0, 1) for dj in (0, 1)]
    a = jnp.stack(taps, axis=0).reshape(4, B * PH * PW, K * K * C)
    if pad_k_to is not None and pad_k_to > K * K * C:
        a = jnp.pad(a, ((0, 0), (0, 0), (0, pad_k_to - K * K * C)))
    return a, PH * PW


def prepare_params(params):
    """One-time offline weight repack (hoisted out of the jitted forward)."""
    W1, b1, W2, b2, Wf1, bf1, Wf2, bf2 = params
    # conv weights: [Cout, Cin, K, K] -> [(ki,kj,ci), Cout]
    W1m = jnp.transpose(W1, (2, 3, 1, 0)).reshape(25, 32)
    W1m = jnp.pad(W1m, ((0, 32 - 25), (0, 0)))            # contraction 25 -> 32
    b1r = b1.reshape(1, 32)
    W2m = jnp.transpose(W2, (2, 3, 1, 0)).reshape(25 * 32, 64)
    b2r = b2.reshape(1, 64)
    # fc1: permute input columns so it consumes the NHWC flatten directly
    # (torch's view(-1,1024) flattens NCHW: j = c*16 + ph*4 + pw).
    c = jnp.arange(64)
    ph = jnp.arange(4)
    pw = jnp.arange(4)
    torch_idx = (c[None, None, :] * 16 + ph[:, None, None] * 4
                 + pw[None, :, None]).reshape(-1)          # n=(ph,pw,c) -> j
    Wf1m = Wf1.T[torch_idx]                                # [1024, 128]
    bf1r = bf1.reshape(1, 128)
    # fc2: pad 10 -> 128 output columns; padded bias -1e30 keeps softmax exact
    NPAD = 128
    Wf2m = jnp.pad(Wf2.T, ((0, 0), (0, NPAD - 10)))        # [128, 128]
    bf2r = jnp.concatenate(
        [bf2, jnp.full((NPAD - 10,), -1e30, jnp.float32)]).reshape(1, NPAD)
    return (W1m, b1r, W2m, b2r, Wf1m, bf1r, Wf2m, bf2r)


def simple_cnn_forward(x_nchw, prepped):
    W1m, b1r, W2m, b2r, Wf1m, bf1r, Wf2m, bf2r = prepped
    B = x_nchw.shape[0]
    x = jnp.transpose(x_nchw, (0, 2, 3, 1))                # NHWC (Cin=1: cheap)

    # Image-group sizes per conv grid block (bounded so the double-buffered
    # tap tiles stay well inside VMEM: conv1 ~72KB/img, conv2 ~200KB/img).
    g1 = _largest_divisor_leq(B, 16)
    g2 = _largest_divisor_leq(B, 8)

    # conv1 (1->32, k=5) + pool + relu, fused in one kernel
    a1, phw1 = im2col_pool_taps(x, 5, pad_k_to=32)         # [4, B*144, 32]
    y1 = conv_pool_relu(a1, W1m, b1r, phw1, g1)            # [B*144, 32]
    y1 = y1.reshape(B, 12, 12, 32)

    # conv2 (32->64, k=5) + pool + relu, fused in one kernel
    a2, phw2 = im2col_pool_taps(y1, 5)                     # [4, B*16, 800]
    y2 = conv_pool_relu(a2, W2m, b2r, phw2, g2)            # [B*16, 64]

    # NHWC flatten is a pure metadata reshape (fc1 columns permuted offline)
    flat = y2.reshape(B, 1024)

    # fused fc1+relu+fc2+log_softmax; slice the 10 real classes
    logp = fc_head(flat, Wf1m, bf1r, Wf2m, bf2r)           # [B, 128]
    return logp[:, :10]


def reference_forward(x, params):
    W1, b1, W2, b2, Wf1, bf1, Wf2, bf2 = params

    def conv(x, W, b):
        y = jax.lax.conv_general_dilated(
            x, W, (1, 1), "VALID",
            dimension_numbers=("NCHW", "OIHW", "NCHW"))
        return y + b.reshape(1, -1, 1, 1)

    def maxpool2(x):
        return jax.lax.reduce_window(x, -jnp.inf, jax.lax.max,
                                     (1, 1, 2, 2), (1, 1, 2, 2), "VALID")

    y = jax.nn.relu(maxpool2(conv(x, W1, b1)))
    y = jax.nn.relu(maxpool2(conv(y, W2, b2)))
    y = y.reshape(x.shape[0], -1)
    y = jax.nn.relu(y @ Wf1.T + bf1)
    return jax.nn.log_softmax(y @ Wf2.T + bf2, axis=1)


# ---------------------------------- main ----------------------------------

if __name__ == "__main__":
    key = jax.random.PRNGKey(0)
    ks = jax.random.split(key, 9)

    # Deterministic synthetic parameters (shapes from SimpleCNN.__init__).
    W1 = jax.random.normal(ks[0], (32, 1, 5, 5), jnp.float32) * 0.1
    b1 = jax.random.normal(ks[1], (32,), jnp.float32) * 0.01
    W2 = jax.random.normal(ks[2], (64, 32, 5, 5), jnp.float32) * 0.05
    b2 = jax.random.normal(ks[3], (64,), jnp.float32) * 0.01
    Wf1 = jax.random.normal(ks[4], (128, 1024), jnp.float32) * 0.03
    bf1 = jax.random.normal(ks[5], (128,), jnp.float32) * 0.01
    Wf2 = jax.random.normal(ks[6], (10, 128), jnp.float32) * 0.1
    bf2 = jax.random.normal(ks[7], (10,), jnp.float32) * 0.01
    params = (W1, b1, W2, b2, Wf1, bf1, Wf2, bf2)

    # One-time weight repack (outside the jitted forward).
    prepped = jax.tree_util.tree_map(jax.block_until_ready,
                                     prepare_params(params))

    # Input: NCHW, MNIST-sized so the 1024-wide flatten matches the module.
    x = jax.random.normal(ks[8], (2, 1, 28, 28), jnp.float32)

    out = jax.jit(simple_cnn_forward)(x, prepped)
    out = jax.block_until_ready(out)
    assert out.shape == (2, 10)

    ref = jax.block_until_ready(jax.jit(reference_forward)(x, params))
    max_err = float(jnp.max(jnp.abs(out - ref)))
    assert max_err < 2e-3, f"mismatch vs reference: {max_err}"

    print("KERNEL_OK")
</pallas_src>

<mosaic_0001>
module attributes {stable_mosaic.version = 11 : i64} {
  func.func @conv_pool_relu_kernel(%arg0: i32, %arg1: memref<4x288x32xf32, #tpu.memory_space<vmem>>, %arg2: memref<32x32xf32, #tpu.memory_space<vmem>>, %arg3: memref<1x32xf32, #tpu.memory_space<vmem>>, %arg4: memref<288x32xf32, #tpu.memory_space<vmem>>) attributes {dimension_semantics = [#tpu.dimension_semantics<parallel>], iteration_bounds = array<i64: 1>, scalar_prefetch = 0 : i64, scratch_operands = 0 : i64, tpu.core_type = #tpu.core_type<tc>, window_params = [{transform_indices = @transform_0, window_bounds = array<i64: 4, 288, 32>}, {pipeline_mode = #tpu.pipeline_mode<synchronous>, transform_indices = @transform_1, window_bounds = array<i64: 32, 32>}, {pipeline_mode = #tpu.pipeline_mode<synchronous>, transform_indices = @transform_2, window_bounds = array<i64: 1, 32>}, {transform_indices = @transform_3, window_bounds = array<i64: 288, 32>}]} {
    %c0 = arith.constant 0 : index
    %c0_0 = arith.constant 0 : index
    %0 = vector.load %arg2[%c0, %c0_0] : memref<32x32xf32, #tpu.memory_space<vmem>>, vector<32x32xf32>
    %c0_1 = arith.constant 0 : index
    %c0_2 = arith.constant 0 : index
    %c0_3 = arith.constant 0 : index
    %1 = vector.load %arg1[%c0_1, %c0_2, %c0_3] : memref<4x288x32xf32, #tpu.memory_space<vmem>>, vector<1x288x32xf32>
    %2 = vector.shape_cast %1 : vector<1x288x32xf32> to vector<288x32xf32>
    %cst = arith.constant dense<0.000000e+00> : vector<288x32xf32>
    %3 = tpu.matmul %2, %0, %cst {dimension_numbers = #tpu.dot_dimension_numbers<[1], [0], [0], [1], [0, 0, 1, 1], [], []>} : vector<288x32xf32>, vector<32x32xf32>, vector<288x32xf32> -> vector<288x32xf32>
    %c1 = arith.constant 1 : index
    %c0_4 = arith.constant 0 : index
    %c0_5 = arith.constant 0 : index
    %4 = vector.load %arg1[%c1, %c0_4, %c0_5] : memref<4x288x32xf32, #tpu.memory_space<vmem>>, vector<1x288x32xf32>
    %5 = vector.shape_cast %4 : vector<1x288x32xf32> to vector<288x32xf32>
    %cst_6 = arith.constant dense<0.000000e+00> : vector<288x32xf32>
    %6 = tpu.matmul %5, %0, %cst_6 {dimension_numbers = #tpu.dot_dimension_numbers<[1], [0], [0], [1], [0, 0, 1, 1], [], []>} : vector<288x32xf32>, vector<32x32xf32>, vector<288x32xf32> -> vector<288x32xf32>
    %c2 = arith.constant 2 : index
    %c0_7 = arith.constant 0 : index
    %c0_8 = arith.constant 0 : index
    %7 = vector.load %arg1[%c2, %c0_7, %c0_8] : memref<4x288x32xf32, #tpu.memory_space<vmem>>, vector<1x288x32xf32>
    %8 = vector.shape_cast %7 : vector<1x288x32xf32> to vector<288x32xf32>
    %cst_9 = arith.constant dense<0.000000e+00> : vector<288x32xf32>
    %9 = tpu.matmul %8, %0, %cst_9 {dimension_numbers = #tpu.dot_dimension_numbers<[1], [0], [0], [1], [0, 0, 1, 1], [], []>} : vector<288x32xf32>, vector<32x32xf32>, vector<288x32xf32> -> vector<288x32xf32>
    %c3 = arith.constant 3 : index
    %c0_10 = arith.constant 0 : index
    %c0_11 = arith.constant 0 : index
    %10 = vector.load %arg1[%c3, %c0_10, %c0_11] : memref<4x288x32xf32, #tpu.memory_space<vmem>>, vector<1x288x32xf32>
    %11 = vector.shape_cast %10 : vector<1x288x32xf32> to vector<288x32xf32>
    %cst_12 = arith.constant dense<0.000000e+00> : vector<288x32xf32>
    %12 = tpu.matmul %11, %0, %cst_12 {dimension_numbers = #tpu.dot_dimension_numbers<[1], [0], [0], [1], [0, 0, 1, 1], [], []>} : vector<288x32xf32>, vector<32x32xf32>, vector<288x32xf32> -> vector<288x32xf32>
    %13 = arith.maximumf %3, %6 : vector<288x32xf32>
    %14 = arith.maximumf %9, %12 : vector<288x32xf32>
    %15 = arith.maximumf %13, %14 : vector<288x32xf32>
    %c0_13 = arith.constant 0 : index
    %c0_14 = arith.constant 0 : index
    %16 = vector.load %arg3[%c0_13, %c0_14] : memref<1x32xf32, #tpu.memory_space<vmem>>, vector<1x32xf32>
    %17 = vector.broadcast %16 : vector<1x32xf32> to vector<288x32xf32>
    %18 = arith.addf %15, %17 : vector<288x32xf32>
    %cst_15 = arith.constant 0.000000e+00 : f32
    %19 = vector.broadcast %cst_15 : f32 to vector<288x32xf32>
    %20 = arith.maximumf %18, %19 : vector<288x32xf32>
    %c0_16 = arith.constant 0 : index
    %c0_17 = arith.constant 0 : index
    %21 = vector.load %arg4[%c0_16, %c0_17] : memref<288x32xf32, #tpu.memory_space<vmem>>, vector<288x32xf32>
    tpu.vector_store %arg4[%c0_16, %c0_17], %20 {strides = array<i32>} : memref<288x32xf32, #tpu.memory_space<vmem>>, vector<288x32xf32>,
    return
  }
  func.func @transform_0(%arg0: i32) -> (i32, i32, i32) {
    %c0_i32 = arith.constant 0 : i32
    %c0_i32_0 = arith.constant 0 : i32
    %c0_i32_1 = arith.constant 0 : i32
    return %c0_i32, %arg0, %c0_i32_0 : i32, i32, i32
  }
  func.func @transform_1(%arg0: i32) -> (i32, i32) {
    %c0_i32 = arith.constant 0 : i32
    %c0_i32_0 = arith.constant 0 : i32
    %c0_i32_1 = arith.constant 0 : i32
    return %c0_i32, %c0_i32_0 : i32, i32
  }
  func.func @transform_2(%arg0: i32) -> (i32, i32) {
    %c0_i32 = arith.constant 0 : i32
    %c0_i32_0 = arith.constant 0 : i32
    %c0_i32_1 = arith.constant 0 : i32
    return %c0_i32, %c0_i32_0 : i32, i32
  }
  func.func @transform_3(%arg0: i32) -> (i32, i32) {
    %c0_i32 = arith.constant 0 : i32
    %c0_i32_0 = arith.constant 0 : i32
    return %arg0, %c0_i32 : i32, i32
  }
}

module attributes {stable_mosaic.version = 11 : i64} {
  func.func @conv_pool_relu_kernel(%arg0: i32, %arg1: memref<4x32x800xf32, #tpu.memory_space<vmem>>, %arg2: memref<800x64xf32, #tpu.memory_space<vmem>>, %arg3: memref<1x64xf32, #tpu.memory_space<vmem>>, %arg4: memref<32x64xf32, #tpu.memory_space<vmem>>) attributes {dimension_semantics = [#tpu.dimension_semantics<parallel>], iteration_bounds = array<i64: 1>, scalar_prefetch = 0 : i64, scratch_operands = 0 : i64, tpu.core_type = #tpu.core_type<tc>, window_params = [{transform_indices = @transform_0, window_bounds = array<i64: 4, 32, 800>}, {pipeline_mode = #tpu.pipeline_mode<synchronous>, transform_indices = @transform_1, window_bounds = array<i64: 800, 64>}, {pipeline_mode = #tpu.pipeline_mode<synchronous>, transform_indices = @transform_2, window_bounds = array<i64: 1, 64>}, {transform_indices = @transform_3, window_bounds = array<i64: 32, 64>}]} {
    %c0 = arith.constant 0 : index
    %c0_0 = arith.constant 0 : index
    %0 = vector.load %arg2[%c0, %c0_0] : memref<800x64xf32, #tpu.memory_space<vmem>>, vector<800x64xf32>
    %c0_1 = arith.constant 0 : index
    %c0_2 = arith.constant 0 : index
    %c0_3 = arith.constant 0 : index
    %1 = vector.load %arg1[%c0_1, %c0_2, %c0_3] : memref<4x32x800xf32, #tpu.memory_space<vmem>>, vector<1x32x800xf32>
    %2 = vector.shape_cast %1 : vector<1x32x800xf32> to vector<32x800xf32>
    %cst = arith.constant dense<0.000000e+00> : vector<32x64xf32>
    %3 = tpu.matmul %2, %0, %cst {dimension_numbers = #tpu.dot_dimension_numbers<[1], [0], [0], [1], [0, 0, 1, 1], [], []>} : vector<32x800xf32>, vector<800x64xf32>, vector<32x64xf32> -> vector<32x64xf32>
    %c1 = arith.constant 1 : index
    %c0_4 = arith.constant 0 : index
    %c0_5 = arith.constant 0 : index
    %4 = vector.load %arg1[%c1, %c0_4, %c0_5] : memref<4x32x800xf32, #tpu.memory_space<vmem>>, vector<1x32x800xf32>
    %5 = vector.shape_cast %4 : vector<1x32x800xf32> to vector<32x800xf32>
    %cst_6 = arith.constant dense<0.000000e+00> : vector<32x64xf32>
    %6 = tpu.matmul %5, %0, %cst_6 {dimension_numbers = #tpu.dot_dimension_numbers<[1], [0], [0], [1], [0, 0, 1, 1], [], []>} : vector<32x800xf32>, vector<800x64xf32>, vector<32x64xf32> -> vector<32x64xf32>
    %c2 = arith.constant 2 : index
    %c0_7 = arith.constant 0 : index
    %c0_8 = arith.constant 0 : index
    %7 = vector.load %arg1[%c2, %c0_7, %c0_8] : memref<4x32x800xf32, #tpu.memory_space<vmem>>, vector<1x32x800xf32>
    %8 = vector.shape_cast %7 : vector<1x32x800xf32> to vector<32x800xf32>
    %cst_9 = arith.constant dense<0.000000e+00> : vector<32x64xf32>
    %9 = tpu.matmul %8, %0, %cst_9 {dimension_numbers = #tpu.dot_dimension_numbers<[1], [0], [0], [1], [0, 0, 1, 1], [], []>} : vector<32x800xf32>, vector<800x64xf32>, vector<32x64xf32> -> vector<32x64xf32>
    %c3 = arith.constant 3 : index
    %c0_10 = arith.constant 0 : index
    %c0_11 = arith.constant 0 : index
    %10 = vector.load %arg1[%c3, %c0_10, %c0_11] : memref<4x32x800xf32, #tpu.memory_space<vmem>>, vector<1x32x800xf32>
    %11 = vector.shape_cast %10 : vector<1x32x800xf32> to vector<32x800xf32>
    %cst_12 = arith.constant dense<0.000000e+00> : vector<32x64xf32>
    %12 = tpu.matmul %11, %0, %cst_12 {dimension_numbers = #tpu.dot_dimension_numbers<[1], [0], [0], [1], [0, 0, 1, 1], [], []>} : vector<32x800xf32>, vector<800x64xf32>, vector<32x64xf32> -> vector<32x64xf32>
    %13 = arith.maximumf %3, %6 : vector<32x64xf32>
    %14 = arith.maximumf %9, %12 : vector<32x64xf32>
    %15 = arith.maximumf %13, %14 : vector<32x64xf32>
    %c0_13 = arith.constant 0 : index
    %c0_14 = arith.constant 0 : index
    %16 = vector.load %arg3[%c0_13, %c0_14] : memref<1x64xf32, #tpu.memory_space<vmem>>, vector<1x64xf32>
    %17 = vector.broadcast %16 : vector<1x64xf32> to vector<32x64xf32>
    %18 = arith.addf %15, %17 : vector<32x64xf32>
    %cst_15 = arith.constant 0.000000e+00 : f32
    %19 = vector.broadcast %cst_15 : f32 to vector<32x64xf32>
    %20 = arith.maximumf %18, %19 : vector<32x64xf32>
    %c0_16 = arith.constant 0 : index
    %c0_17 = arith.constant 0 : index
    %21 = vector.load %arg4[%c0_16, %c0_17] : memref<32x64xf32, #tpu.memory_space<vmem>>, vector<32x64xf32>
    tpu.vector_store %arg4[%c0_16, %c0_17], %20 {strides = array<i32>} : memref<32x64xf32, #tpu.memory_space<vmem>>, vector<32x64xf32>,
    return
  }
  func.func @transform_0(%arg0: i32) -> (i32, i32, i32) {
    %c0_i32 = arith.constant 0 : i32
    %c0_i32_0 = arith.constant 0 : i32
    %c0_i32_1 = arith.constant 0 : i32
    return %c0_i32, %arg0, %c0_i32_0 : i32, i32, i32
  }
  func.func @transform_1(%arg0: i32) -> (i32, i32) {
    %c0_i32 = arith.constant 0 : i32
    %c0_i32_0 = arith.constant 0 : i32
    %c0_i32_1 = arith.constant 0 : i32
    return %c0_i32, %c0_i32_0 : i32, i32
  }
  func.func @transform_2(%arg0: i32) -> (i32, i32) {
    %c0_i32 = arith.constant 0 : i32
    %c0_i32_0 = arith.constant 0 : i32
    %c0_i32_1 = arith.constant 0 : i32
    return %c0_i32, %c0_i32_0 : i32, i32
  }
  func.func @transform_3(%arg0: i32) -> (i32, i32) {
    %c0_i32 = arith.constant 0 : i32
    %c0_i32_0 = arith.constant 0 : i32
    return %arg0, %c0_i32 : i32, i32
  }
}

module attributes {stable_mosaic.version = 11 : i64} {
  func.func @fc_fused_kernel(%arg0: i32, %arg1: memref<2x1024xf32, #tpu.memory_space<vmem>>, %arg2: memref<1024x128xf32, #tpu.memory_space<vmem>>, %arg3: memref<1x128xf32, #tpu.memory_space<vmem>>, %arg4: memref<128x128xf32, #tpu.memory_space<vmem>>, %arg5: memref<1x128xf32, #tpu.memory_space<vmem>>, %arg6: memref<2x128xf32, #tpu.memory_space<vmem>>) attributes {dimension_semantics = [#tpu.dimension_semantics<parallel>], iteration_bounds = array<i64: 1>, scalar_prefetch = 0 : i64, scratch_operands = 0 : i64, tpu.core_type = #tpu.core_type<tc>, window_params = [{transform_indices = @transform_0, window_bounds = array<i64: 2, 1024>}, {pipeline_mode = #tpu.pipeline_mode<synchronous>, transform_indices = @transform_1, window_bounds = array<i64: 1024, 128>}, {pipeline_mode = #tpu.pipeline_mode<synchronous>, transform_indices = @transform_2, window_bounds = array<i64: 1, 128>}, {pipeline_mode = #tpu.pipeline_mode<synchronous>, transform_indices = @transform_3, window_bounds = array<i64: 128, 128>}, {pipeline_mode = #tpu.pipeline_mode<synchronous>, transform_indices = @transform_4, window_bounds = array<i64: 1, 128>}, {transform_indices = @transform_5, window_bounds = array<i64: 2, 128>}]} {
    %c0 = arith.constant 0 : index
    %c0_0 = arith.constant 0 : index
    %0 = vector.load %arg1[%c0, %c0_0] : memref<2x1024xf32, #tpu.memory_space<vmem>>, vector<2x1024xf32>
    %c0_1 = arith.constant 0 : index
    %c0_2 = arith.constant 0 : index
    %1 = vector.load %arg2[%c0_1, %c0_2] : memref<1024x128xf32, #tpu.memory_space<vmem>>, vector<1024x128xf32>
    %cst = arith.constant dense<0.000000e+00> : vector<2x128xf32>
    %2 = tpu.matmul %0, %1, %cst {dimension_numbers = #tpu.dot_dimension_numbers<[1], [0], [0], [1], [0, 0, 1, 1], [], []>} : vector<2x1024xf32>, vector<1024x128xf32>, vector<2x128xf32> -> vector<2x128xf32>
    %c0_3 = arith.constant 0 : index
    %c0_4 = arith.constant 0 : index
    %3 = vector.load %arg3[%c0_3, %c0_4] : memref<1x128xf32, #tpu.memory_space<vmem>>, vector<1x128xf32>
    %4 = vector.broadcast %3 : vector<1x128xf32> to vector<2x128xf32>
    %5 = arith.addf %2, %4 : vector<2x128xf32>
    %cst_5 = arith.constant 0.000000e+00 : f32
    %6 = vector.broadcast %cst_5 : f32 to vector<2x128xf32>
    %7 = arith.maximumf %5, %6 : vector<2x128xf32>
    %c0_6 = arith.constant 0 : index
    %c0_7 = arith.constant 0 : index
    %8 = vector.load %arg4[%c0_6, %c0_7] : memref<128x128xf32, #tpu.memory_space<vmem>>, vector<128x128xf32>
    %cst_8 = arith.constant dense<0.000000e+00> : vector<2x128xf32>
    %9 = tpu.matmul %7, %8, %cst_8 {dimension_numbers = #tpu.dot_dimension_numbers<[1], [0], [0], [1], [0, 0, 1, 1], [], []>} : vector<2x128xf32>, vector<128x128xf32>, vector<2x128xf32> -> vector<2x128xf32>
    %c0_9 = arith.constant 0 : index
    %c0_10 = arith.constant 0 : index
    %10 = vector.load %arg5[%c0_9, %c0_10] : memref<1x128xf32, #tpu.memory_space<vmem>>, vector<1x128xf32>
    %11 = vector.broadcast %10 : vector<1x128xf32> to vector<2x128xf32>
    %12 = arith.addf %9, %11 : vector<2x128xf32>
    %cst_11 = arith.constant dense<0xFF800000> : vector<2xf32>
    %13 = vector.multi_reduction <maximumf>, %12, %cst_11 [1] : vector<2x128xf32> to vector<2xf32>
    %14 = vector.shape_cast %13 : vector<2xf32> to vector<2x1xf32>
    %15 = vector.broadcast %14 : vector<2x1xf32> to vector<2x128xf32>
    %16 = arith.subf %12, %15 : vector<2x128xf32>
    %17 = math.exp %16 : vector<2x128xf32>
    %cst_12 = arith.constant dense<0.000000e+00> : vector<2xf32>
    %18 = vector.multi_reduction <add>, %17, %cst_12 [1] : vector<2x128xf32> to vector<2xf32>
    %19 = vector.shape_cast %18 : vector<2xf32> to vector<2x1xf32>
    %20 = math.log %19 : vector<2x1xf32>
    %21 = vector.broadcast %20 : vector<2x1xf32> to vector<2x128xf32>
    %22 = arith.subf %16, %21 : vector<2x128xf32>
    %c0_13 = arith.constant 0 : index
    %c0_14 = arith.constant 0 : index
    %23 = vector.load %arg6[%c0_13, %c0_14] : memref<2x128xf32, #tpu.memory_space<vmem>>, vector<2x128xf32>
    tpu.vector_store %arg6[%c0_13, %c0_14], %22 {strides = array<i32>} : memref<2x128xf32, #tpu.memory_space<vmem>>, vector<2x128xf32>,
    return
  }
  func.func @transform_0(%arg0: i32) -> (i32, i32) {
    %c0_i32 = arith.constant 0 : i32
    %c0_i32_0 = arith.constant 0 : i32
    return %arg0, %c0_i32 : i32, i32
  }
  func.func @transform_1(%arg0: i32) -> (i32, i32) {
    %c0_i32 = arith.constant 0 : i32
    %c0_i32_0 = arith.constant 0 : i32
    %c0_i32_1 = arith.constant 0 : i32
    return %c0_i32, %c0_i32_0 : i32, i32
  }
  func.func @transform_2(%arg0: i32) -> (i32, i32) {
    %c0_i32 = arith.constant 0 : i32
    %c0_i32_0 = arith.constant 0 : i32
    %c0_i32_1 = arith.constant 0 : i32
    return %c0_i32, %c0_i32_0 : i32, i32
  }
  func.func @transform_3(%arg0: i32) -> (i32, i32) {
    %c0_i32 = arith.constant 0 : i32
    %c0_i32_0 = arith.constant 0 : i32
    %c0_i32_1 = arith.constant 0 : i32
    return %c0_i32, %c0_i32_0 : i32, i32
  }
  func.func @transform_4(%arg0: i32) -> (i32, i32) {
    %c0_i32 = arith.constant 0 : i32
    %c0_i32_0 = arith.constant 0 : i32
    %c0_i32_1 = arith.constant 0 : i32
    return %c0_i32, %c0_i32_0 : i32, i32
  }
  func.func @transform_5(%arg0: i32) -> (i32, i32) {
    %c0_i32 = arith.constant 0 : i32
    %c0_i32_0 = arith.constant 0 : i32
    return %arg0, %c0_i32 : i32, i32
  }
}

</mosaic_0001>

<llo_original>
// kernel: simple_cnn_forward.3
$region0: #{simple_cnn_forward.3}
  #allocation0 [shape = 'u32[]', space=smem, size = 0x4, offset = 0x4, fixed_abs, tag = 'smem constant byte address 0x4 - core index']
  #allocation1 [shape = 'u32[144,128]{1,0:T(1,128)}', space=vmem, size = 0x12000, scoped, tag = 'internal scratch']
  %s0 = inlined_call_operand.vmem [shape: f32[4,288,32], index: 0, kind: input, shape index: {}]
  %s1 = inlined_call_operand.vmem [shape: f32[32,32], index: 1, kind: input, shape index: {}]
  %s2 = inlined_call_operand.vmem [shape: f32[1,32], index: 2, kind: input, shape index: {}]
  %s3 = inlined_call_operand.vmem [shape: f32[288,32], index: 3, kind: output, shape index: {}]
  %s4 = sld [smem:[#allocation0]]
  $region22: #{simple_cnn_forward.3} parent=0
    _
  %s6 = ssub.s32 1, %s4
  %s7 = scalar_select 0, %s6, %s4
  // Predicated region
  $region2: #{simple_cnn_forward.3} parent=0 // pred_check
    _
  $region3: #{simple_cnn_forward.3} parent=0 // pred_check_branch
    %9 = sbr.rel (0) target = $region5
  $region4: #{simple_cnn_forward.3} parent=0 // pred_region
    _
  $region5: #{simple_cnn_forward.3} parent=0 // pred_fallthru
    _
  // Predicated region
  $region6: #{simple_cnn_forward.3} parent=0 // pred_check
    _
  $region7: #{simple_cnn_forward.3} parent=0 // pred_check_branch
    %11 = sbr.rel (0) target = $region9
  $region8: #{simple_cnn_forward.3} parent=0 // pred_region
    _
  $region9: #{simple_cnn_forward.3} parent=0 // pred_fallthru
    _
  // Predicated region
  $region10: #{simple_cnn_forward.3} parent=0 // pred_check
    _
  $region11: #{simple_cnn_forward.3} parent=0 // pred_check_branch
    %13 = sbr.rel (0) target = $region13
  $region12: #{simple_cnn_forward.3} parent=0 // pred_region
    _
  $region13: #{simple_cnn_forward.3} parent=0 // pred_fallthru
    _
  %v14 = vld [vmem:[%s1] sm:$0xff]
  %v15 = vld [vmem:[%s1 + $0x8] sm:$0xff]
  %v16 = vld [vmem:[%s1 + $0x10] sm:$0xff]
  %v17 = vld [vmem:[%s1 + $0x18] sm:$0xff]
  %v18 = vld [vmem:[%s0] sm:$0xff]
  %v19 = vld [vmem:[%s0 + $0x8] sm:$0xff]
  %v20 = vld [vmem:[%s0 + $0x10] sm:$0xff]
  %v21 = vld [vmem:[%s0 + $0x18] sm:$0xff]
  %v22 = vld [vmem:[%s0 + $0x20] sm:$0xff]
  %v23 = vld [vmem:[%s0 + $0x28] sm:$0xff]
  %v24 = vld [vmem:[%s0 + $0x30] sm:$0xff]
  %v25 = vld [vmem:[%s0 + $0x38] sm:$0xff]
  %v26 = vld [vmem:[%s0 + $0x40] sm:$0xff]
  %v27 = vld [vmem:[%s0 + $0x48] sm:$0xff]
  %v28 = vld [vmem:[%s0 + $0x50] sm:$0xff]
  %v29 = vld [vmem:[%s0 + $0x58] sm:$0xff]
  %v30 = vld [vmem:[%s0 + $0x60] sm:$0xff]
  %v31 = vld [vmem:[%s0 + $0x68] sm:$0xff]
  %v32 = vld [vmem:[%s0 + $0x70] sm:$0xff]
  %v33 = vld [vmem:[%s0 + $0x78] sm:$0xff]
  %v34 = vld [vmem:[%s0 + $0x80] sm:$0xff]
  %v35 = vld [vmem:[%s0 + $0x88] sm:$0xff]
  %v36 = vld [vmem:[%s0 + $0x90] sm:$0xff]
  %v37 = vld [vmem:[%s0 + $0x98] sm:$0xff]
  %v38 = vld [vmem:[%s0 + $0xa0] sm:$0xff]
  %v39 = vld [vmem:[%s0 + $0xa8] sm:$0xff]
  %v40 = vld [vmem:[%s0 + $0xb0] sm:$0xff]
  %v41 = vld [vmem:[%s0 + $0xb8] sm:$0xff]
  %v42 = vld [vmem:[%s0 + $0xc0] sm:$0xff]
  %v43 = vld [vmem:[%s0 + $0xc8] sm:$0xff]
  %v44 = vld [vmem:[%s0 + $0xd0] sm:$0xff]
  %v45 = vld [vmem:[%s0 + $0xd8] sm:$0xff]
  %v46 = vld [vmem:[%s0 + $0xe0] sm:$0xff]
  %v47 = vld [vmem:[%s0 + $0xe8] sm:$0xff]
  %v48 = vld [vmem:[%s0 + $0xf0] sm:$0xff]
  %v49 = vld [vmem:[%s0 + $0xf8] sm:$0xff]
  %v50 = vld [vmem:[%s0 + $0x100] sm:$0xff]
  %v51 = vld [vmem:[%s0 + $0x108] sm:$0xff]
  %v52 = vld [vmem:[%s0 + $0x110] sm:$0xff]
  %v53 = vld [vmem:[%s0 + $0x118] sm:$0xff]
  %vm54 = vcmask 261120
  %v56 = vsel %vm54, %v18, 0
  %v59 = vsel %vm54, %v19, 0
  %v62 = vsel %vm54, %v20, 0
  %v65 = vsel %vm54, %v21, 0
  %v68 = vsel %vm54, %v22, 0
  %v71 = vsel %vm54, %v23, 0
  %v74 = vsel %vm54, %v24, 0
  %v77 = vsel %vm54, %v25, 0
  %v80 = vsel %vm54, %v26, 0
  %v83 = vsel %vm54, %v27, 0
  %v86 = vsel %vm54, %v28, 0
  %v89 = vsel %vm54, %v29, 0
  %v92 = vsel %vm54, %v30, 0
  %v95 = vsel %vm54, %v31, 0
  %v98 = vsel %vm54, %v32, 0
  %v101 = vsel %vm54, %v33, 0
  %v104 = vsel %vm54, %v34, 0
  %v107 = vsel %vm54, %v35, 0
  %v110 = vsel %vm54, %v36, 0
  %v113 = vsel %vm54, %v37, 0
  %v116 = vsel %vm54, %v38, 0
  %v119 = vsel %vm54, %v39, 0
  %v122 = vsel %vm54, %v40, 0
  %v125 = vsel %vm54, %v41, 0
  %v128 = vsel %vm54, %v42, 0
  %v131 = vsel %vm54, %v43, 0
  %v134 = vsel %vm54, %v44, 0
  %v137 = vsel %vm54, %v45, 0
  %v140 = vsel %vm54, %v46, 0
  %v143 = vsel %vm54, %v47, 0
  %v146 = vsel %vm54, %v48, 0
  %v149 = vsel %vm54, %v49, 0
  %v152 = vsel %vm54, %v50, 0
  %v155 = vsel %vm54, %v51, 0
  %v158 = vsel %vm54, %v52, 0
  %v161 = vsel %vm54, %v53, 0
  %163 = vmatprep.subr.mxu0 0.0
  %164 = vmatpush1.msra.mxu0 0.0
  %165 = vmatprep.subr.mxu0 0.0
  %166 = vmatpush1.msra.mxu0 0.0
  %167 = vmatprep.subr.mxu0 0.0
  %168 = vmatpush1.msra.mxu0 0.0
  %169 = vmatprep.subr.mxu0 0.0
  %170 = vmatpush1.msra.mxu0 0.0
  %171 = vmatprep.subr.mxu0 0.0
  %172 = vmatpush1.msra.mxu0 0.0
  %173 = vmatprep.subr.mxu0 0.0
  %174 = vmatpush1.msra.mxu0 0.0
  %175 = vmatprep.subr.mxu0 0.0
  %176 = vmatpush1.msra.mxu0 0.0
  %177 = vmatprep.subr.mxu0 0.0
  %178 = vmatpush1.msra.mxu0 0.0
  %179 = vmatprep.subr.mxu0 0.0
  %180 = vmatpush1.msra.mxu0 0.0
  %181 = vmatprep.subr.mxu0 0.0
  %182 = vmatpush1.msra.mxu0 0.0
  %183 = vmatprep.subr.mxu0 0.0
  %184 = vmatpush1.msra.mxu0 0.0
  %185 = vmatprep.subr.mxu0 0.0
  %186 = vmatpush1.msra.mxu0 0.0
  %187 = vmatprep.subr.mxu0 0.0
  %188 = vmatpush1.msra.mxu0 %v17
  %189 = vmatprep.subr.mxu0 0.0
  %190 = vmatpush1.msra.mxu0 %v16
  %191 = vmatprep.subr.mxu0 0.0
  %192 = vmatpush1.msra.mxu0 %v15
  %193 = vmatprep.subr.mxu0 0.0
  %194 = vmatpush1.msra.mxu0 %v14
  %195 = vmatprep.subr.mxu0 0.0
  %196 = vmatpush2.msra.mxu0 0.0
  %197 = vmatprep.subr.mxu0 0.0
  %198 = vmatpush2.msra.mxu0 0.0
  %199 = vmatprep.subr.mxu0 0.0
  %200 = vmatpush2.msra.mxu0 0.0
  %201 = vmatprep.subr.mxu0 0.0
  %202 = vmatpush2.msra.mxu0 0.0
  %203 = vmatprep.subr.mxu0 0.0
  %204 = vmatpush2.msra.mxu0 0.0
  %205 = vmatprep.subr.mxu0 0.0
  %206 = vmatpush2.msra.mxu0 0.0
  %207 = vmatprep.subr.mxu0 0.0
  %208 = vmatpush2.msra.mxu0 0.0
  %209 = vmatprep.subr.mxu0 0.0
  %210 = vmatpush2.msra.mxu0 0.0
  %211 = vmatprep.subr.mxu0 0.0
  %212 = vmatpush2.msra.mxu0 0.0
  %213 = vmatprep.subr.mxu0 0.0
  %214 = vmatpush2.msra.mxu0 0.0
  %215 = vmatprep.subr.mxu0 0.0
  %216 = vmatpush2.msra.mxu0 0.0
  %217 = vmatprep.subr.mxu0 0.0
  %218 = vmatpush2.msra.mxu0 0.0
  %219 = vmatprep.subr.mxu0 0.0
  %220 = vmatpush2.msra.mxu0 0.0
  %221 = vmatprep.subr.mxu0 0.0
  %222 = vmatpush2.msra.mxu0 0.0
  %223 = vmatprep.subr.mxu0 0.0
  %224 = vmatpush2.msra.mxu0 0.0
  %225 = vmatprep.subr.mxu0 0.0
  %226 = vmatpush2.msra.mxu0 0.0
  %227 = vmatprep.mubr.f32.mxu0 0.0
  %228 = vmatmul.mubr.f32.gmra.mxu0 %v56
  %v229 = vpop.f32.mrf.mxu0
  %v230 = vadd.f32 0.0, %v229
  %v231 = vpop.f32.mrf.mxu0
  %232 = vmatprep.mubr.f32.mxu0 0.0
  %233 = vmatmul.mubr.f32.gmra.mxu0 %v59
  %v234 = vpop.f32.mrf.mxu0
  %v235 = vadd.f32 0.0, %v234
  %v236 = vpop.f32.mrf.mxu0
  %237 = vmatprep.mubr.f32.mxu0 0.0
  %238 = vmatmul.mubr.f32.gmra.mxu0 %v62
  %v239 = vpop.f32.mrf.mxu0
  %v240 = vadd.f32 0.0, %v239
  %v241 = vpop.f32.mrf.mxu0
  %242 = vmatprep.mubr.f32.mxu0 0.0
  %243 = vmatmul.mubr.f32.gmra.mxu0 %v65
  %v244 = vpop.f32.mrf.mxu0
  %v245 = vadd.f32 0.0, %v244
  %v246 = vpop.f32.mrf.mxu0
  %247 = vmatprep.mubr.f32.mxu0 0.0
  %248 = vmatmul.mubr.f32.gmra.mxu0 %v68
  %v249 = vpop.f32.mrf.mxu0
  %v250 = vadd.f32 0.0, %v249
  %v251 = vpop.f32.mrf.mxu0
  %252 = vmatprep.mubr.f32.mxu0 0.0
  %253 = vmatmul.mubr.f32.gmra.mxu0 %v71
  %v254 = vpop.f32.mrf.mxu0
  %v255 = vadd.f32 0.0, %v254
  %v256 = vpop.f32.mrf.mxu0
  %257 = vmatprep.mubr.f32.mxu0 0.0
  %258 = vmatmul.mubr.f32.gmra.mxu0 %v74
  %v259 = vpop.f32.mrf.mxu0
  %v260 = vadd.f32 0.0, %v259
  %v261 = vpop.f32.mrf.mxu0
  %262 = vmatprep.mubr.f32.mxu0 0.0
  %263 = vmatmul.mubr.f32.gmra.mxu0 %v77
  %v264 = vpop.f32.mrf.mxu0
  %v265 = vadd.f32 0.0, %v264
  %v266 = vpop.f32.mrf.mxu0
  %267 = vmatprep.mubr.f32.mxu0 0.0
  %268 = vmatmul.mubr.f32.gmra.mxu0 %v80
  %v269 = vpop.f32.mrf.mxu0
  %v270 = vadd.f32 0.0, %v269
  %v271 = vpop.f32.mrf.mxu0
  %272 = vmatprep.mubr.f32.mxu0 0.0
  %273 = vmatmul.mubr.f32.gmra.mxu0 %v83
  %v274 = vpop.f32.mrf.mxu0
  %v275 = vadd.f32 0.0, %v274
  %v276 = vpop.f32.mrf.mxu0
  %277 = vmatprep.mubr.f32.mxu0 0.0
  %278 = vmatmul.mubr.f32.gmra.mxu0 %v86
  %v279 = vpop.f32.mrf.mxu0
  %v280 = vadd.f32 0.0, %v279
  %v281 = vpop.f32.mrf.mxu0
  %282 = vmatprep.mubr.f32.mxu0 0.0
  %283 = vmatmul.mubr.f32.gmra.mxu0 %v89
  %v284 = vpop.f32.mrf.mxu0
  %v285 = vadd.f32 0.0, %v284
  %v286 = vpop.f32.mrf.mxu0
  %287 = vmatprep.mubr.f32.mxu0 0.0
  %288 = vmatmul.mubr.f32.gmra.mxu0 %v92
  %v289 = vpop.f32.mrf.mxu0
  %v290 = vadd.f32 0.0, %v289
  %v291 = vpop.f32.mrf.mxu0
  %292 = vmatprep.mubr.f32.mxu0 0.0
  %293 = vmatmul.mubr.f32.gmra.mxu0 %v95
  %v294 = vpop.f32.mrf.mxu0
  %v295 = vadd.f32 0.0, %v294
  %v296 = vpop.f32.mrf.mxu0
  %297 = vmatprep.mubr.f32.mxu0 0.0
  %298 = vmatmul.mubr.f32.gmra.mxu0 %v98
  %v299 = vpop.f32.mrf.mxu0
  %v300 = vadd.f32 0.0, %v299
  %v301 = vpop.f32.mrf.mxu0
  %302 = vmatprep.mubr.f32.mxu0 0.0
  %303 = vmatmul.mubr.f32.gmra.mxu0 %v101
  %v304 = vpop.f32.mrf.mxu0
  %v305 = vadd.f32 0.0, %v304
  %v306 = vpop.f32.mrf.mxu0
  %307 = vmatprep.mubr.f32.mxu0 0.0
  %308 = vmatmul.mubr.f32.gmra.mxu0 %v104
  %v309 = vpop.f32.mrf.mxu0
  %v310 = vadd.f32 0.0, %v309
  %v311 = vpop.f32.mrf.mxu0
  %312 = vmatprep.mubr.f32.mxu0 0.0
  %313 = vmatmul.mubr.f32.gmra.mxu0 %v107
  %v314 = vpop.f32.mrf.mxu0
  %v315 = vadd.f32 0.0, %v314
  %v316 = vpop.f32.mrf.mxu0
  %317 = vmatprep.mubr.f32.mxu0 0.0
  %318 = vmatmul.mubr.f32.gmra.mxu0 %v110
  %v319 = vpop.f32.mrf.mxu0
  %v320 = vadd.f32 0.0, %v319
  %v321 = vpop.f32.mrf.mxu0
  %322 = vmatprep.mubr.f32.mxu0 0.0
  %323 = vmatmul.mubr.f32.gmra.mxu0 %v113
  %v324 = vpop.f32.mrf.mxu0
  %v325 = vadd.f32 0.0, %v324
  %v326 = vpop.f32.mrf.mxu0
  %327 = vmatprep.mubr.f32.mxu0 0.0
  %328 = vmatmul.mubr.f32.gmra.mxu0 %v116
  %v329 = vpop.f32.mrf.mxu0
  %v330 = vadd.f32 0.0, %v329
  %v331 = vpop.f32.mrf.mxu0
  %332 = vmatprep.mubr.f32.mxu0 0.0
  %333 = vmatmul.mubr.f32.gmra.mxu0 %v119
  %v334 = vpop.f32.mrf.mxu0
  %v335 = vadd.f32 0.0, %v334
  %v336 = vpop.f32.mrf.mxu0
  %337 = vmatprep.mubr.f32.mxu0 0.0
  %338 = vmatmul.mubr.f32.gmra.mxu0 %v122
  %v339 = vpop.f32.mrf.mxu0
  %v340 = vadd.f32 0.0, %v339
  %v341 = vpop.f32.mrf.mxu0
  %342 = vmatprep.mubr.f32.mxu0 0.0
  %343 = vmatmul.mubr.f32.gmra.mxu0 %v125
  %v344 = vpop.f32.mrf.mxu0
  %v345 = vadd.f32 0.0, %v344
  %v346 = vpop.f32.mrf.mxu0
  %347 = vmatprep.mubr.f32.mxu0 0.0
  %348 = vmatmul.mubr.f32.gmra.mxu0 %v128
  %v349 = vpop.f32.mrf.mxu0
  %v350 = vadd.f32 0.0, %v349
  %v351 = vpop.f32.mrf.mxu0
  %352 = vmatprep.mubr.f32.mxu0 0.0
  %353 = vmatmul.mubr.f32.gmra.mxu0 %v131
  %v354 = vpop.f32.mrf.mxu0
  %v355 = vadd.f32 0.0, %v354
  %v356 = vpop.f32.mrf.mxu0
  %357 = vmatprep.mubr.f32.mxu0 0.0
  %358 = vmatmul.mubr.f32.gmra.mxu0 %v134
  %v359 = vpop.f32.mrf.mxu0
  %v360 = vadd.f32 0.0, %v359
  %v361 = vpop.f32.mrf.mxu0
  %362 = vmatprep.mubr.f32.mxu0 0.0
  %363 = vmatmul.mubr.f32.gmra.mxu0 %v137
  %v364 = vpop.f32.mrf.mxu0
  %v365 = vadd.f32 0.0, %v364
  %v366 = vpop.f32.mrf.mxu0
  %367 = vmatprep.mubr.f32.mxu0 0.0
  %368 = vmatmul.mubr.f32.gmra.mxu0 %v140
  %v369 = vpop.f32.mrf.mxu0
  %v370 = vadd.f32 0.0, %v369
  %v371 = vpop.f32.mrf.mxu0
  %372 = vmatprep.mubr.f32.mxu0 0.0
  %373 = vmatmul.mubr.f32.gmra.mxu0 %v143
  %v374 = vpop.f32.mrf.mxu0
  %v375 = vadd.f32 0.0, %v374
  %v376 = vpop.f32.mrf.mxu0
  %377 = vmatprep.mubr.f32.mxu0 0.0
  %378 = vmatmul.mubr.f32.gmra.mxu0 %v146
  %v379 = vpop.f32.mrf.mxu0
  %v380 = vadd.f32 0.0, %v379
  %v381 = vpop.f32.mrf.mxu0
  %382 = vmatprep.mubr.f32.mxu0 0.0
  %383 = vmatmul.mubr.f32.gmra.mxu0 %v149
  %v384 = vpop.f32.mrf.mxu0
  %v385 = vadd.f32 0.0, %v384
  %v386 = vpop.f32.mrf.mxu0
  %387 = vmatprep.mubr.f32.mxu0 0.0
  %388 = vmatmul.mubr.f32.gmra.mxu0 %v152
  %v389 = vpop.f32.mrf.mxu0
  %v390 = vadd.f32 0.0, %v389
  %v391 = vpop.f32.mrf.mxu0
  %392 = vmatprep.mubr.f32.mxu0 0.0
  %393 = vmatmul.mubr.f32.gmra.mxu0 %v155
  %v394 = vpop.f32.mrf.mxu0
  %v395 = vadd.f32 0.0, %v394
  %v396 = vpop.f32.mrf.mxu0
  %397 = vmatprep.mubr.f32.mxu0 0.0
  %398 = vmatmul.mubr.f32.gmra.mxu0 %v158
  %v399 = vpop.f32.mrf.mxu0
  %v400 = vadd.f32 0.0, %v399
  %v401 = vpop.f32.mrf.mxu0
  %402 = vmatprep.mubr.f32.mxu0 0.0
  %403 = vmatmul.mubr.f32.gmra.mxu0 %v161
  %v404 = vpop.f32.mrf.mxu0
  %v405 = vadd.f32 0.0, %v404
  %v406 = vpop.f32.mrf.mxu0
  %407 = vdwg.mxu0
  %s408 = scalar_lea.vmem %s0, 288
  %v409 = vld [vmem:[%s408] sm:$0xff]
  %v410 = vld [vmem:[%s408 + $0x8] sm:$0xff]
  %v411 = vld [vmem:[%s408 + $0x10] sm:$0xff]
  %v412 = vld [vmem:[%s408 + $0x18] sm:$0xff]
  %v413 = vld [vmem:[%s408 + $0x20] sm:$0xff]
  %v414 = vld [vmem:[%s408 + $0x28] sm:$0xff]
  %v415 = vld [vmem:[%s408 + $0x30] sm:$0xff]
  %v416 = vld [vmem:[%s408 + $0x38] sm:$0xff]
  %v417 = vld [vmem:[%s408 + $0x40] sm:$0xff]
  %v418 = vld [vmem:[%s408 + $0x48] sm:$0xff]
  %v419 = vld [vmem:[%s408 + $0x50] sm:$0xff]
  %v420 = vld [vmem:[%s408 + $0x58] sm:$0xff]
  %v421 = vld [vmem:[%s408 + $0x60] sm:$0xff]
  %v422 = vld [vmem:[%s408 + $0x68] sm:$0xff]
  %v423 = vld [vmem:[%s408 + $0x70] sm:$0xff]
  %v424 = vld [vmem:[%s408 + $0x78] sm:$0xff]
  %v425 = vld [vmem:[%s408 + $0x80] sm:$0xff]
  %v426 = vld [vmem:[%s408 + $0x88] sm:$0xff]
  %v427 = vld [vmem:[%s408 + $0x90] sm:$0xff]
  %v428 = vld [vmem:[%s408 + $0x98] sm:$0xff]
  %v429 = vld [vmem:[%s408 + $0xa0] sm:$0xff]
  %v430 = vld [vmem:[%s408 + $0xa8] sm:$0xff]
  %v431 = vld [vmem:[%s408 + $0xb0] sm:$0xff]
  %v432 = vld [vmem:[%s408 + $0xb8] sm:$0xff]
  %v433 = vld [vmem:[%s408 + $0xc0] sm:$0xff]
  %v434 = vld [vmem:[%s408 + $0xc8] sm:$0xff]
  %v435 = vld [vmem:[%s408 + $0xd0] sm:$0xff]
  %v436 = vld [vmem:[%s408 + $0xd8] sm:$0xff]
  %v437 = vld [vmem:[%s408 + $0xe0] sm:$0xff]
  %v438 = vld [vmem:[%s408 + $0xe8] sm:$0xff]
  %v439 = vld [vmem:[%s408 + $0xf0] sm:$0xff]
  %v440 = vld [vmem:[%s408 + $0xf8] sm:$0xff]
  %v441 = vld [vmem:[%s408 + $0x100] sm:$0xff]
  %v442 = vld [vmem:[%s408 + $0x108] sm:$0xff]
  %v443 = vld [vmem:[%s408 + $0x110] sm:$0xff]
  %v444 = vld [vmem:[%s408 + $0x118] sm:$0xff]
  %v446 = vsel %vm54, %v409, 0
  %v449 = vsel %vm54, %v410, 0
  %v452 = vsel %vm54, %v411, 0
  %v455 = vsel %vm54, %v412, 0
  %v458 = vsel %vm54, %v413, 0
  %v461 = vsel %vm54, %v414, 0
  %v464 = vsel %vm54, %v415, 0
  %v467 = vsel %vm54, %v416, 0
  %v470 = vsel %vm54, %v417, 0
  %v473 = vsel %vm54, %v418, 0
  %v476 = vsel %vm54, %v419, 0
  %v479 = vsel %vm54, %v420, 0
  %v482 = vsel %vm54, %v421, 0
  %v485 = vsel %vm54, %v422, 0
  %v488 = vsel %vm54, %v423, 0
  %v491 = vsel %vm54, %v424, 0
  %v494 = vsel %vm54, %v425, 0
  %v497 = vsel %vm54, %v426, 0
  %v500 = vsel %vm54, %v427, 0
  %v503 = vsel %vm54, %v428, 0
  %v506 = vsel %vm54, %v429, 0
  %v509 = vsel %vm54, %v430, 0
  %v512 = vsel %vm54, %v431, 0
  %v515 = vsel %vm54, %v432, 0
  %v518 = vsel %vm54, %v433, 0
  %v521 = vsel %vm54, %v434, 0
  %v524 = vsel %vm54, %v435, 0
  %v527 = vsel %vm54, %v436, 0
  %v530 = vsel %vm54, %v437, 0
  %v533 = vsel %vm54, %v438, 0
  %v536 = vsel %vm54, %v439, 0
  %v539 = vsel %vm54, %v440, 0
  %v542 = vsel %vm54, %v441, 0
  %v545 = vsel %vm54, %v442, 0
  %v548 = vsel %vm54, %v443, 0
  %v551 = vsel %vm54, %v444, 0
  %553 = vmatprep.subr.mxu0 0.0
  %554 = vmatpush1.msra.mxu0 0.0
  %555 = vmatprep.subr.mxu0 0.0
  %556 = vmatpush1.msra.mxu0 0.0
  %557 = vmatprep.subr.mxu0 0.0
  %558 = vmatpush1.msra.mxu0 0.0
  %559 = vmatprep.subr.mxu0 0.0
  %560 = vmatpush1.msra.mxu0 0.0
  %561 = vmatprep.subr.mxu0 0.0
  %562 = vmatpush1.msra.mxu0 0.0
  %563 = vmatprep.subr.mxu0 0.0
  %564 = vmatpush1.msra.mxu0 0.0
  %565 = vmatprep.subr.mxu0 0.0
  %566 = vmatpush1.msra.mxu0 0.0
  %567 = vmatprep.subr.mxu0 0.0
  %568 = vmatpush1.msra.mxu0 0.0
  %569 = vmatprep.subr.mxu0 0.0
  %570 = vmatpush1.msra.mxu0 0.0
  %571 = vmatprep.subr.mxu0 0.0
  %572 = vmatpush1.msra.mxu0 0.0
  %573 = vmatprep.subr.mxu0 0.0
  %574 = vmatpush1.msra.mxu0 0.0
  %575 = vmatprep.subr.mxu0 0.0
  %576 = vmatpush1.msra.mxu0 0.0
  %577 = vmatprep.subr.mxu0 0.0
  %578 = vmatpush1.msra.mxu0 %v17
  %579 = vmatprep.subr.mxu0 0.0
  %580 = vmatpush1.msra.mxu0 %v16
  %581 = vmatprep.subr.mxu0 0.0
  %582 = vmatpush1.msra.mxu0 %v15
  %583 = vmatprep.subr.mxu0 0.0
  %584 = vmatpush1.msra.mxu0 %v14
  %585 = vmatprep.subr.mxu0 0.0
  %586 = vmatpush2.msra.mxu0 0.0
  %587 = vmatprep.subr.mxu0 0.0
  %588 = vmatpush2.msra.mxu0 0.0
  %589 = vmatprep.subr.mxu0 0.0
  %590 = vmatpush2.msra.mxu0 0.0
  %591 = vmatprep.subr.mxu0 0.0
  %592 = vmatpush2.msra.mxu0 0.0
  %593 = vmatprep.subr.mxu0 0.0
  %594 = vmatpush2.msra.mxu0 0.0
  %595 = vmatprep.subr.mxu0 0.0
  %596 = vmatpush2.msra.mxu0 0.0
  %597 = vmatprep.subr.mxu0 0.0
  %598 = vmatpush2.msra.mxu0 0.0
  %599 = vmatprep.subr.mxu0 0.0
  %600 = vmatpush2.msra.mxu0 0.0
  %601 = vmatprep.subr.mxu0 0.0
  %602 = vmatpush2.msra.mxu0 0.0
  %603 = vmatprep.subr.mxu0 0.0
  %604 = vmatpush2.msra.mxu0 0.0
  %605 = vmatprep.subr.mxu0 0.0
  %606 = vmatpush2.msra.mxu0 0.0
  %607 = vmatprep.subr.mxu0 0.0
  %608 = vmatpush2.msra.mxu0 0.0
  %609 = vmatprep.subr.mxu0 0.0
  %610 = vmatpush2.msra.mxu0 0.0
  %611 = vmatprep.subr.mxu0 0.0
  %612 = vmatpush2.msra.mxu0 0.0
  %613 = vmatprep.subr.mxu0 0.0
  %614 = vmatpush2.msra.mxu0 0.0
  %615 = vmatprep.subr.mxu0 0.0
  %616 = vmatpush2.msra.mxu0 0.0
  %617 = vmatprep.mubr.f32.mxu0 0.0
  %618 = vmatmul.mubr.f32.gmra.mxu0 %v446
  %v619 = vpop.f32.mrf.mxu0
  %v620 = vadd.f32 0.0, %v619
  %v621 = vpop.f32.mrf.mxu0
  %622 = vmatprep.mubr.f32.mxu0 0.0
  %623 = vmatmul.mubr.f32.gmra.mxu0 %v449
  %v624 = vpop.f32.mrf.mxu0
  %v625 = vadd.f32 0.0, %v624
  %v626 = vpop.f32.mrf.mxu0
  %627 = vmatprep.mubr.f32.mxu0 0.0
  %628 = vmatmul.mubr.f32.gmra.mxu0 %v452
  %v629 = vpop.f32.mrf.mxu0
  %v630 = vadd.f32 0.0, %v629
  %v631 = vpop.f32.mrf.mxu0
  %632 = vmatprep.mubr.f32.mxu0 0.0
  %633 = vmatmul.mubr.f32.gmra.mxu0 %v455
  %v634 = vpop.f32.mrf.mxu0
  %v635 = vadd.f32 0.0, %v634
  %v636 = vpop.f32.mrf.mxu0
  %637 = vmatprep.mubr.f32.mxu0 0.0
  %638 = vmatmul.mubr.f32.gmra.mxu0 %v458
  %v639 = vpop.f32.mrf.mxu0
  %v640 = vadd.f32 0.0, %v639
  %v641 = vpop.f32.mrf.mxu0
  %642 = vmatprep.mubr.f32.mxu0 0.0
  %643 = vmatmul.mubr.f32.gmra.mxu0 %v461
  %v644 = vpop.f32.mrf.mxu0
  %v645 = vadd.f32 0.0, %v644
  %v646 = vpop.f32.mrf.mxu0
  %647 = vmatprep.mubr.f32.mxu0 0.0
  %648 = vmatmul.mubr.f32.gmra.mxu0 %v464
  %v649 = vpop.f32.mrf.mxu0
  %v650 = vadd.f32 0.0, %v649
  %v651 = vpop.f32.mrf.mxu0
  %652 = vmatprep.mubr.f32.mxu0 0.0
  %653 = vmatmul.mubr.f32.gmra.mxu0 %v467
  %v654 = vpop.f32.mrf.mxu0
  %v655 = vadd.f32 0.0, %v654
  %v656 = vpop.f32.mrf.mxu0
  %657 = vmatprep.mubr.f32.mxu0 0.0
  %658 = vmatmul.mubr.f32.gmra.mxu0 %v470
  %v659 = vpop.f32.mrf.mxu0
  %v660 = vadd.f32 0.0, %v659
  %v661 = vpop.f32.mrf.mxu0
  %662 = vmatprep.mubr.f32.mxu0 0.0
  %663 = vmatmul.mubr.f32.gmra.mxu0 %v473
  %v664 = vpop.f32.mrf.mxu0
  %v665 = vadd.f32 0.0, %v664
  %v666 = vpop.f32.mrf.mxu0
  %667 = vmatprep.mubr.f32.mxu0 0.0
  %668 = vmatmul.mubr.f32.gmra.mxu0 %v476
  %v669 = vpop.f32.mrf.mxu0
  %v670 = vadd.f32 0.0, %v669
  %v671 = vpop.f32.mrf.mxu0
  %672 = vmatprep.mubr.f32.mxu0 0.0
  %673 = vmatmul.mubr.f32.gmra.mxu0 %v479
  %v674 = vpop.f32.mrf.mxu0
  %v675 = vadd.f32 0.0, %v674
  %v676 = vpop.f32.mrf.mxu0
  %677 = vmatprep.mubr.f32.mxu0 0.0
  %678 = vmatmul.mubr.f32.gmra.mxu0 %v482
  %v679 = vpop.f32.mrf.mxu0
  %v680 = vadd.f32 0.0, %v679
  %v681 = vpop.f32.mrf.mxu0
  %682 = vmatprep.mubr.f32.mxu0 0.0
  %683 = vmatmul.mubr.f32.gmra.mxu0 %v485
  %v684 = vpop.f32.mrf.mxu0
  %v685 = vadd.f32 0.0, %v684
  %v686 = vpop.f32.mrf.mxu0
  %687 = vmatprep.mubr.f32.mxu0 0.0
  %688 = vmatmul.mubr.f32.gmra.mxu0 %v488
  %v689 = vpop.f32.mrf.mxu0
  %v690 = vadd.f32 0.0, %v689
  %v691 = vpop.f32.mrf.mxu0
  %692 = vmatprep.mubr.f32.mxu0 0.0
  %693 = vmatmul.mubr.f32.gmra.mxu0 %v491
  %v694 = vpop.f32.mrf.mxu0
  %v695 = vadd.f32 0.0, %v694
  %v696 = vpop.f32.mrf.mxu0
  %697 = vmatprep.mubr.f32.mxu0 0.0
  %698 = vmatmul.mubr.f32.gmra.mxu0 %v494
  %v699 = vpop.f32.mrf.mxu0
  %v700 = vadd.f32 0.0, %v699
  %v701 = vpop.f32.mrf.mxu0
  %702 = vmatprep.mubr.f32.mxu0 0.0
  %703 = vmatmul.mubr.f32.gmra.mxu0 %v497
  %v704 = vpop.f32.mrf.mxu0
  %v705 = vadd.f32 0.0, %v704
  %v706 = vpop.f32.mrf.mxu0
  %707 = vmatprep.mubr.f32.mxu0 0.0
  %708 = vmatmul.mubr.f32.gmra.mxu0 %v500
  %v709 = vpop.f32.mrf.mxu0
  %v710 = vadd.f32 0.0, %v709
  %v711 = vpop.f32.mrf.mxu0
  %712 = vmatprep.mubr.f32.mxu0 0.0
  %713 = vmatmul.mubr.f32.gmra.mxu0 %v503
  %v714 = vpop.f32.mrf.mxu0
  %v715 = vadd.f32 0.0, %v714
  %v716 = vpop.f32.mrf.mxu0
  %717 = vmatprep.mubr.f32.mxu0 0.0
  %718 = vmatmul.mubr.f32.gmra.mxu0 %v506
  %v719 = vpop.f32.mrf.mxu0
  %v720 = vadd.f32 0.0, %v719
  %v721 = vpop.f32.mrf.mxu0
  %722 = vmatprep.mubr.f32.mxu0 0.0
  %723 = vmatmul.mubr.f32.gmra.mxu0 %v509
  %v724 = vpop.f32.mrf.mxu0
  %v725 = vadd.f32 0.0, %v724
  %v726 = vpop.f32.mrf.mxu0
  %727 = vmatprep.mubr.f32.mxu0 0.0
  %728 = vmatmul.mubr.f32.gmra.mxu0 %v512
  %v729 = vpop.f32.mrf.mxu0
  %v730 = vadd.f32 0.0, %v729
  %v731 = vpop.f32.mrf.mxu0
  %732 = vmatprep.mubr.f32.mxu0 0.0
  %733 = vmatmul.mubr.f32.gmra.mxu0 %v515
  %v734 = vpop.f32.mrf.mxu0
  %v735 = vadd.f32 0.0, %v734
  %v736 = vpop.f32.mrf.mxu0
  %737 = vmatprep.mubr.f32.mxu0 0.0
  %738 = vmatmul.mubr.f32.gmra.mxu0 %v518
  %v739 = vpop.f32.mrf.mxu0
  %v740 = vadd.f32 0.0, %v739
  %v741 = vpop.f32.mrf.mxu0
  %742 = vmatprep.mubr.f32.mxu0 0.0
  %743 = vmatmul.mubr.f32.gmra.mxu0 %v521
  %v744 = vpop.f32.mrf.mxu0
  %v745 = vadd.f32 0.0, %v744
  %v746 = vpop.f32.mrf.mxu0
  %747 = vmatprep.mubr.f32.mxu0 0.0
  %748 = vmatmul.mubr.f32.gmra.mxu0 %v524
  %v749 = vpop.f32.mrf.mxu0
  %v750 = vadd.f32 0.0, %v749
  %v751 = vpop.f32.mrf.mxu0
  %752 = vmatprep.mubr.f32.mxu0 0.0
  %753 = vmatmul.mubr.f32.gmra.mxu0 %v527
  %v754 = vpop.f32.mrf.mxu0
  %v755 = vadd.f32 0.0, %v754
  %v756 = vpop.f32.mrf.mxu0
  %757 = vmatprep.mubr.f32.mxu0 0.0
  %758 = vmatmul.mubr.f32.gmra.mxu0 %v530
  %v759 = vpop.f32.mrf.mxu0
  %v760 = vadd.f32 0.0, %v759
  %v761 = vpop.f32.mrf.mxu0
  %762 = vmatprep.mubr.f32.mxu0 0.0
  %763 = vmatmul.mubr.f32.gmra.mxu0 %v533
  %v764 = vpop.f32.mrf.mxu0
  %v765 = vadd.f32 0.0, %v764
  %v766 = vpop.f32.mrf.mxu0
  %767 = vmatprep.mubr.f32.mxu0 0.0
  %768 = vmatmul.mubr.f32.gmra.mxu0 %v536
  %v769 = vpop.f32.mrf.mxu0
  %v770 = vadd.f32 0.0, %v769
  %v771 = vpop.f32.mrf.mxu0
  %772 = vmatprep.mubr.f32.mxu0 0.0
  %773 = vmatmul.mubr.f32.gmra.mxu0 %v539
  %v774 = vpop.f32.mrf.mxu0
  %v775 = vadd.f32 0.0, %v774
  %v776 = vpop.f32.mrf.mxu0
  %777 = vmatprep.mubr.f32.mxu0 0.0
  %778 = vmatmul.mubr.f32.gmra.mxu0 %v542
  %v779 = vpop.f32.mrf.mxu0
  %v780 = vadd.f32 0.0, %v779
  %v781 = vpop.f32.mrf.mxu0
  %782 = vmatprep.mubr.f32.mxu0 0.0
  %783 = vmatmul.mubr.f32.gmra.mxu0 %v545
  %v784 = vpop.f32.mrf.mxu0
  %v785 = vadd.f32 0.0, %v784
  %v786 = vpop.f32.mrf.mxu0
  %787 = vmatprep.mubr.f32.mxu0 0.0
  %788 = vmatmul.mubr.f32.gmra.mxu0 %v548
  %v789 = vpop.f32.mrf.mxu0
  %v790 = vadd.f32 0.0, %v789
  %v791 = vpop.f32.mrf.mxu0
  %792 = vmatprep.mubr.f32.mxu0 0.0
  %793 = vmatmul.mubr.f32.gmra.mxu0 %v551
  %v794 = vpop.f32.mrf.mxu0
  %v795 = vadd.f32 0.0, %v794
  %v796 = vpop.f32.mrf.mxu0
  %797 = vdwg.mxu0
  %s798 = scalar_lea.vmem %s0, 576
  %v799 = vld [vmem:[%s798] sm:$0xff]
  %v800 = vld [vmem:[%s798 + $0x8] sm:$0xff]
  %v801 = vld [vmem:[%s798 + $0x10] sm:$0xff]
  %v802 = vld [vmem:[%s798 + $0x18] sm:$0xff]
  %v803 = vld [vmem:[%s798 + $0x20] sm:$0xff]
  %v804 = vld [vmem:[%s798 + $0x28] sm:$0xff]
  %v805 = vld [vmem:[%s798 + $0x30] sm:$0xff]
  %v806 = vld [vmem:[%s798 + $0x38] sm:$0xff]
  %v807 = vld [vmem:[%s798 + $0x40] sm:$0xff]
  %v808 = vld [vmem:[%s798 + $0x48] sm:$0xff]
  %v809 = vld [vmem:[%s798 + $0x50] sm:$0xff]
  %v810 = vld [vmem:[%s798 + $0x58] sm:$0xff]
  %v811 = vld [vmem:[%s798 + $0x60] sm:$0xff]
  %v812 = vld [vmem:[%s798 + $0x68] sm:$0xff]
  %v813 = vld [vmem:[%s798 + $0x70] sm:$0xff]
  %v814 = vld [vmem:[%s798 + $0x78] sm:$0xff]
  %v815 = vld [vmem:[%s798 + $0x80] sm:$0xff]
  %v816 = vld [vmem:[%s798 + $0x88] sm:$0xff]
  %v817 = vld [vmem:[%s798 + $0x90] sm:$0xff]
  %v818 = vld [vmem:[%s798 + $0x98] sm:$0xff]
  %v819 = vld [vmem:[%s798 + $0xa0] sm:$0xff]
  %v820 = vld [vmem:[%s798 + $0xa8] sm:$0xff]
  %v821 = vld [vmem:[%s798 + $0xb0] sm:$0xff]
  %v822 = vld [vmem:[%s798 + $0xb8] sm:$0xff]
  %v823 = vld [vmem:[%s798 + $0xc0] sm:$0xff]
  %v824 = vld [vmem:[%s798 + $0xc8] sm:$0xff]
  %v825 = vld [vmem:[%s798 + $0xd0] sm:$0xff]
  %v826 = vld [vmem:[%s798 + $0xd8] sm:$0xff]
  %v827 = vld [vmem:[%s798 + $0xe0] sm:$0xff]
  %v828 = vld [vmem:[%s798 + $0xe8] sm:$0xff]
  %v829 = vld [vmem:[%s798 + $0xf0] sm:$0xff]
  %v830 = vld [vmem:[%s798 + $0xf8] sm:$0xff]
  %v831 = vld [vmem:[%s798 + $0x100] sm:$0xff]
  %v832 = vld [vmem:[%s798 + $0x108] sm:$0xff]
  %v833 = vld [vmem:[%s798 + $0x110] sm:$0xff]
  %v834 = vld [vmem:[%s798 + $0x118] sm:$0xff]
  %v836 = vsel %vm54, %v799, 0
  %v839 = vsel %vm54, %v800, 0
  %v842 = vsel %vm54, %v801, 0
  %v845 = vsel %vm54, %v802, 0
  %v848 = vsel %vm54, %v803, 0
  %v851 = vsel %vm54, %v804, 0
  %v854 = vsel %vm54, %v805, 0
  %v857 = vsel %vm54, %v806, 0
  %v860 = vsel %vm54, %v807, 0
  %v863 = vsel %vm54, %v808, 0
  %v866 = vsel %vm54, %v809, 0
  %v869 = vsel %vm54, %v810, 0
  %v872 = vsel %vm54, %v811, 0
  %v875 = vsel %vm54, %v812, 0
  %v878 = vsel %vm54, %v813, 0
  %v881 = vsel %vm54, %v814, 0
  %v884 = vsel %vm54, %v815, 0
  %v887 = vsel %vm54, %v816, 0
  %v890 = vsel %vm54, %v817, 0
  %v893 = vsel %vm54, %v818, 0
  %v896 = vsel %vm54, %v819, 0
  %v899 = vsel %vm54, %v820, 0
  %v902 = vsel %vm54, %v821, 0
  %v905 = vsel %vm54, %v822, 0
  %v908 = vsel %vm54, %v823, 0
  %v911 = vsel %vm54, %v824, 0
  %v914 = vsel %vm54, %v825, 0
  %v917 = vsel %vm54, %v826, 0
  %v920 = vsel %vm54, %v827, 0
  %v923 = vsel %vm54, %v828, 0
  %v926 = vsel %vm54, %v829, 0
  %v929 = vsel %vm54, %v830, 0
  %v932 = vsel %vm54, %v831, 0
  %v935 = vsel %vm54, %v832, 0
  %v938 = vsel %vm54, %v833, 0
  %v941 = vsel %vm54, %v834, 0
  %943 = vmatprep.subr.mxu0 0.0
  %944 = vmatpush1.msra.mxu0 0.0
  %945 = vmatprep.subr.mxu0 0.0
  %946 = vmatpush1.msra.mxu0 0.0
  %947 = vmatprep.subr.mxu0 0.0
  %948 = vmatpush1.msra.mxu0 0.0
  %949 = vmatprep.subr.mxu0 0.0
  %950 = vmatpush1.msra.mxu0 0.0
  %951 = vmatprep.subr.mxu0 0.0
  %952 = vmatpush1.msra.mxu0 0.0
  %953 = vmatprep.subr.mxu0 0.0
  %954 = vmatpush1.msra.mxu0 0.0
  %955 = vmatprep.subr.mxu0 0.0
  %956 = vmatpush1.msra.mxu0 0.0
  %957 = vmatprep.subr.mxu0 0.0
  %958 = vmatpush1.msra.mxu0 0.0
  %959 = vmatprep.subr.mxu0 0.0
  %960 = vmatpush1.msra.mxu0 0.0
  %961 = vmatprep.subr.mxu0 0.0
  %962 = vmatpush1.msra.mxu0 0.0
  %963 = vmatprep.subr.mxu0 0.0
  %964 = vmatpush1.msra.mxu0 0.0
  %965 = vmatprep.subr.mxu0 0.0
  %966 = vmatpush1.msra.mxu0 0.0
  %967 = vmatprep.subr.mxu0 0.0
  %968 = vmatpush1.msra.mxu0 %v17
  %969 = vmatprep.subr.mxu0 0.0
  %970 = vmatpush1.msra.mxu0 %v16
  %971 = vmatprep.subr.mxu0 0.0
  %972 = vmatpush1.msra.mxu0 %v15
  %973 = vmatprep.subr.mxu0 0.0
  %974 = vmatpush1.msra.mxu0 %v14
  %975 = vmatprep.subr.mxu0 0.0
  %976 = vmatpush2.msra.mxu0 0.0
  %977 = vmatprep.subr.mxu0 0.0
  %978 = vmatpush2.msra.mxu0 0.0
  %979 = vmatprep.subr.mxu0 0.0
  %980 = vmatpush2.msra.mxu0 0.0
  %981 = vmatprep.subr.mxu0 0.0
  %982 = vmatpush2.msra.mxu0 0.0
  %983 = vmatprep.subr.mxu0 0.0
  %984 = vmatpush2.msra.mxu0 0.0
  %985 = vmatprep.subr.mxu0 0.0
  %986 = vmatpush2.msra.mxu0 0.0
  %987 = vmatprep.subr.mxu0 0.0
  %988 = vmatpush2.msra.mxu0 0.0
  %989 = vmatprep.subr.mxu0 0.0
  %990 = vmatpush2.msra.mxu0 0.0
  %991 = vmatprep.subr.mxu0 0.0
  %992 = vmatpush2.msra.mxu0 0.0
  %993 = vmatprep.subr.mxu0 0.0
  %994 = vmatpush2.msra.mxu0 0.0
  %995 = vmatprep.subr.mxu0 0.0
  %996 = vmatpush2.msra.mxu0 0.0
  %997 = vmatprep.subr.mxu0 0.0
  %998 = vmatpush2.msra.mxu0 0.0
  %999 = vmatprep.subr.mxu0 0.0
  %1000 = vmatpush2.msra.mxu0 0.0
  %1001 = vmatprep.subr.mxu0 0.0
  %1002 = vmatpush2.msra.mxu0 0.0
  %1003 = vmatprep.subr.mxu0 0.0
  %1004 = vmatpush2.msra.mxu0 0.0
  %1005 = vmatprep.subr.mxu0 0.0
  %1006 = vmatpush2.msra.mxu0 0.0
  %1007 = vmatprep.mubr.f32.mxu0 0.0
  %1008 = vmatmul.mubr.f32.gmra.mxu0 %v836
  %v1009 = vpop.f32.mrf.mxu0
  %v1010 = vadd.f32 0.0, %v1009
  %v1011 = vpop.f32.mrf.mxu0
  %1012 = vmatprep.mubr.f32.mxu0 0.0
  %1013 = vmatmul.mubr.f32.gmra.mxu0 %v839
  %v1014 = vpop.f32.mrf.mxu0
  %v1015 = vadd.f32 0.0, %v1014
  %v1016 = vpop.f32.mrf.mxu0
  %1017 = vmatprep.mubr.f32.mxu0 0.0
  %1018 = vmatmul.mubr.f32.gmra.mxu0 %v842
  %v1019 = vpop.f32.mrf.mxu0
  %v1020 = vadd.f32 0.0, %v1019
  %v1021 = vpop.f32.mrf.mxu0
  %1022 = vmatprep.mubr.f32.mxu0 0.0
  %1023 = vmatmul.mubr.f32.gmra.mxu0 %v845
  %v1024 = vpop.f32.mrf.mxu0
  %v1025 = vadd.f32 0.0, %v1024
  %v1026 = vpop.f32.mrf.mxu0
  %1027 = vmatprep.mubr.f32.mxu0 0.0
  %1028 = vmatmul.mubr.f32.gmra.mxu0 %v848
  %v1029 = vpop.f32.mrf.mxu0
  %v1030 = vadd.f32 0.0, %v1029
  %v1031 = vpop.f32.mrf.mxu0
  %1032 = vmatprep.mubr.f32.mxu0 0.0
  %1033 = vmatmul.mubr.f32.gmra.mxu0 %v851
  %v1034 = vpop.f32.mrf.mxu0
  %v1035 = vadd.f32 0.0, %v1034
  %v1036 = vpop.f32.mrf.mxu0
  %1037 = vmatprep.mubr.f32.mxu0 0.0
  %1038 = vmatmul.mubr.f32.gmra.mxu0 %v854
  %v1039 = vpop.f32.mrf.mxu0
  %v1040 = vadd.f32 0.0, %v1039
  %v1041 = vpop.f32.mrf.mxu0
  %1042 = vmatprep.mubr.f32.mxu0 0.0
  %1043 = vmatmul.mubr.f32.gmra.mxu0 %v857
  %v1044 = vpop.f32.mrf.mxu0
  %v1045 = vadd.f32 0.0, %v1044
  %v1046 = vpop.f32.mrf.mxu0
  %1047 = vmatprep.mubr.f32.mxu0 0.0
  %1048 = vmatmul.mubr.f32.gmra.mxu0 %v860
  %v1049 = vpop.f32.mrf.mxu0
  %v1050 = vadd.f32 0.0, %v1049
  %v1051 = vpop.f32.mrf.mxu0
  %1052 = vmatprep.mubr.f32.mxu0 0.0
  %1053 = vmatmul.mubr.f32.gmra.mxu0 %v863
  %v1054 = vpop.f32.mrf.mxu0
  %v1055 = vadd.f32 0.0, %v1054
  %v1056 = vpop.f32.mrf.mxu0
  %1057 = vmatprep.mubr.f32.mxu0 0.0
  %1058 = vmatmul.mubr.f32.gmra.mxu0 %v866
  %v1059 = vpop.f32.mrf.mxu0
  %v1060 = vadd.f32 0.0, %v1059
  %v1061 = vpop.f32.mrf.mxu0
  %1062 = vmatprep.mubr.f32.mxu0 0.0
  %1063 = vmatmul.mubr.f32.gmra.mxu0 %v869
  %v1064 = vpop.f32.mrf.mxu0
  %v1065 = vadd.f32 0.0, %v1064
  %v1066 = vpop.f32.mrf.mxu0
  %1067 = vmatprep.mubr.f32.mxu0 0.0
  %1068 = vmatmul.mubr.f32.gmra.mxu0 %v872
  %v1069 = vpop.f32.mrf.mxu0
  %v1070 = vadd.f32 0.0, %v1069
  %v1071 = vpop.f32.mrf.mxu0
  %1072 = vmatprep.mubr.f32.mxu0 0.0
  %1073 = vmatmul.mubr.f32.gmra.mxu0 %v875
  %v1074 = vpop.f32.mrf.mxu0
  %v1075 = vadd.f32 0.0, %v1074
  %v1076 = vpop.f32.mrf.mxu0
  %1077 = vmatprep.mubr.f32.mxu0 0.0
  %1078 = vmatmul.mubr.f32.gmra.mxu0 %v878
  %v1079 = vpop.f32.mrf.mxu0
  %v1080 = vadd.f32 0.0, %v1079
  %v1081 = vpop.f32.mrf.mxu0
  %1082 = vmatprep.mubr.f32.mxu0 0.0
  %1083 = vmatmul.mubr.f32.gmra.mxu0 %v881
  %v1084 = vpop.f32.mrf.mxu0
  %v1085 = vadd.f32 0.0, %v1084
  %v1086 = vpop.f32.mrf.mxu0
  %1087 = vmatprep.mubr.f32.mxu0 0.0
  %1088 = vmatmul.mubr.f32.gmra.mxu0 %v884
  %v1089 = vpop.f32.mrf.mxu0
  %v1090 = vadd.f32 0.0, %v1089
  %v1091 = vpop.f32.mrf.mxu0
  %1092 = vmatprep.mubr.f32.mxu0 0.0
  %1093 = vmatmul.mubr.f32.gmra.mxu0 %v887
  %v1094 = vpop.f32.mrf.mxu0
  %v1095 = vadd.f32 0.0, %v1094
  %v1096 = vpop.f32.mrf.mxu0
  %1097 = vmatprep.mubr.f32.mxu0 0.0
  %1098 = vmatmul.mubr.f32.gmra.mxu0 %v890
  %v1099 = vpop.f32.mrf.mxu0
  %v1100 = vadd.f32 0.0, %v1099
  %v1101 = vpop.f32.mrf.mxu0
  %1102 = vmatprep.mubr.f32.mxu0 0.0
  %1103 = vmatmul.mubr.f32.gmra.mxu0 %v893
  %v1104 = vpop.f32.mrf.mxu0
  %v1105 = vadd.f32 0.0, %v1104
  %v1106 = vpop.f32.mrf.mxu0
  %1107 = vmatprep.mubr.f32.mxu0 0.0
  %1108 = vmatmul.mubr.f32.gmra.mxu0 %v896
  %v1109 = vpop.f32.mrf.mxu0
  %v1110 = vadd.f32 0.0, %v1109
  %v1111 = vpop.f32.mrf.mxu0
  %1112 = vmatprep.mubr.f32.mxu0 0.0
  %1113 = vmatmul.mubr.f32.gmra.mxu0 %v899
  %v1114 = vpop.f32.mrf.mxu0
  %v1115 = vadd.f32 0.0, %v1114
  %v1116 = vpop.f32.mrf.mxu0
  %1117 = vmatprep.mubr.f32.mxu0 0.0
  %1118 = vmatmul.mubr.f32.gmra.mxu0 %v902
  %v1119 = vpop.f32.mrf.mxu0
  %v1120 = vadd.f32 0.0, %v1119
  %v1121 = vpop.f32.mrf.mxu0
  %1122 = vmatprep.mubr.f32.mxu0 0.0
  %1123 = vmatmul.mubr.f32.gmra.mxu0 %v905
  %v1124 = vpop.f32.mrf.mxu0
  %v1125 = vadd.f32 0.0, %v1124
  %v1126 = vpop.f32.mrf.mxu0
  %1127 = vmatprep.mubr.f32.mxu0 0.0
  %1128 = vmatmul.mubr.f32.gmra.mxu0 %v908
  %v1129 = vpop.f32.mrf.mxu0
  %v1130 = vadd.f32 0.0, %v1129
  %v1131 = vpop.f32.mrf.mxu0
  %1132 = vmatprep.mubr.f32.mxu0 0.0
  %1133 = vmatmul.mubr.f32.gmra.mxu0 %v911
  %v1134 = vpop.f32.mrf.mxu0
  %v1135 = vadd.f32 0.0, %v1134
  %v1136 = vpop.f32.mrf.mxu0
  %1137 = vmatprep.mubr.f32.mxu0 0.0
  %1138 = vmatmul.mubr.f32.gmra.mxu0 %v914
  %v1139 = vpop.f32.mrf.mxu0
  %v1140 = vadd.f32 0.0, %v1139
  %v1141 = vpop.f32.mrf.mxu0
  %1142 = vmatprep.mubr.f32.mxu0 0.0
  %1143 = vmatmul.mubr.f32.gmra.mxu0 %v917
  %v1144 = vpop.f32.mrf.mxu0
  %v1145 = vadd.f32 0.0, %v1144
  %v1146 = vpop.f32.mrf.mxu0
  %1147 = vmatprep.mubr.f32.mxu0 0.0
  %1148 = vmatmul.mubr.f32.gmra.mxu0 %v920
  %v1149 = vpop.f32.mrf.mxu0
  %v1150 = vadd.f32 0.0, %v1149
  %v1151 = vpop.f32.mrf.mxu0
  %1152 = vmatprep.mubr.f32.mxu0 0.0
  %1153 = vmatmul.mubr.f32.gmra.mxu0 %v923
  %v1154 = vpop.f32.mrf.mxu0
  %v1155 = vadd.f32 0.0, %v1154
  %v1156 = vpop.f32.mrf.mxu0
  %1157 = vmatprep.mubr.f32.mxu0 0.0
  %1158 = vmatmul.mubr.f32.gmra.mxu0 %v926
  %v1159 = vpop.f32.mrf.mxu0
  %v1160 = vadd.f32 0.0, %v1159
  %v1161 = vpop.f32.mrf.mxu0
  %1162 = vmatprep.mubr.f32.mxu0 0.0
  %1163 = vmatmul.mubr.f32.gmra.mxu0 %v929
  %v1164 = vpop.f32.mrf.mxu0
  %v1165 = vadd.f32 0.0, %v1164
  %v1166 = vpop.f32.mrf.mxu0
  %1167 = vmatprep.mubr.f32.mxu0 0.0
  %1168 = vmatmul.mubr.f32.gmra.mxu0 %v932
  %v1169 = vpop.f32.mrf.mxu0
  %v1170 = vadd.f32 0.0, %v1169
  %v1171 = vpop.f32.mrf.mxu0
  %1172 = vmatprep.mubr.f32.mxu0 0.0
  %1173 = vmatmul.mubr.f32.gmra.mxu0 %v935
  %v1174 = vpop.f32.mrf.mxu0
  %v1175 = vadd.f32 0.0, %v1174
  %v1176 = vpop.f32.mrf.mxu0
  %1177 = vmatprep.mubr.f32.mxu0 0.0
  %1178 = vmatmul.mubr.f32.gmra.mxu0 %v938
  %v1179 = vpop.f32.mrf.mxu0
  %v1180 = vadd.f32 0.0, %v1179
  %v1181 = vpop.f32.mrf.mxu0
  %1182 = vmatprep.mubr.f32.mxu0 0.0
  %1183 = vmatmul.mubr.f32.gmra.mxu0 %v941
  %v1184 = vpop.f32.mrf.mxu0
  %v1185 = vadd.f32 0.0, %v1184
  %v1186 = vpop.f32.mrf.mxu0
  %1187 = vdwg.mxu0
  %s1188 = scalar_lea.vmem %s0, 864
  %v1189 = vld [vmem:[%s1188] sm:$0xff]
  %v1190 = vld [vmem:[%s1188 + $0x8] sm:$0xff]
  %v1191 = vld [vmem:[%s1188 + $0x10] sm:$0xff]
  %v1192 = vld [vmem:[%s1188 + $0x18] sm:$0xff]
  %v1193 = vld [vmem:[%s1188 + $0x20] sm:$0xff]
  %v1194 = vld [vmem:[%s1188 + $0x28] sm:$0xff]
  %v1195 = vld [vmem:[%s1188 + $0x30] sm:$0xff]
  %v1196 = vld [vmem:[%s1188 + $0x38] sm:$0xff]
  %v1197 = vld [vmem:[%s1188 + $0x40] sm:$0xff]
  %v1198 = vld [vmem:[%s1188 + $0x48] sm:$0xff]
  %v1199 = vld [vmem:[%s1188 + $0x50] sm:$0xff]
  %v1200 = vld [vmem:[%s1188 + $0x58] sm:$0xff]
  %v1201 = vld [vmem:[%s1188 + $0x60] sm:$0xff]
  %v1202 = vld [vmem:[%s1188 + $0x68] sm:$0xff]
  %v1203 = vld [vmem:[%s1188 + $0x70] sm:$0xff]
  %v1204 = vld [vmem:[%s1188 + $0x78] sm:$0xff]
  %v1205 = vld [vmem:[%s1188 + $0x80] sm:$0xff]
  %v1206 = vld [vmem:[%s1188 + $0x88] sm:$0xff]
  %v1207 = vld [vmem:[%s1188 + $0x90] sm:$0xff]
  %v1208 = vld [vmem:[%s1188 + $0x98] sm:$0xff]
  %v1209 = vld [vmem:[%s1188 + $0xa0] sm:$0xff]
  %v1210 = vld [vmem:[%s1188 + $0xa8] sm:$0xff]
  %v1211 = vld [vmem:[%s1188 + $0xb0] sm:$0xff]
  %v1212 = vld [vmem:[%s1188 + $0xb8] sm:$0xff]
  %v1213 = vld [vmem:[%s1188 + $0xc0] sm:$0xff]
  %v1214 = vld [vmem:[%s1188 + $0xc8] sm:$0xff]
  %v1215 = vld [vmem:[%s1188 + $0xd0] sm:$0xff]
  %v1216 = vld [vmem:[%s1188 + $0xd8] sm:$0xff]
  %v1217 = vld [vmem:[%s1188 + $0xe0] sm:$0xff]
  %v1218 = vld [vmem:[%s1188 + $0xe8] sm:$0xff]
  %v1219 = vld [vmem:[%s1188 + $0xf0] sm:$0xff]
  %v1220 = vld [vmem:[%s1188 + $0xf8] sm:$0xff]
  %v1221 = vld [vmem:[%s1188 + $0x100] sm:$0xff]
  %v1222 = vld [vmem:[%s1188 + $0x108] sm:$0xff]
  %v1223 = vld [vmem:[%s1188 + $0x110] sm:$0xff]
  %v1224 = vld [vmem:[%s1188 + $0x118] sm:$0xff]
  %v1226 = vsel %vm54, %v1189, 0
  %v1229 = vsel %vm54, %v1190, 0
  %v1232 = vsel %vm54, %v1191, 0
  %v1235 = vsel %vm54, %v1192, 0
  %v1238 = vsel %vm54, %v1193, 0
  %v1241 = vsel %vm54, %v1194, 0
  %v1244 = vsel %vm54, %v1195, 0
  %v1247 = vsel %vm54, %v1196, 0
  %v1250 = vsel %vm54, %v1197, 0
  %v1253 = vsel %vm54, %v1198, 0
  %v1256 = vsel %vm54, %v1199, 0
  %v1259 = vsel %vm54, %v1200, 0
  %v1262 = vsel %vm54, %v1201, 0
  %v1265 = vsel %vm54, %v1202, 0
  %v1268 = vsel %vm54, %v1203, 0
  %v1271 = vsel %vm54, %v1204, 0
  %v1274 = vsel %vm54, %v1205, 0
  %v1277 = vsel %vm54, %v1206, 0
  %v1280 = vsel %vm54, %v1207, 0
  %v1283 = vsel %vm54, %v1208, 0
  %v1286 = vsel %vm54, %v1209, 0
  %v1289 = vsel %vm54, %v1210, 0
  %v1292 = vsel %vm54, %v1211, 0
  %v1295 = vsel %vm54, %v1212, 0
  %v1298 = vsel %vm54, %v1213, 0
  %v1301 = vsel %vm54, %v1214, 0
  %v1304 = vsel %vm54, %v1215, 0
  %v1307 = vsel %vm54, %v1216, 0
  %v1310 = vsel %vm54, %v1217, 0
  %v1313 = vsel %vm54, %v1218, 0
  %v1316 = vsel %vm54, %v1219, 0
  %v1319 = vsel %vm54, %v1220, 0
  %v1322 = vsel %vm54, %v1221, 0
  %v1325 = vsel %vm54, %v1222, 0
  %v1328 = vsel %vm54, %v1223, 0
  %v1331 = vsel %vm54, %v1224, 0
  %1333 = vmatprep.subr.mxu0 0.0
  %1334 = vmatpush1.msra.mxu0 0.0
  %1335 = vmatprep.subr.mxu0 0.0
  %1336 = vmatpush1.msra.mxu0 0.0
  %1337 = vmatprep.subr.mxu0 0.0
  %1338 = vmatpush1.msra.mxu0 0.0
  %1339 = vmatprep.subr.mxu0 0.0
  %1340 = vmatpush1.msra.mxu0 0.0
  %1341 = vmatprep.subr.mxu0 0.0
  %1342 = vmatpush1.msra.mxu0 0.0
  %1343 = vmatprep.subr.mxu0 0.0
  %1344 = vmatpush1.msra.mxu0 0.0
  %1345 = vmatprep.subr.mxu0 0.0
  %1346 = vmatpush1.msra.mxu0 0.0
  %1347 = vmatprep.subr.mxu0 0.0
  %1348 = vmatpush1.msra.mxu0 0.0
  %1349 = vmatprep.subr.mxu0 0.0
  %1350 = vmatpush1.msra.mxu0 0.0
  %1351 = vmatprep.subr.mxu0 0.0
  %1352 = vmatpush1.msra.mxu0 0.0
  %1353 = vmatprep.subr.mxu0 0.0
  %1354 = vmatpush1.msra.mxu0 0.0
  %1355 = vmatprep.subr.mxu0 0.0
  %1356 = vmatpush1.msra.mxu0 0.0
  %1357 = vmatprep.subr.mxu0 0.0
  %1358 = vmatpush1.msra.mxu0 %v17
  %1359 = vmatprep.subr.mxu0 0.0
  %1360 = vmatpush1.msra.mxu0 %v16
  %1361 = vmatprep.subr.mxu0 0.0
  %1362 = vmatpush1.msra.mxu0 %v15
  %1363 = vmatprep.subr.mxu0 0.0
  %1364 = vmatpush1.msra.mxu0 %v14
  %1365 = vmatprep.subr.mxu0 0.0
  %1366 = vmatpush2.msra.mxu0 0.0
  %1367 = vmatprep.subr.mxu0 0.0
  %1368 = vmatpush2.msra.mxu0 0.0
  %1369 = vmatprep.subr.mxu0 0.0
  %1370 = vmatpush2.msra.mxu0 0.0
  %1371 = vmatprep.subr.mxu0 0.0
  %1372 = vmatpush2.msra.mxu0 0.0
  %1373 = vmatprep.subr.mxu0 0.0
  %1374 = vmatpush2.msra.mxu0 0.0
  %1375 = vmatprep.subr.mxu0 0.0
  %1376 = vmatpush2.msra.mxu0 0.0
  %1377 = vmatprep.subr.mxu0 0.0
  %1378 = vmatpush2.msra.mxu0 0.0
  %1379 = vmatprep.subr.mxu0 0.0
  %1380 = vmatpush2.msra.mxu0 0.0
  %1381 = vmatprep.subr.mxu0 0.0
  %1382 = vmatpush2.msra.mxu0 0.0
  %1383 = vmatprep.subr.mxu0 0.0
  %1384 = vmatpush2.msra.mxu0 0.0
  %1385 = vmatprep.subr.mxu0 0.0
  %1386 = vmatpush2.msra.mxu0 0.0
  %1387 = vmatprep.subr.mxu0 0.0
  %1388 = vmatpush2.msra.mxu0 0.0
  %1389 = vmatprep.subr.mxu0 0.0
  %1390 = vmatpush2.msra.mxu0 0.0
  %1391 = vmatprep.subr.mxu0 0.0
  %1392 = vmatpush2.msra.mxu0 0.0
  %1393 = vmatprep.subr.mxu0 0.0
  %1394 = vmatpush2.msra.mxu0 0.0
  %1395 = vmatprep.subr.mxu0 0.0
  %1396 = vmatpush2.msra.mxu0 0.0
  %1397 = vmatprep.mubr.f32.mxu0 0.0
  %1398 = vmatmul.mubr.f32.gmra.mxu0 %v1226
  %v1399 = vpop.f32.mrf.mxu0
  %v1400 = vadd.f32 0.0, %v1399
  %v1401 = vpop.f32.mrf.mxu0
  %1402 = vmatprep.mubr.f32.mxu0 0.0
  %1403 = vmatmul.mubr.f32.gmra.mxu0 %v1229
  %v1404 = vpop.f32.mrf.mxu0
  %v1405 = vadd.f32 0.0, %v1404
  %v1406 = vpop.f32.mrf.mxu0
  %1407 = vmatprep.mubr.f32.mxu0 0.0
  %1408 = vmatmul.mubr.f32.gmra.mxu0 %v1232
  %v1409 = vpop.f32.mrf.mxu0
  %v1410 = vadd.f32 0.0, %v1409
  %v1411 = vpop.f32.mrf.mxu0
  %1412 = vmatprep.mubr.f32.mxu0 0.0
  %1413 = vmatmul.mubr.f32.gmra.mxu0 %v1235
  %v1414 = vpop.f32.mrf.mxu0
  %v1415 = vadd.f32 0.0, %v1414
  %v1416 = vpop.f32.mrf.mxu0
  %1417 = vmatprep.mubr.f32.mxu0 0.0
  %1418 = vmatmul.mubr.f32.gmra.mxu0 %v1238
  %v1419 = vpop.f32.mrf.mxu0
  %v1420 = vadd.f32 0.0, %v1419
  %v1421 = vpop.f32.mrf.mxu0
  %1422 = vmatprep.mubr.f32.mxu0 0.0
  %1423 = vmatmul.mubr.f32.gmra.mxu0 %v1241
  %v1424 = vpop.f32.mrf.mxu0
  %v1425 = vadd.f32 0.0, %v1424
  %v1426 = vpop.f32.mrf.mxu0
  %1427 = vmatprep.mubr.f32.mxu0 0.0
  %1428 = vmatmul.mubr.f32.gmra.mxu0 %v1244
  %v1429 = vpop.f32.mrf.mxu0
  %v1430 = vadd.f32 0.0, %v1429
  %v1431 = vpop.f32.mrf.mxu0
  %1432 = vmatprep.mubr.f32.mxu0 0.0
  %1433 = vmatmul.mubr.f32.gmra.mxu0 %v1247
  %v1434 = vpop.f32.mrf.mxu0
  %v1435 = vadd.f32 0.0, %v1434
  %v1436 = vpop.f32.mrf.mxu0
  %1437 = vmatprep.mubr.f32.mxu0 0.0
  %1438 = vmatmul.mubr.f32.gmra.mxu0 %v1250
  %v1439 = vpop.f32.mrf.mxu0
  %v1440 = vadd.f32 0.0, %v1439
  %v1441 = vpop.f32.mrf.mxu0
  %1442 = vmatprep.mubr.f32.mxu0 0.0
  %1443 = vmatmul.mubr.f32.gmra.mxu0 %v1253
  %v1444 = vpop.f32.mrf.mxu0
  %v1445 = vadd.f32 0.0, %v1444
  %v1446 = vpop.f32.mrf.mxu0
  %1447 = vmatprep.mubr.f32.mxu0 0.0
  %1448 = vmatmul.mubr.f32.gmra.mxu0 %v1256
  %v1449 = vpop.f32.mrf.mxu0
  %v1450 = vadd.f32 0.0, %v1449
  %v1451 = vpop.f32.mrf.mxu0
  %1452 = vmatprep.mubr.f32.mxu0 0.0
  %1453 = vmatmul.mubr.f32.gmra.mxu0 %v1259
  %v1454 = vpop.f32.mrf.mxu0
  %v1455 = vadd.f32 0.0, %v1454
  %v1456 = vpop.f32.mrf.mxu0
  %1457 = vmatprep.mubr.f32.mxu0 0.0
  %1458 = vmatmul.mubr.f32.gmra.mxu0 %v1262
  %v1459 = vpop.f32.mrf.mxu0
  %v1460 = vadd.f32 0.0, %v1459
  %v1461 = vpop.f32.mrf.mxu0
  %1462 = vmatprep.mubr.f32.mxu0 0.0
  %1463 = vmatmul.mubr.f32.gmra.mxu0 %v1265
  %v1464 = vpop.f32.mrf.mxu0
  %v1465 = vadd.f32 0.0, %v1464
  %v1466 = vpop.f32.mrf.mxu0
  %1467 = vmatprep.mubr.f32.mxu0 0.0
  %1468 = vmatmul.mubr.f32.gmra.mxu0 %v1268
  %v1469 = vpop.f32.mrf.mxu0
  %v1470 = vadd.f32 0.0, %v1469
  %v1471 = vpop.f32.mrf.mxu0
  %1472 = vmatprep.mubr.f32.mxu0 0.0
  %1473 = vmatmul.mubr.f32.gmra.mxu0 %v1271
  %v1474 = vpop.f32.mrf.mxu0
  %v1475 = vadd.f32 0.0, %v1474
  %v1476 = vpop.f32.mrf.mxu0
  %1477 = vmatprep.mubr.f32.mxu0 0.0
  %1478 = vmatmul.mubr.f32.gmra.mxu0 %v1274
  %v1479 = vpop.f32.mrf.mxu0
  %v1480 = vadd.f32 0.0, %v1479
  %v1481 = vpop.f32.mrf.mxu0
  %1482 = vmatprep.mubr.f32.mxu0 0.0
  %1483 = vmatmul.mubr.f32.gmra.mxu0 %v1277
  %v1484 = vpop.f32.mrf.mxu0
  %v1485 = vadd.f32 0.0, %v1484
  %v1486 = vpop.f32.mrf.mxu0
  %1487 = vmatprep.mubr.f32.mxu0 0.0
  %1488 = vmatmul.mubr.f32.gmra.mxu0 %v1280
  %v1489 = vpop.f32.mrf.mxu0
  %v1490 = vadd.f32 0.0, %v1489
  %v1491 = vpop.f32.mrf.mxu0
  %1492 = vmatprep.mubr.f32.mxu0 0.0
  %1493 = vmatmul.mubr.f32.gmra.mxu0 %v1283
  %v1494 = vpop.f32.mrf.mxu0
  %v1495 = vadd.f32 0.0, %v1494
  %v1496 = vpop.f32.mrf.mxu0
  %1497 = vmatprep.mubr.f32.mxu0 0.0
  %1498 = vmatmul.mubr.f32.gmra.mxu0 %v1286
  %v1499 = vpop.f32.mrf.mxu0
  %v1500 = vadd.f32 0.0, %v1499
  %v1501 = vpop.f32.mrf.mxu0
  %1502 = vmatprep.mubr.f32.mxu0 0.0
  %1503 = vmatmul.mubr.f32.gmra.mxu0 %v1289
  %v1504 = vpop.f32.mrf.mxu0
  %v1505 = vadd.f32 0.0, %v1504
  %v1506 = vpop.f32.mrf.mxu0
  %1507 = vmatprep.mubr.f32.mxu0 0.0
  %1508 = vmatmul.mubr.f32.gmra.mxu0 %v1292
  %v1509 = vpop.f32.mrf.mxu0
  %v1510 = vadd.f32 0.0, %v1509
  %v1511 = vpop.f32.mrf.mxu0
  %1512 = vmatprep.mubr.f32.mxu0 0.0
  %1513 = vmatmul.mubr.f32.gmra.mxu0 %v1295
  %v1514 = vpop.f32.mrf.mxu0
  %v1515 = vadd.f32 0.0, %v1514
  %v1516 = vpop.f32.mrf.mxu0
  %1517 = vmatprep.mubr.f32.mxu0 0.0
  %1518 = vmatmul.mubr.f32.gmra.mxu0 %v1298
  %v1519 = vpop.f32.mrf.mxu0
  %v1520 = vadd.f32 0.0, %v1519
  %v1521 = vpop.f32.mrf.mxu0
  %1522 = vmatprep.mubr.f32.mxu0 0.0
  %1523 = vmatmul.mubr.f32.gmra.mxu0 %v1301
  %v1524 = vpop.f32.mrf.mxu0
  %v1525 = vadd.f32 0.0, %v1524
  %v1526 = vpop.f32.mrf.mxu0
  %1527 = vmatprep.mubr.f32.mxu0 0.0
  %1528 = vmatmul.mubr.f32.gmra.mxu0 %v1304
  %v1529 = vpop.f32.mrf.mxu0
  %v1530 = vadd.f32 0.0, %v1529
  %v1531 = vpop.f32.mrf.mxu0
  %1532 = vmatprep.mubr.f32.mxu0 0.0
  %1533 = vmatmul.mubr.f32.gmra.mxu0 %v1307
  %v1534 = vpop.f32.mrf.mxu0
  %v1535 = vadd.f32 0.0, %v1534
  %v1536 = vpop.f32.mrf.mxu0
  %1537 = vmatprep.mubr.f32.mxu0 0.0
  %1538 = vmatmul.mubr.f32.gmra.mxu0 %v1310
  %v1539 = vpop.f32.mrf.mxu0
  %v1540 = vadd.f32 0.0, %v1539
  %v1541 = vpop.f32.mrf.mxu0
  %1542 = vmatprep.mubr.f32.mxu0 0.0
  %1543 = vmatmul.mubr.f32.gmra.mxu0 %v1313
  %v1544 = vpop.f32.mrf.mxu0
  %v1545 = vadd.f32 0.0, %v1544
  %v1546 = vpop.f32.mrf.mxu0
  %1547 = vmatprep.mubr.f32.mxu0 0.0
  %1548 = vmatmul.mubr.f32.gmra.mxu0 %v1316
  %v1549 = vpop.f32.mrf.mxu0
  %v1550 = vadd.f32 0.0, %v1549
  %v1551 = vpop.f32.mrf.mxu0
  %1552 = vmatprep.mubr.f32.mxu0 0.0
  %1553 = vmatmul.mubr.f32.gmra.mxu0 %v1319
  %v1554 = vpop.f32.mrf.mxu0
  %v1555 = vadd.f32 0.0, %v1554
  %v1556 = vpop.f32.mrf.mxu0
  %1557 = vmatprep.mubr.f32.mxu0 0.0
  %1558 = vmatmul.mubr.f32.gmra.mxu0 %v1322
  %v1559 = vpop.f32.mrf.mxu0
  %v1560 = vadd.f32 0.0, %v1559
  %v1561 = vpop.f32.mrf.mxu0
  %1562 = vmatprep.mubr.f32.mxu0 0.0
  %1563 = vmatmul.mubr.f32.gmra.mxu0 %v1325
  %v1564 = vpop.f32.mrf.mxu0
  %v1565 = vadd.f32 0.0, %v1564
  %v1566 = vpop.f32.mrf.mxu0
  %1567 = vmatprep.mubr.f32.mxu0 0.0
  %1568 = vmatmul.mubr.f32.gmra.mxu0 %v1328
  %v1569 = vpop.f32.mrf.mxu0
  %v1570 = vadd.f32 0.0, %v1569
  %v1571 = vpop.f32.mrf.mxu0
  %1572 = vmatprep.mubr.f32.mxu0 0.0
  %1573 = vmatmul.mubr.f32.gmra.mxu0 %v1331
  %v1574 = vpop.f32.mrf.mxu0
  %v1575 = vadd.f32 0.0, %v1574
  %v1576 = vpop.f32.mrf.mxu0
  %1577 = vdwg.mxu0
  %v1578 = vmax.f32 %v230, %v620
  %v1579 = vmax.f32 %v235, %v625
  %v1580 = vmax.f32 %v240, %v630
  %v1581 = vmax.f32 %v245, %v635
  %v1582 = vmax.f32 %v250, %v640
  %v1583 = vmax.f32 %v255, %v645
  %v1584 = vmax.f32 %v260, %v650
  %v1585 = vmax.f32 %v265, %v655
  %v1586 = vmax.f32 %v270, %v660
  %v1587 = vmax.f32 %v275, %v665
  %v1588 = vmax.f32 %v280, %v670
  %v1589 = vmax.f32 %v285, %v675
  %v1590 = vmax.f32 %v290, %v680
  %v1591 = vmax.f32 %v295, %v685
  %v1592 = vmax.f32 %v300, %v690
  %v1593 = vmax.f32 %v305, %v695
  %v1594 = vmax.f32 %v310, %v700
  %v1595 = vmax.f32 %v315, %v705
  %v1596 = vmax.f32 %v320, %v710
  %v1597 = vmax.f32 %v325, %v715
  %v1598 = vmax.f32 %v330, %v720
  %v1599 = vmax.f32 %v335, %v725
  %v1600 = vmax.f32 %v340, %v730
  %v1601 = vmax.f32 %v345, %v735
  %v1602 = vmax.f32 %v350, %v740
  %v1603 = vmax.f32 %v355, %v745
  %v1604 = vmax.f32 %v360, %v750
  %v1605 = vmax.f32 %v365, %v755
  %v1606 = vmax.f32 %v370, %v760
  %v1607 = vmax.f32 %v375, %v765
  %v1608 = vmax.f32 %v380, %v770
  %v1609 = vmax.f32 %v385, %v775
  %v1610 = vmax.f32 %v390, %v780
  %v1611 = vmax.f32 %v395, %v785
  %v1612 = vmax.f32 %v400, %v790
  %v1613 = vmax.f32 %v405, %v795
  %v1614 = vmax.f32 %v1010, %v1400
  %v1615 = vmax.f32 %v1015, %v1405
  %v1616 = vmax.f32 %v1020, %v1410
  %v1617 = vmax.f32 %v1025, %v1415
  %v1618 = vmax.f32 %v1030, %v1420
  %v1619 = vmax.f32 %v1035, %v1425
  %v1620 = vmax.f32 %v1040, %v1430
  %v1621 = vmax.f32 %v1045, %v1435
  %v1622 = vmax.f32 %v1050, %v1440
  %v1623 = vmax.f32 %v1055, %v1445
  %v1624 = vmax.f32 %v1060, %v1450
  %v1625 = vmax.f32 %v1065, %v1455
  %v1626 = vmax.f32 %v1070, %v1460
  %v1627 = vmax.f32 %v1075, %v1465
  %v1628 = vmax.f32 %v1080, %v1470
  %v1629 = vmax.f32 %v1085, %v1475
  %v1630 = vmax.f32 %v1090, %v1480
  %v1631 = vmax.f32 %v1095, %v1485
  %v1632 = vmax.f32 %v1100, %v1490
  %v1633 = vmax.f32 %v1105, %v1495
  %v1634 = vmax.f32 %v1110, %v1500
  %v1635 = vmax.f32 %v1115, %v1505
  %v1636 = vmax.f32 %v1120, %v1510
  %v1637 = vmax.f32 %v1125, %v1515
  %v1638 = vmax.f32 %v1130, %v1520
  %v1639 = vmax.f32 %v1135, %v1525
  %v1640 = vmax.f32 %v1140, %v1530
  %v1641 = vmax.f32 %v1145, %v1535
  %v1642 = vmax.f32 %v1150, %v1540
  %v1643 = vmax.f32 %v1155, %v1545
  %v1644 = vmax.f32 %v1160, %v1550
  %v1645 = vmax.f32 %v1165, %v1555
  %v1646 = vmax.f32 %v1170, %v1560
  %v1647 = vmax.f32 %v1175, %v1565
  %v1648 = vmax.f32 %v1180, %v1570
  %v1649 = vmax.f32 %v1185, %v1575
  %v1650 = vmax.f32 %v1578, %v1614
  %v1651 = vmax.f32 %v1579, %v1615
  %v1652 = vmax.f32 %v1580, %v1616
  %v1653 = vmax.f32 %v1581, %v1617
  %v1654 = vmax.f32 %v1582, %v1618
  %v1655 = vmax.f32 %v1583, %v1619
  %v1656 = vmax.f32 %v1584, %v1620
  %v1657 = vmax.f32 %v1585, %v1621
  %v1658 = vmax.f32 %v1586, %v1622
  %v1659 = vmax.f32 %v1587, %v1623
  %v1660 = vmax.f32 %v1588, %v1624
  %v1661 = vmax.f32 %v1589, %v1625
  %v1662 = vmax.f32 %v1590, %v1626
  %v1663 = vmax.f32 %v1591, %v1627
  %v1664 = vmax.f32 %v1592, %v1628
  %v1665 = vmax.f32 %v1593, %v1629
  %v1666 = vmax.f32 %v1594, %v1630
  %v1667 = vmax.f32 %v1595, %v1631
  %v1668 = vmax.f32 %v1596, %v1632
  %v1669 = vmax.f32 %v1597, %v1633
  %v1670 = vmax.f32 %v1598, %v1634
  %v1671 = vmax.f32 %v1599, %v1635
  %v1672 = vmax.f32 %v1600, %v1636
  %v1673 = vmax.f32 %v1601, %v1637
  %v1674 = vmax.f32 %v1602, %v1638
  %v1675 = vmax.f32 %v1603, %v1639
  %v1676 = vmax.f32 %v1604, %v1640
  %v1677 = vmax.f32 %v1605, %v1641
  %v1678 = vmax.f32 %v1606, %v1642
  %v1679 = vmax.f32 %v1607, %v1643
  %v1680 = vmax.f32 %v1608, %v1644
  %v1681 = vmax.f32 %v1609, %v1645
  %v1682 = vmax.f32 %v1610, %v1646
  %v1683 = vmax.f32 %v1611, %v1647
  %v1684 = vmax.f32 %v1612, %v1648
  %v1685 = vmax.f32 %v1613, %v1649
  %v1686 = vld [vmem:[%s2] sm:$0x1]
  %v1688 = vlaneseq
  %v1689 = vshrl.u32 %v1688, 7
  %v1690 = vsub.s32 0, %v1689
  %v1691 = vrot.slane %v1686, %v1690
  %v1693 = vadd.f32 %v1650, %v1691
  %v1694 = vadd.f32 %v1651, %v1691
  %v1695 = vadd.f32 %v1652, %v1691
  %v1696 = vadd.f32 %v1653, %v1691
  %v1697 = vadd.f32 %v1654, %v1691
  %v1698 = vadd.f32 %v1655, %v1691
  %v1699 = vadd.f32 %v1656, %v1691
  %v1700 = vadd.f32 %v1657, %v1691
  %v1701 = vadd.f32 %v1658, %v1691
  %v1702 = vadd.f32 %v1659, %v1691
  %v1703 = vadd.f32 %v1660, %v1691
  %v1704 = vadd.f32 %v1661, %v1691
  %v1705 = vadd.f32 %v1662, %v1691
  %v1706 = vadd.f32 %v1663, %v1691
  %v1707 = vadd.f32 %v1664, %v1691
  %v1708 = vadd.f32 %v1665, %v1691
  %v1709 = vadd.f32 %v1666, %v1691
  %v1710 = vadd.f32 %v1667, %v1691
  %v1711 = vadd.f32 %v1668, %v1691
  %v1712 = vadd.f32 %v1669, %v1691
  %v1713 = vadd.f32 %v1670, %v1691
  %v1714 = vadd.f32 %v1671, %v1691
  %v1715 = vadd.f32 %v1672, %v1691
  %v1716 = vadd.f32 %v1673, %v1691
  %v1717 = vadd.f32 %v1674, %v1691
  %v1718 = vadd.f32 %v1675, %v1691
  %v1719 = vadd.f32 %v1676, %v1691
  %v1720 = vadd.f32 %v1677, %v1691
  %v1721 = vadd.f32 %v1678, %v1691
  %v1722 = vadd.f32 %v1679, %v1691
  %v1723 = vadd.f32 %v1680, %v1691
  %v1724 = vadd.f32 %v1681, %v1691
  %v1725 = vadd.f32 %v1682, %v1691
  %v1726 = vadd.f32 %v1683, %v1691
  %v1727 = vadd.f32 %v1684, %v1691
  %v1728 = vadd.f32 %v1685, %v1691
  %v1729 = vmax.f32 %v1693, 0.0
  %v1730 = vmax.f32 %v1694, 0.0
  %v1731 = vmax.f32 %v1695, 0.0
  %v1732 = vmax.f32 %v1696, 0.0
  %v1733 = vmax.f32 %v1697, 0.0
  %v1734 = vmax.f32 %v1698, 0.0
  %v1735 = vmax.f32 %v1699, 0.0
  %v1736 = vmax.f32 %v1700, 0.0
  %v1737 = vmax.f32 %v1701, 0.0
  %v1738 = vmax.f32 %v1702, 0.0
  %v1739 = vmax.f32 %v1703, 0.0
  %v1740 = vmax.f32 %v1704, 0.0
  %v1741 = vmax.f32 %v1705, 0.0
  %v1742 = vmax.f32 %v1706, 0.0
  %v1743 = vmax.f32 %v1707, 0.0
  %v1744 = vmax.f32 %v1708, 0.0
  %v1745 = vmax.f32 %v1709, 0.0
  %v1746 = vmax.f32 %v1710, 0.0
  %v1747 = vmax.f32 %v1711, 0.0
  %v1748 = vmax.f32 %v1712, 0.0
  %v1749 = vmax.f32 %v1713, 0.0
  %v1750 = vmax.f32 %v1714, 0.0
  %v1751 = vmax.f32 %v1715, 0.0
  %v1752 = vmax.f32 %v1716, 0.0
  %v1753 = vmax.f32 %v1717, 0.0
  %v1754 = vmax.f32 %v1718, 0.0
  %v1755 = vmax.f32 %v1719, 0.0
  %v1756 = vmax.f32 %v1720, 0.0
  %v1757 = vmax.f32 %v1721, 0.0
  %v1758 = vmax.f32 %v1722, 0.0
  %v1759 = vmax.f32 %v1723, 0.0
  %v1760 = vmax.f32 %v1724, 0.0
  %v1761 = vmax.f32 %v1725, 0.0
  %v1762 = vmax.f32 %v1726, 0.0
  %v1763 = vmax.f32 %v1727, 0.0
  %v1764 = vmax.f32 %v1728, 0.0
  %1765 = vst.msk [vmem:[%s3] sm:$0xff] %vm54, %v1729
  %1766 = vst.msk [vmem:[%s3 + $0x8] sm:$0xff] %vm54, %v1730
  %1767 = vst.msk [vmem:[%s3 + $0x10] sm:$0xff] %vm54, %v1731
  %1768 = vst.msk [vmem:[%s3 + $0x18] sm:$0xff] %vm54, %v1732
  %1769 = vst.msk [vmem:[%s3 + $0x20] sm:$0xff] %vm54, %v1733
  %1770 = vst.msk [vmem:[%s3 + $0x28] sm:$0xff] %vm54, %v1734
  %1771 = vst.msk [vmem:[%s3 + $0x30] sm:$0xff] %vm54, %v1735
  %1772 = vst.msk [vmem:[%s3 + $0x38] sm:$0xff] %vm54, %v1736
  %1773 = vst.msk [vmem:[%s3 + $0x40] sm:$0xff] %vm54, %v1737
  %1774 = vst.msk [vmem:[%s3 + $0x48] sm:$0xff] %vm54, %v1738
  %1775 = vst.msk [vmem:[%s3 + $0x50] sm:$0xff] %vm54, %v1739
  %1776 = vst.msk [vmem:[%s3 + $0x58] sm:$0xff] %vm54, %v1740
  %1777 = vst.msk [vmem:[%s3 + $0x60] sm:$0xff] %vm54, %v1741
  %1778 = vst.msk [vmem:[%s3 + $0x68] sm:$0xff] %vm54, %v1742
  %1779 = vst.msk [vmem:[%s3 + $0x70] sm:$0xff] %vm54, %v1743
  %1780 = vst.msk [vmem:[%s3 + $0x78] sm:$0xff] %vm54, %v1744
  %1781 = vst.msk [vmem:[%s3 + $0x80] sm:$0xff] %vm54, %v1745
  %1782 = vst.msk [vmem:[%s3 + $0x88] sm:$0xff] %vm54, %v1746
  %1783 = vst.msk [vmem:[%s3 + $0x90] sm:$0xff] %vm54, %v1747
  %1784 = vst.msk [vmem:[%s3 + $0x98] sm:$0xff] %vm54, %v1748
  %1785 = vst.msk [vmem:[%s3 + $0xa0] sm:$0xff] %vm54, %v1749
  %1786 = vst.msk [vmem:[%s3 + $0xa8] sm:$0xff] %vm54, %v1750
  %1787 = vst.msk [vmem:[%s3 + $0xb0] sm:$0xff] %vm54, %v1751
  %1788 = vst.msk [vmem:[%s3 + $0xb8] sm:$0xff] %vm54, %v1752
  %1789 = vst.msk [vmem:[%s3 + $0xc0] sm:$0xff] %vm54, %v1753
  %1790 = vst.msk [vmem:[%s3 + $0xc8] sm:$0xff] %vm54, %v1754
  %1791 = vst.msk [vmem:[%s3 + $0xd0] sm:$0xff] %vm54, %v1755
  %1792 = vst.msk [vmem:[%s3 + $0xd8] sm:$0xff] %vm54, %v1756
  %1793 = vst.msk [vmem:[%s3 + $0xe0] sm:$0xff] %vm54, %v1757
  %1794 = vst.msk [vmem:[%s3 + $0xe8] sm:$0xff] %vm54, %v1758
  %1795 = vst.msk [vmem:[%s3 + $0xf0] sm:$0xff] %vm54, %v1759
  %1796 = vst.msk [vmem:[%s3 + $0xf8] sm:$0xff] %vm54, %v1760
  %1797 = vst.msk [vmem:[%s3 + $0x100] sm:$0xff] %vm54, %v1761
  %1798 = vst.msk [vmem:[%s3 + $0x108] sm:$0xff] %vm54, %v1762
  %1799 = vst.msk [vmem:[%s3 + $0x110] sm:$0xff] %vm54, %v1763
  %1800 = vst.msk [vmem:[%s3 + $0x118] sm:$0xff] %vm54, %v1764
  // Predicated region
  $region14: #{simple_cnn_forward.3} parent=0 // pred_check
    _
  $region15: #{simple_cnn_forward.3} parent=0 // pred_check_branch
    %1802 = sbr.rel (0) target = $region17
  $region16: #{simple_cnn_forward.3} parent=0 // pred_region
    _
  $region17: #{simple_cnn_forward.3} parent=0 // pred_fallthru
    _
  // Predicated region
  $region18: #{simple_cnn_forward.3} parent=0 // pred_check
    _
  $region19: #{simple_cnn_forward.3} parent=0 // pred_check_branch
    %1804 = sbr.rel (0) target = $region21
  $region20: #{simple_cnn_forward.3} parent=0 // pred_region
    _
  $region21: #{simple_cnn_forward.3} parent=0 // pred_fallthru
    _

// kernel: simple_cnn_forward.4
$region0: #{simple_cnn_forward.4}
  #allocation0 [shape = 'u32[]', space=smem, size = 0x4, offset = 0x4, fixed_abs, tag = 'smem constant byte address 0x4 - core index']
  #allocation1 [shape = 'u32[144,128]{1,0:T(1,128)}', space=vmem, size = 0x12000, scoped, tag = 'internal scratch']
  %s0 = inlined_call_operand.vmem [shape: f32[4,32,800], index: 0, kind: input, shape index: {}]
  %s1 = inlined_call_operand.vmem [shape: f32[800,64], index: 1, kind: input, shape index: {}]
  %s2 = inlined_call_operand.vmem [shape: f32[1,64], index: 2, kind: input, shape index: {}]
  %s3 = inlined_call_operand.vmem [shape: f32[32,64], index: 3, kind: output, shape index: {}]
  %s4 = sld [smem:[#allocation0]]
  $region22: #{simple_cnn_forward.4} parent=0
    _
  %s6 = ssub.s32 1, %s4
  %s7 = scalar_select 0, %s6, %s4
  // Predicated region
  $region2: #{simple_cnn_forward.4} parent=0 // pred_check
    _
  $region3: #{simple_cnn_forward.4} parent=0 // pred_check_branch
    %9 = sbr.rel (0) target = $region5
  $region4: #{simple_cnn_forward.4} parent=0 // pred_region
    _
  $region5: #{simple_cnn_forward.4} parent=0 // pred_fallthru
    _
  // Predicated region
  $region6: #{simple_cnn_forward.4} parent=0 // pred_check
    _
  $region7: #{simple_cnn_forward.4} parent=0 // pred_check_branch
    %11 = sbr.rel (0) target = $region9
  $region8: #{simple_cnn_forward.4} parent=0 // pred_region
    _
  $region9: #{simple_cnn_forward.4} parent=0 // pred_fallthru
    _
  // Predicated region
  $region10: #{simple_cnn_forward.4} parent=0 // pred_check
    _
  $region11: #{simple_cnn_forward.4} parent=0 // pred_check_branch
    %13 = sbr.rel (0) target = $region13
  $region12: #{simple_cnn_forward.4} parent=0 // pred_region
    _
  $region13: #{simple_cnn_forward.4} parent=0 // pred_fallthru
    _
  %v14 = vld [vmem:[%s1] sm:$0xff]
  %v15 = vld [vmem:[%s1 + $0x8] sm:$0xff]
  %v16 = vld [vmem:[%s1 + $0x10] sm:$0xff]
  %v17 = vld [vmem:[%s1 + $0x18] sm:$0xff]
  %v18 = vld [vmem:[%s1 + $0x20] sm:$0xff]
  %v19 = vld [vmem:[%s1 + $0x28] sm:$0xff]
  %v20 = vld [vmem:[%s1 + $0x30] sm:$0xff]
  %v21 = vld [vmem:[%s1 + $0x38] sm:$0xff]
  %v22 = vld [vmem:[%s1 + $0x40] sm:$0xff]
  %v23 = vld [vmem:[%s1 + $0x48] sm:$0xff]
  %v24 = vld [vmem:[%s1 + $0x50] sm:$0xff]
  %v25 = vld [vmem:[%s1 + $0x58] sm:$0xff]
  %v26 = vld [vmem:[%s1 + $0x60] sm:$0xff]
  %v27 = vld [vmem:[%s1 + $0x68] sm:$0xff]
  %v28 = vld [vmem:[%s1 + $0x70] sm:$0xff]
  %v29 = vld [vmem:[%s1 + $0x78] sm:$0xff]
  %v30 = vld [vmem:[%s1 + $0x80] sm:$0xff]
  %v31 = vld [vmem:[%s1 + $0x88] sm:$0xff]
  %v32 = vld [vmem:[%s1 + $0x90] sm:$0xff]
  %v33 = vld [vmem:[%s1 + $0x98] sm:$0xff]
  %v34 = vld [vmem:[%s1 + $0xa0] sm:$0xff]
  %v35 = vld [vmem:[%s1 + $0xa8] sm:$0xff]
  %v36 = vld [vmem:[%s1 + $0xb0] sm:$0xff]
  %v37 = vld [vmem:[%s1 + $0xb8] sm:$0xff]
  %v38 = vld [vmem:[%s1 + $0xc0] sm:$0xff]
  %v39 = vld [vmem:[%s1 + $0xc8] sm:$0xff]
  %v40 = vld [vmem:[%s1 + $0xd0] sm:$0xff]
  %v41 = vld [vmem:[%s1 + $0xd8] sm:$0xff]
  %v42 = vld [vmem:[%s1 + $0xe0] sm:$0xff]
  %v43 = vld [vmem:[%s1 + $0xe8] sm:$0xff]
  %v44 = vld [vmem:[%s1 + $0xf0] sm:$0xff]
  %v45 = vld [vmem:[%s1 + $0xf8] sm:$0xff]
  %v46 = vld [vmem:[%s1 + $0x100] sm:$0xff]
  %v47 = vld [vmem:[%s1 + $0x108] sm:$0xff]
  %v48 = vld [vmem:[%s1 + $0x110] sm:$0xff]
  %v49 = vld [vmem:[%s1 + $0x118] sm:$0xff]
  %v50 = vld [vmem:[%s1 + $0x120] sm:$0xff]
  %v51 = vld [vmem:[%s1 + $0x128] sm:$0xff]
  %v52 = vld [vmem:[%s1 + $0x130] sm:$0xff]
  %v53 = vld [vmem:[%s1 + $0x138] sm:$0xff]
  %v54 = vld [vmem:[%s1 + $0x140] sm:$0xff]
  %v55 = vld [vmem:[%s1 + $0x148] sm:$0xff]
  %v56 = vld [vmem:[%s1 + $0x150] sm:$0xff]
  %v57 = vld [vmem:[%s1 + $0x158] sm:$0xff]
  %v58 = vld [vmem:[%s1 + $0x160] sm:$0xff]
  %v59 = vld [vmem:[%s1 + $0x168] sm:$0xff]
  %v60 = vld [vmem:[%s1 + $0x170] sm:$0xff]
  %v61 = vld [vmem:[%s1 + $0x178] sm:$0xff]
  %v62 = vld [vmem:[%s1 + $0x180] sm:$0xff]
  %v63 = vld [vmem:[%s1 + $0x188] sm:$0xff]
  %v64 = vld [vmem:[%s1 + $0x190] sm:$0xff]
  %v65 = vld [vmem:[%s1 + $0x198] sm:$0xff]
  %v66 = vld [vmem:[%s1 + $0x1a0] sm:$0xff]
  %v67 = vld [vmem:[%s1 + $0x1a8] sm:$0xff]
  %v68 = vld [vmem:[%s1 + $0x1b0] sm:$0xff]
  %v69 = vld [vmem:[%s1 + $0x1b8] sm:$0xff]
  %v70 = vld [vmem:[%s1 + $0x1c0] sm:$0xff]
  %v71 = vld [vmem:[%s1 + $0x1c8] sm:$0xff]
  %v72 = vld [vmem:[%s1 + $0x1d0] sm:$0xff]
  %v73 = vld [vmem:[%s1 + $0x1d8] sm:$0xff]
  %v74 = vld [vmem:[%s1 + $0x1e0] sm:$0xff]
  %v75 = vld [vmem:[%s1 + $0x1e8] sm:$0xff]
  %v76 = vld [vmem:[%s1 + $0x1f0] sm:$0xff]
  %v77 = vld [vmem:[%s1 + $0x1f8] sm:$0xff]
  %v78 = vld [vmem:[%s1 + $0x200] sm:$0xff]
  %v79 = vld [vmem:[%s1 + $0x208] sm:$0xff]
  %v80 = vld [vmem:[%s1 + $0x210] sm:$0xff]
  %v81 = vld [vmem:[%s1 + $0x218] sm:$0xff]
  %v82 = vld [vmem:[%s1 + $0x220] sm:$0xff]
  %v83 = vld [vmem:[%s1 + $0x228] sm:$0xff]
  %v84 = vld [vmem:[%s1 + $0x230] sm:$0xff]
  %v85 = vld [vmem:[%s1 + $0x238] sm:$0xff]
  %v86 = vld [vmem:[%s1 + $0x240] sm:$0xff]
  %v87 = vld [vmem:[%s1 + $0x248] sm:$0xff]
  %v88 = vld [vmem:[%s1 + $0x250] sm:$0xff]
  %v89 = vld [vmem:[%s1 + $0x258] sm:$0xff]
  %v90 = vld [vmem:[%s1 + $0x260] sm:$0xff]
  %v91 = vld [vmem:[%s1 + $0x268] sm:$0xff]
  %v92 = vld [vmem:[%s1 + $0x270] sm:$0xff]
  %v93 = vld [vmem:[%s1 + $0x278] sm:$0xff]
  %v94 = vld [vmem:[%s1 + $0x280] sm:$0xff]
  %v95 = vld [vmem:[%s1 + $0x288] sm:$0xff]
  %v96 = vld [vmem:[%s1 + $0x290] sm:$0xff]
  %v97 = vld [vmem:[%s1 + $0x298] sm:$0xff]
  %v98 = vld [vmem:[%s1 + $0x2a0] sm:$0xff]
  %v99 = vld [vmem:[%s1 + $0x2a8] sm:$0xff]
  %v100 = vld [vmem:[%s1 + $0x2b0] sm:$0xff]
  %v101 = vld [vmem:[%s1 + $0x2b8] sm:$0xff]
  %v102 = vld [vmem:[%s1 + $0x2c0] sm:$0xff]
  %v103 = vld [vmem:[%s1 + $0x2c8] sm:$0xff]
  %v104 = vld [vmem:[%s1 + $0x2d0] sm:$0xff]
  %v105 = vld [vmem:[%s1 + $0x2d8] sm:$0xff]
  %v106 = vld [vmem:[%s1 + $0x2e0] sm:$0xff]
  %v107 = vld [vmem:[%s1 + $0x2e8] sm:$0xff]
  %v108 = vld [vmem:[%s1 + $0x2f0] sm:$0xff]
  %v109 = vld [vmem:[%s1 + $0x2f8] sm:$0xff]
  %v110 = vld [vmem:[%s1 + $0x300] sm:$0xff]
  %v111 = vld [vmem:[%s1 + $0x308] sm:$0xff]
  %v112 = vld [vmem:[%s1 + $0x310] sm:$0xff]
  %v113 = vld [vmem:[%s1 + $0x318] sm:$0xff]
  %v114 = vld [vmem:[%s0] sm:$0xff]
  %v115 = vld [vmem:[%s0 + $0x8] sm:$0xff]
  %v116 = vld [vmem:[%s0 + $0x10] sm:$0xff]
  %v117 = vld [vmem:[%s0 + $0x18] sm:$0xff]
  %v118 = vld [vmem:[%s0 + $0x20] sm:$0xff]
  %v119 = vld [vmem:[%s0 + $0x28] sm:$0xff]
  %v120 = vld [vmem:[%s0 + $0x30] sm:$0xff]
  %v121 = vld [vmem:[%s0 + $0x38] sm:$0xff]
  %v122 = vld [vmem:[%s0 + $0x40] sm:$0xff]
  %v123 = vld [vmem:[%s0 + $0x48] sm:$0xff]
  %v124 = vld [vmem:[%s0 + $0x50] sm:$0xff]
  %v125 = vld [vmem:[%s0 + $0x58] sm:$0xff]
  %v126 = vld [vmem:[%s0 + $0x60] sm:$0xff]
  %v127 = vld [vmem:[%s0 + $0x68] sm:$0xff]
  %v128 = vld [vmem:[%s0 + $0x70] sm:$0xff]
  %v129 = vld [vmem:[%s0 + $0x78] sm:$0xff]
  %v130 = vld [vmem:[%s0 + $0x80] sm:$0xff]
  %v131 = vld [vmem:[%s0 + $0x88] sm:$0xff]
  %v132 = vld [vmem:[%s0 + $0x90] sm:$0xff]
  %v133 = vld [vmem:[%s0 + $0x98] sm:$0xff]
  %v134 = vld [vmem:[%s0 + $0xa0] sm:$0xff]
  %v135 = vld [vmem:[%s0 + $0xa8] sm:$0xff]
  %v136 = vld [vmem:[%s0 + $0xb0] sm:$0xff]
  %v137 = vld [vmem:[%s0 + $0xb8] sm:$0xff]
  %v138 = vld [vmem:[%s0 + $0xc0] sm:$0xff]
  %v139 = vld [vmem:[%s0 + $0xc8] sm:$0xff]
  %v140 = vld [vmem:[%s0 + $0xd0] sm:$0xff]
  %v141 = vld [vmem:[%s0 + $0xd8] sm:$0xff]
  %vm142 = vcmask 261120
  %v144 = vsel %vm142, %v120, 0
  %v147 = vsel %vm142, %v127, 0
  %v150 = vsel %vm142, %v134, 0
  %v153 = vsel %vm142, %v141, 0
  %155 = vmatprep.subr.mxu0 0.0
  %156 = vmatpush1.msra.mxu0 %v29
  %157 = vmatprep.subr.mxu0 0.0
  %158 = vmatpush1.msra.mxu0 %v28
  %159 = vmatprep.subr.mxu0 0.0
  %160 = vmatpush1.msra.mxu0 %v27
  %161 = vmatprep.subr.mxu0 0.0
  %162 = vmatpush1.msra.mxu0 %v26
  %163 = vmatprep.subr.mxu0 0.0
  %164 = vmatpush1.msra.mxu0 %v25
  %165 = vmatprep.subr.mxu0 0.0
  %166 = vmatpush1.msra.mxu0 %v24
  %167 = vmatprep.subr.mxu0 0.0
  %168 = vmatpush1.msra.mxu0 %v23
  %169 = vmatprep.subr.mxu0 0.0
  %170 = vmatpush1.msra.mxu0 %v22
  %171 = vmatprep.subr.mxu0 0.0
  %172 = vmatpush1.msra.mxu0 %v21
  %173 = vmatprep.subr.mxu0 0.0
  %174 = vmatpush1.msra.mxu0 %v20
  %175 = vmatprep.subr.mxu0 0.0
  %176 = vmatpush1.msra.mxu0 %v19
  %177 = vmatprep.subr.mxu0 0.0
  %178 = vmatpush1.msra.mxu0 %v18
  %179 = vmatprep.subr.mxu0 0.0
  %180 = vmatpush1.msra.mxu0 %v17
  %181 = vmatprep.subr.mxu0 0.0
  %182 = vmatpush1.msra.mxu0 %v16
  %183 = vmatprep.subr.mxu0 0.0
  %184 = vmatpush1.msra.mxu0 %v15
  %185 = vmatprep.subr.mxu0 0.0
  %186 = vmatpush1.msra.mxu0 %v14
  %187 = vmatprep.subr.mxu0 0.0
  %188 = vmatpush2.msra.mxu0 %v45
  %189 = vmatprep.subr.mxu0 0.0
  %190 = vmatpush2.msra.mxu0 %v44
  %191 = vmatprep.subr.mxu0 0.0
  %192 = vmatpush2.msra.mxu0 %v43
  %193 = vmatprep.subr.mxu0 0.0
  %194 = vmatpush2.msra.mxu0 %v42
  %195 = vmatprep.subr.mxu0 0.0
  %196 = vmatpush2.msra.mxu0 %v41
  %197 = vmatprep.subr.mxu0 0.0
  %198 = vmatpush2.msra.mxu0 %v40
  %199 = vmatprep.subr.mxu0 0.0
  %200 = vmatpush2.msra.mxu0 %v39
  %201 = vmatprep.subr.mxu0 0.0
  %202 = vmatpush2.msra.mxu0 %v38
  %203 = vmatprep.subr.mxu0 0.0
  %204 = vmatpush2.msra.mxu0 %v37
  %205 = vmatprep.subr.mxu0 0.0
  %206 = vmatpush2.msra.mxu0 %v36
  %207 = vmatprep.subr.mxu0 0.0
  %208 = vmatpush2.msra.mxu0 %v35
  %209 = vmatprep.subr.mxu0 0.0
  %210 = vmatpush2.msra.mxu0 %v34
  %211 = vmatprep.subr.mxu0 0.0
  %212 = vmatpush2.msra.mxu0 %v33
  %213 = vmatprep.subr.mxu0 0.0
  %214 = vmatpush2.msra.mxu0 %v32
  %215 = vmatprep.subr.mxu0 0.0
  %216 = vmatpush2.msra.mxu0 %v31
  %217 = vmatprep.subr.mxu0 0.0
  %218 = vmatpush2.msra.mxu0 %v30
  %219 = vmatprep.mubr.f32.mxu0 %v115
  %220 = vmatmul.mubr.f32.gmra.mxu0 %v114
  %v221 = vpop.f32.mrf.mxu0
  %v222 = vadd.f32 0.0, %v221
  %v223 = vpop.f32.mrf.mxu0
  %224 = vmatprep.mubr.f32.mxu0 %v122
  %225 = vmatmul.mubr.f32.gmra.mxu0 %v121
  %v226 = vpop.f32.mrf.mxu0
  %v227 = vadd.f32 0.0, %v226
  %v228 = vpop.f32.mrf.mxu0
  %229 = vmatprep.mubr.f32.mxu0 %v129
  %230 = vmatmul.mubr.f32.gmra.mxu0 %v128
  %v231 = vpop.f32.mrf.mxu0
  %v232 = vadd.f32 0.0, %v231
  %v233 = vpop.f32.mrf.mxu0
  %234 = vmatprep.mubr.f32.mxu0 %v136
  %235 = vmatmul.mubr.f32.gmra.mxu0 %v135
  %v236 = vpop.f32.mrf.mxu0
  %v237 = vadd.f32 0.0, %v236
  %v238 = vpop.f32.mrf.mxu0
  %239 = vdwg.mxu0
  %240 = vmatprep.subr.mxu0 0.0
  %241 = vmatpush1.msra.mxu0 %v61
  %242 = vmatprep.subr.mxu0 0.0
  %243 = vmatpush1.msra.mxu0 %v60
  %244 = vmatprep.subr.mxu0 0.0
  %245 = vmatpush1.msra.mxu0 %v59
  %246 = vmatprep.subr.mxu0 0.0
  %247 = vmatpush1.msra.mxu0 %v58
  %248 = vmatprep.subr.mxu0 0.0
  %249 = vmatpush1.msra.mxu0 %v57
  %250 = vmatprep.subr.mxu0 0.0
  %251 = vmatpush1.msra.mxu0 %v56
  %252 = vmatprep.subr.mxu0 0.0
  %253 = vmatpush1.msra.mxu0 %v55
  %254 = vmatprep.subr.mxu0 0.0
  %255 = vmatpush1.msra.mxu0 %v54
  %256 = vmatprep.subr.mxu0 0.0
  %257 = vmatpush1.msra.mxu0 %v53
  %258 = vmatprep.subr.mxu0 0.0
  %259 = vmatpush1.msra.mxu0 %v52
  %260 = vmatprep.subr.mxu0 0.0
  %261 = vmatpush1.msra.mxu0 %v51
  %262 = vmatprep.subr.mxu0 0.0
  %263 = vmatpush1.msra.mxu0 %v50
  %264 = vmatprep.subr.mxu0 0.0
  %265 = vmatpush1.msra.mxu0 %v49
  %266 = vmatprep.subr.mxu0 0.0
  %267 = vmatpush1.msra.mxu0 %v48
  %268 = vmatprep.subr.mxu0 0.0
  %269 = vmatpush1.msra.mxu0 %v47
  %270 = vmatprep.subr.mxu0 0.0
  %271 = vmatpush1.msra.mxu0 %v46
  %272 = vmatprep.subr.mxu0 0.0
  %273 = vmatpush2.msra.mxu0 %v77
  %274 = vmatprep.subr.mxu0 0.0
  %275 = vmatpush2.msra.mxu0 %v76
  %276 = vmatprep.subr.mxu0 0.0
  %277 = vmatpush2.msra.mxu0 %v75
  %278 = vmatprep.subr.mxu0 0.0
  %279 = vmatpush2.msra.mxu0 %v74
  %280 = vmatprep.subr.mxu0 0.0
  %281 = vmatpush2.msra.mxu0 %v73
  %282 = vmatprep.subr.mxu0 0.0
  %283 = vmatpush2.msra.mxu0 %v72
  %284 = vmatprep.subr.mxu0 0.0
  %285 = vmatpush2.msra.mxu0 %v71
  %286 = vmatprep.subr.mxu0 0.0
  %287 = vmatpush2.msra.mxu0 %v70
  %288 = vmatprep.subr.mxu0 0.0
  %289 = vmatpush2.msra.mxu0 %v69
  %290 = vmatprep.subr.mxu0 0.0
  %291 = vmatpush2.msra.mxu0 %v68
  %292 = vmatprep.subr.mxu0 0.0
  %293 = vmatpush2.msra.mxu0 %v67
  %294 = vmatprep.subr.mxu0 0.0
  %295 = vmatpush2.msra.mxu0 %v66
  %296 = vmatprep.subr.mxu0 0.0
  %297 = vmatpush2.msra.mxu0 %v65
  %298 = vmatprep.subr.mxu0 0.0
  %299 = vmatpush2.msra.mxu0 %v64
  %300 = vmatprep.subr.mxu0 0.0
  %301 = vmatpush2.msra.mxu0 %v63
  %302 = vmatprep.subr.mxu0 0.0
  %303 = vmatpush2.msra.mxu0 %v62
  %304 = vmatprep.mubr.f32.mxu0 %v117
  %305 = vmatmul.mubr.f32.gmra.mxu0 %v116
  %v306 = vpop.f32.mrf.mxu0
  %v307 = vadd.f32 %v222, %v306
  %v308 = vpop.f32.mrf.mxu0
  %309 = vmatprep.mubr.f32.mxu0 %v124
  %310 = vmatmul.mubr.f32.gmra.mxu0 %v123
  %v311 = vpop.f32.mrf.mxu0
  %v312 = vadd.f32 %v227, %v311
  %v313 = vpop.f32.mrf.mxu0
  %314 = vmatprep.mubr.f32.mxu0 %v131
  %315 = vmatmul.mubr.f32.gmra.mxu0 %v130
  %v316 = vpop.f32.mrf.mxu0
  %v317 = vadd.f32 %v232, %v316
  %v318 = vpop.f32.mrf.mxu0
  %319 = vmatprep.mubr.f32.mxu0 %v138
  %320 = vmatmul.mubr.f32.gmra.mxu0 %v137
  %v321 = vpop.f32.mrf.mxu0
  %v322 = vadd.f32 %v237, %v321
  %v323 = vpop.f32.mrf.mxu0
  %324 = vdwg.mxu0
  %325 = vmatprep.subr.mxu0 0.0
  %326 = vmatpush1.msra.mxu0 %v93
  %327 = vmatprep.subr.mxu0 0.0
  %328 = vmatpush1.msra.mxu0 %v92
  %329 = vmatprep.subr.mxu0 0.0
  %330 = vmatpush1.msra.mxu0 %v91
  %331 = vmatprep.subr.mxu0 0.0
  %332 = vmatpush1.msra.mxu0 %v90
  %333 = vmatprep.subr.mxu0 0.0
  %334 = vmatpush1.msra.mxu0 %v89
  %335 = vmatprep.subr.mxu0 0.0
  %336 = vmatpush1.msra.mxu0 %v88
  %337 = vmatprep.subr.mxu0 0.0
  %338 = vmatpush1.msra.mxu0 %v87
  %339 = vmatprep.subr.mxu0 0.0
  %340 = vmatpush1.msra.mxu0 %v86
  %341 = vmatprep.subr.mxu0 0.0
  %342 = vmatpush1.msra.mxu0 %v85
  %343 = vmatprep.subr.mxu0 0.0
  %344 = vmatpush1.msra.mxu0 %v84
  %345 = vmatprep.subr.mxu0 0.0
  %346 = vmatpush1.msra.mxu0 %v83
  %347 = vmatprep.subr.mxu0 0.0
  %348 = vmatpush1.msra.mxu0 %v82
  %349 = vmatprep.subr.mxu0 0.0
  %350 = vmatpush1.msra.mxu0 %v81
  %351 = vmatprep.subr.mxu0 0.0
  %352 = vmatpush1.msra.mxu0 %v80
  %353 = vmatprep.subr.mxu0 0.0
  %354 = vmatpush1.msra.mxu0 %v79
  %355 = vmatprep.subr.mxu0 0.0
  %356 = vmatpush1.msra.mxu0 %v78
  %357 = vmatprep.subr.mxu0 0.0
  %358 = vmatpush2.msra.mxu0 %v109
  %359 = vmatprep.subr.mxu0 0.0
  %360 = vmatpush2.msra.mxu0 %v108
  %361 = vmatprep.subr.mxu0 0.0
  %362 = vmatpush2.msra.mxu0 %v107
  %363 = vmatprep.subr.mxu0 0.0
  %364 = vmatpush2.msra.mxu0 %v106
  %365 = vmatprep.subr.mxu0 0.0
  %366 = vmatpush2.msra.mxu0 %v105
  %367 = vmatprep.subr.mxu0 0.0
  %368 = vmatpush2.msra.mxu0 %v104
  %369 = vmatprep.subr.mxu0 0.0
  %370 = vmatpush2.msra.mxu0 %v103
  %371 = vmatprep.subr.mxu0 0.0
  %372 = vmatpush2.msra.mxu0 %v102
  %373 = vmatprep.subr.mxu0 0.0
  %374 = vmatpush2.msra.mxu0 %v101
  %375 = vmatprep.subr.mxu0 0.0
  %376 = vmatpush2.msra.mxu0 %v100
  %377 = vmatprep.subr.mxu0 0.0
  %378 = vmatpush2.msra.mxu0 %v99
  %379 = vmatprep.subr.mxu0 0.0
  %380 = vmatpush2.msra.mxu0 %v98
  %381 = vmatprep.subr.mxu0 0.0
  %382 = vmatpush2.msra.mxu0 %v97
  %383 = vmatprep.subr.mxu0 0.0
  %384 = vmatpush2.msra.mxu0 %v96
  %385 = vmatprep.subr.mxu0 0.0
  %386 = vmatpush2.msra.mxu0 %v95
  %387 = vmatprep.subr.mxu0 0.0
  %388 = vmatpush2.msra.mxu0 %v94
  %389 = vmatprep.mubr.f32.mxu0 %v119
  %390 = vmatmul.mubr.f32.gmra.mxu0 %v118
  %v391 = vpop.f32.mrf.mxu0
  %v392 = vadd.f32 %v307, %v391
  %v393 = vpop.f32.mrf.mxu0
  %394 = vmatprep.mubr.f32.mxu0 %v126
  %395 = vmatmul.mubr.f32.gmra.mxu0 %v125
  %v396 = vpop.f32.mrf.mxu0
  %v397 = vadd.f32 %v312, %v396
  %v398 = vpop.f32.mrf.mxu0
  %399 = vmatprep.mubr.f32.mxu0 %v133
  %400 = vmatmul.mubr.f32.gmra.mxu0 %v132
  %v401 = vpop.f32.mrf.mxu0
  %v402 = vadd.f32 %v317, %v401
  %v403 = vpop.f32.mrf.mxu0
  %404 = vmatprep.mubr.f32.mxu0 %v140
  %405 = vmatmul.mubr.f32.gmra.mxu0 %v139
  %v406 = vpop.f32.mrf.mxu0
  %v407 = vadd.f32 %v322, %v406
  %v408 = vpop.f32.mrf.mxu0
  %409 = vdwg.mxu0
  %410 = vmatprep.subr.mxu0 0.0
  %411 = vmatpush1.msra.mxu0 0.0
  %412 = vmatprep.subr.mxu0 0.0
  %413 = vmatpush1.msra.mxu0 0.0
  %414 = vmatprep.subr.mxu0 0.0
  %415 = vmatpush1.msra.mxu0 0.0
  %416 = vmatprep.subr.mxu0 0.0
  %417 = vmatpush1.msra.mxu0 0.0
  %418 = vmatprep.subr.mxu0 0.0
  %419 = vmatpush1.msra.mxu0 0.0
  %420 = vmatprep.subr.mxu0 0.0
  %421 = vmatpush1.msra.mxu0 0.0
  %422 = vmatprep.subr.mxu0 0.0
  %423 = vmatpush1.msra.mxu0 0.0
  %424 = vmatprep.subr.mxu0 0.0
  %425 = vmatpush1.msra.mxu0 0.0
  %426 = vmatprep.subr.mxu0 0.0
  %427 = vmatpush1.msra.mxu0 0.0
  %428 = vmatprep.subr.mxu0 0.0
  %429 = vmatpush1.msra.mxu0 0.0
  %430 = vmatprep.subr.mxu0 0.0
  %431 = vmatpush1.msra.mxu0 0.0
  %432 = vmatprep.subr.mxu0 0.0
  %433 = vmatpush1.msra.mxu0 0.0
  %434 = vmatprep.subr.mxu0 0.0
  %435 = vmatpush1.msra.mxu0 %v113
  %436 = vmatprep.subr.mxu0 0.0
  %437 = vmatpush1.msra.mxu0 %v112
  %438 = vmatprep.subr.mxu0 0.0
  %439 = vmatpush1.msra.mxu0 %v111
  %440 = vmatprep.subr.mxu0 0.0
  %441 = vmatpush1.msra.mxu0 %v110
  %442 = vmatprep.subr.mxu0 0.0
  %443 = vmatpush2.msra.mxu0 0.0
  %444 = vmatprep.subr.mxu0 0.0
  %445 = vmatpush2.msra.mxu0 0.0
  %446 = vmatprep.subr.mxu0 0.0
  %447 = vmatpush2.msra.mxu0 0.0
  %448 = vmatprep.subr.mxu0 0.0
  %449 = vmatpush2.msra.mxu0 0.0
  %450 = vmatprep.subr.mxu0 0.0
  %451 = vmatpush2.msra.mxu0 0.0
  %452 = vmatprep.subr.mxu0 0.0
  %453 = vmatpush2.msra.mxu0 0.0
  %454 = vmatprep.subr.mxu0 0.0
  %455 = vmatpush2.msra.mxu0 0.0
  %456 = vmatprep.subr.mxu0 0.0
  %457 = vmatpush2.msra.mxu0 0.0
  %458 = vmatprep.subr.mxu0 0.0
  %459 = vmatpush2.msra.mxu0 0.0
  %460 = vmatprep.subr.mxu0 0.0
  %461 = vmatpush2.msra.mxu0 0.0
  %462 = vmatprep.subr.mxu0 0.0
  %463 = vmatpush2.msra.mxu0 0.0
  %464 = vmatprep.subr.mxu0 0.0
  %465 = vmatpush2.msra.mxu0 0.0
  %466 = vmatprep.subr.mxu0 0.0
  %467 = vmatpush2.msra.mxu0 0.0
  %468 = vmatprep.subr.mxu0 0.0
  %469 = vmatpush2.msra.mxu0 0.0
  %470 = vmatprep.subr.mxu0 0.0
  %471 = vmatpush2.msra.mxu0 0.0
  %472 = vmatprep.subr.mxu0 0.0
  %473 = vmatpush2.msra.mxu0 0.0
  %474 = vmatprep.mubr.f32.mxu0 0.0
  %475 = vmatmul.mubr.f32.gmra.mxu0 %v144
  %v476 = vpop.f32.mrf.mxu0
  %v477 = vadd.f32 %v392, %v476
  %v478 = vpop.f32.mrf.mxu0
  %479 = vmatprep.mubr.f32.mxu0 0.0
  %480 = vmatmul.mubr.f32.gmra.mxu0 %v147
  %v481 = vpop.f32.mrf.mxu0
  %v482 = vadd.f32 %v397, %v481
  %v483 = vpop.f32.mrf.mxu0
  %484 = vmatprep.mubr.f32.mxu0 0.0
  %485 = vmatmul.mubr.f32.gmra.mxu0 %v150
  %v486 = vpop.f32.mrf.mxu0
  %v487 = vadd.f32 %v402, %v486
  %v488 = vpop.f32.mrf.mxu0
  %489 = vmatprep.mubr.f32.mxu0 0.0
  %490 = vmatmul.mubr.f32.gmra.mxu0 %v153
  %v491 = vpop.f32.mrf.mxu0
  %v492 = vadd.f32 %v407, %v491
  %v493 = vpop.f32.mrf.mxu0
  %494 = vdwg.mxu0
  %s495 = scalar_lea.vmem %s0, 224
  %v496 = vld [vmem:[%s495] sm:$0xff]
  %v497 = vld [vmem:[%s495 + $0x8] sm:$0xff]
  %v498 = vld [vmem:[%s495 + $0x10] sm:$0xff]
  %v499 = vld [vmem:[%s495 + $0x18] sm:$0xff]
  %v500 = vld [vmem:[%s495 + $0x20] sm:$0xff]
  %v501 = vld [vmem:[%s495 + $0x28] sm:$0xff]
  %v502 = vld [vmem:[%s495 + $0x30] sm:$0xff]
  %v503 = vld [vmem:[%s495 + $0x38] sm:$0xff]
  %v504 = vld [vmem:[%s495 + $0x40] sm:$0xff]
  %v505 = vld [vmem:[%s495 + $0x48] sm:$0xff]
  %v506 = vld [vmem:[%s495 + $0x50] sm:$0xff]
  %v507 = vld [vmem:[%s495 + $0x58] sm:$0xff]
  %v508 = vld [vmem:[%s495 + $0x60] sm:$0xff]
  %v509 = vld [vmem:[%s495 + $0x68] sm:$0xff]
  %v510 = vld [vmem:[%s495 + $0x70] sm:$0xff]
  %v511 = vld [vmem:[%s495 + $0x78] sm:$0xff]
  %v512 = vld [vmem:[%s495 + $0x80] sm:$0xff]
  %v513 = vld [vmem:[%s495 + $0x88] sm:$0xff]
  %v514 = vld [vmem:[%s495 + $0x90] sm:$0xff]
  %v515 = vld [vmem:[%s495 + $0x98] sm:$0xff]
  %v516 = vld [vmem:[%s495 + $0xa0] sm:$0xff]
  %v517 = vld [vmem:[%s495 + $0xa8] sm:$0xff]
  %v518 = vld [vmem:[%s495 + $0xb0] sm:$0xff]
  %v519 = vld [vmem:[%s495 + $0xb8] sm:$0xff]
  %v520 = vld [vmem:[%s495 + $0xc0] sm:$0xff]
  %v521 = vld [vmem:[%s495 + $0xc8] sm:$0xff]
  %v522 = vld [vmem:[%s495 + $0xd0] sm:$0xff]
  %v523 = vld [vmem:[%s495 + $0xd8] sm:$0xff]
  %v525 = vsel %vm142, %v502, 0
  %v528 = vsel %vm142, %v509, 0
  %v531 = vsel %vm142, %v516, 0
  %v534 = vsel %vm142, %v523, 0
  %536 = vmatprep.subr.mxu0 0.0
  %537 = vmatpush1.msra.mxu0 %v29
  %538 = vmatprep.subr.mxu0 0.0
  %539 = vmatpush1.msra.mxu0 %v28
  %540 = vmatprep.subr.mxu0 0.0
  %541 = vmatpush1.msra.mxu0 %v27
  %542 = vmatprep.subr.mxu0 0.0
  %543 = vmatpush1.msra.mxu0 %v26
  %544 = vmatprep.subr.mxu0 0.0
  %545 = vmatpush1.msra.mxu0 %v25
  %546 = vmatprep.subr.mxu0 0.0
  %547 = vmatpush1.msra.mxu0 %v24
  %548 = vmatprep.subr.mxu0 0.0
  %549 = vmatpush1.msra.mxu0 %v23
  %550 = vmatprep.subr.mxu0 0.0
  %551 = vmatpush1.msra.mxu0 %v22
  %552 = vmatprep.subr.mxu0 0.0
  %553 = vmatpush1.msra.mxu0 %v21
  %554 = vmatprep.subr.mxu0 0.0
  %555 = vmatpush1.msra.mxu0 %v20
  %556 = vmatprep.subr.mxu0 0.0
  %557 = vmatpush1.msra.mxu0 %v19
  %558 = vmatprep.subr.mxu0 0.0
  %559 = vmatpush1.msra.mxu0 %v18
  %560 = vmatprep.subr.mxu0 0.0
  %561 = vmatpush1.msra.mxu0 %v17
  %562 = vmatprep.subr.mxu0 0.0
  %563 = vmatpush1.msra.mxu0 %v16
  %564 = vmatprep.subr.mxu0 0.0
  %565 = vmatpush1.msra.mxu0 %v15
  %566 = vmatprep.subr.mxu0 0.0
  %567 = vmatpush1.msra.mxu0 %v14
  %568 = vmatprep.subr.mxu0 0.0
  %569 = vmatpush2.msra.mxu0 %v45
  %570 = vmatprep.subr.mxu0 0.0
  %571 = vmatpush2.msra.mxu0 %v44
  %572 = vmatprep.subr.mxu0 0.0
  %573 = vmatpush2.msra.mxu0 %v43
  %574 = vmatprep.subr.mxu0 0.0
  %575 = vmatpush2.msra.mxu0 %v42
  %576 = vmatprep.subr.mxu0 0.0
  %577 = vmatpush2.msra.mxu0 %v41
  %578 = vmatprep.subr.mxu0 0.0
  %579 = vmatpush2.msra.mxu0 %v40
  %580 = vmatprep.subr.mxu0 0.0
  %581 = vmatpush2.msra.mxu0 %v39
  %582 = vmatprep.subr.mxu0 0.0
  %583 = vmatpush2.msra.mxu0 %v38
  %584 = vmatprep.subr.mxu0 0.0
  %585 = vmatpush2.msra.mxu0 %v37
  %586 = vmatprep.subr.mxu0 0.0
  %587 = vmatpush2.msra.mxu0 %v36
  %588 = vmatprep.subr.mxu0 0.0
  %589 = vmatpush2.msra.mxu0 %v35
  %590 = vmatprep.subr.mxu0 0.0
  %591 = vmatpush2.msra.mxu0 %v34
  %592 = vmatprep.subr.mxu0 0.0
  %593 = vmatpush2.msra.mxu0 %v33
  %594 = vmatprep.subr.mxu0 0.0
  %595 = vmatpush2.msra.mxu0 %v32
  %596 = vmatprep.subr.mxu0 0.0
  %597 = vmatpush2.msra.mxu0 %v31
  %598 = vmatprep.subr.mxu0 0.0
  %599 = vmatpush2.msra.mxu0 %v30
  %600 = vmatprep.mubr.f32.mxu0 %v497
  %601 = vmatmul.mubr.f32.gmra.mxu0 %v496
  %v602 = vpop.f32.mrf.mxu0
  %v603 = vadd.f32 0.0, %v602
  %v604 = vpop.f32.mrf.mxu0
  %605 = vmatprep.mubr.f32.mxu0 %v504
  %606 = vmatmul.mubr.f32.gmra.mxu0 %v503
  %v607 = vpop.f32.mrf.mxu0
  %v608 = vadd.f32 0.0, %v607
  %v609 = vpop.f32.mrf.mxu0
  %610 = vmatprep.mubr.f32.mxu0 %v511
  %611 = vmatmul.mubr.f32.gmra.mxu0 %v510
  %v612 = vpop.f32.mrf.mxu0
  %v613 = vadd.f32 0.0, %v612
  %v614 = vpop.f32.mrf.mxu0
  %615 = vmatprep.mubr.f32.mxu0 %v518
  %616 = vmatmul.mubr.f32.gmra.mxu0 %v517
  %v617 = vpop.f32.mrf.mxu0
  %v618 = vadd.f32 0.0, %v617
  %v619 = vpop.f32.mrf.mxu0
  %620 = vdwg.mxu0
  %621 = vmatprep.subr.mxu0 0.0
  %622 = vmatpush1.msra.mxu0 %v61
  %623 = vmatprep.subr.mxu0 0.0
  %624 = vmatpush1.msra.mxu0 %v60
  %625 = vmatprep.subr.mxu0 0.0
  %626 = vmatpush1.msra.mxu0 %v59
  %627 = vmatprep.subr.mxu0 0.0
  %628 = vmatpush1.msra.mxu0 %v58
  %629 = vmatprep.subr.mxu0 0.0
  %630 = vmatpush1.msra.mxu0 %v57
  %631 = vmatprep.subr.mxu0 0.0
  %632 = vmatpush1.msra.mxu0 %v56
  %633 = vmatprep.subr.mxu0 0.0
  %634 = vmatpush1.msra.mxu0 %v55
  %635 = vmatprep.subr.mxu0 0.0
  %636 = vmatpush1.msra.mxu0 %v54
  %637 = vmatprep.subr.mxu0 0.0
  %638 = vmatpush1.msra.mxu0 %v53
  %639 = vmatprep.subr.mxu0 0.0
  %640 = vmatpush1.msra.mxu0 %v52
  %641 = vmatprep.subr.mxu0 0.0
  %642 = vmatpush1.msra.mxu0 %v51
  %643 = vmatprep.subr.mxu0 0.0
  %644 = vmatpush1.msra.mxu0 %v50
  %645 = vmatprep.subr.mxu0 0.0
  %646 = vmatpush1.msra.mxu0 %v49
  %647 = vmatprep.subr.mxu0 0.0
  %648 = vmatpush1.msra.mxu0 %v48
  %649 = vmatprep.subr.mxu0 0.0
  %650 = vmatpush1.msra.mxu0 %v47
  %651 = vmatprep.subr.mxu0 0.0
  %652 = vmatpush1.msra.mxu0 %v46
  %653 = vmatprep.subr.mxu0 0.0
  %654 = vmatpush2.msra.mxu0 %v77
  %655 = vmatprep.subr.mxu0 0.0
  %656 = vmatpush2.msra.mxu0 %v76
  %657 = vmatprep.subr.mxu0 0.0
  %658 = vmatpush2.msra.mxu0 %v75
  %659 = vmatprep.subr.mxu0 0.0
  %660 = vmatpush2.msra.mxu0 %v74
  %661 = vmatprep.subr.mxu0 0.0
  %662 = vmatpush2.msra.mxu0 %v73
  %663 = vmatprep.subr.mxu0 0.0
  %664 = vmatpush2.msra.mxu0 %v72
  %665 = vmatprep.subr.mxu0 0.0
  %666 = vmatpush2.msra.mxu0 %v71
  %667 = vmatprep.subr.mxu0 0.0
  %668 = vmatpush2.msra.mxu0 %v70
  %669 = vmatprep.subr.mxu0 0.0
  %670 = vmatpush2.msra.mxu0 %v69
  %671 = vmatprep.subr.mxu0 0.0
  %672 = vmatpush2.msra.mxu0 %v68
  %673 = vmatprep.subr.mxu0 0.0
  %674 = vmatpush2.msra.mxu0 %v67
  %675 = vmatprep.subr.mxu0 0.0
  %676 = vmatpush2.msra.mxu0 %v66
  %677 = vmatprep.subr.mxu0 0.0
  %678 = vmatpush2.msra.mxu0 %v65
  %679 = vmatprep.subr.mxu0 0.0
  %680 = vmatpush2.msra.mxu0 %v64
  %681 = vmatprep.subr.mxu0 0.0
  %682 = vmatpush2.msra.mxu0 %v63
  %683 = vmatprep.subr.mxu0 0.0
  %684 = vmatpush2.msra.mxu0 %v62
  %685 = vmatprep.mubr.f32.mxu0 %v499
  %686 = vmatmul.mubr.f32.gmra.mxu0 %v498
  %v687 = vpop.f32.mrf.mxu0
  %v688 = vadd.f32 %v603, %v687
  %v689 = vpop.f32.mrf.mxu0
  %690 = vmatprep.mubr.f32.mxu0 %v506
  %691 = vmatmul.mubr.f32.gmra.mxu0 %v505
  %v692 = vpop.f32.mrf.mxu0
  %v693 = vadd.f32 %v608, %v692
  %v694 = vpop.f32.mrf.mxu0
  %695 = vmatprep.mubr.f32.mxu0 %v513
  %696 = vmatmul.mubr.f32.gmra.mxu0 %v512
  %v697 = vpop.f32.mrf.mxu0
  %v698 = vadd.f32 %v613, %v697
  %v699 = vpop.f32.mrf.mxu0
  %700 = vmatprep.mubr.f32.mxu0 %v520
  %701 = vmatmul.mubr.f32.gmra.mxu0 %v519
  %v702 = vpop.f32.mrf.mxu0
  %v703 = vadd.f32 %v618, %v702
  %v704 = vpop.f32.mrf.mxu0
  %705 = vdwg.mxu0
  %706 = vmatprep.subr.mxu0 0.0
  %707 = vmatpush1.msra.mxu0 %v93
  %708 = vmatprep.subr.mxu0 0.0
  %709 = vmatpush1.msra.mxu0 %v92
  %710 = vmatprep.subr.mxu0 0.0
  %711 = vmatpush1.msra.mxu0 %v91
  %712 = vmatprep.subr.mxu0 0.0
  %713 = vmatpush1.msra.mxu0 %v90
  %714 = vmatprep.subr.mxu0 0.0
  %715 = vmatpush1.msra.mxu0 %v89
  %716 = vmatprep.subr.mxu0 0.0
  %717 = vmatpush1.msra.mxu0 %v88
  %718 = vmatprep.subr.mxu0 0.0
  %719 = vmatpush1.msra.mxu0 %v87
  %720 = vmatprep.subr.mxu0 0.0
  %721 = vmatpush1.msra.mxu0 %v86
  %722 = vmatprep.subr.mxu0 0.0
  %723 = vmatpush1.msra.mxu0 %v85
  %724 = vmatprep.subr.mxu0 0.0
  %725 = vmatpush1.msra.mxu0 %v84
  %726 = vmatprep.subr.mxu0 0.0
  %727 = vmatpush1.msra.mxu0 %v83
  %728 = vmatprep.subr.mxu0 0.0
  %729 = vmatpush1.msra.mxu0 %v82
  %730 = vmatprep.subr.mxu0 0.0
  %731 = vmatpush1.msra.mxu0 %v81
  %732 = vmatprep.subr.mxu0 0.0
  %733 = vmatpush1.msra.mxu0 %v80
  %734 = vmatprep.subr.mxu0 0.0
  %735 = vmatpush1.msra.mxu0 %v79
  %736 = vmatprep.subr.mxu0 0.0
  %737 = vmatpush1.msra.mxu0 %v78
  %738 = vmatprep.subr.mxu0 0.0
  %739 = vmatpush2.msra.mxu0 %v109
  %740 = vmatprep.subr.mxu0 0.0
  %741 = vmatpush2.msra.mxu0 %v108
  %742 = vmatprep.subr.mxu0 0.0
  %743 = vmatpush2.msra.mxu0 %v107
  %744 = vmatprep.subr.mxu0 0.0
  %745 = vmatpush2.msra.mxu0 %v106
  %746 = vmatprep.subr.mxu0 0.0
  %747 = vmatpush2.msra.mxu0 %v105
  %748 = vmatprep.subr.mxu0 0.0
  %749 = vmatpush2.msra.mxu0 %v104
  %750 = vmatprep.subr.mxu0 0.0
  %751 = vmatpush2.msra.mxu0 %v103
  %752 = vmatprep.subr.mxu0 0.0
  %753 = vmatpush2.msra.mxu0 %v102
  %754 = vmatprep.subr.mxu0 0.0
  %755 = vmatpush2.msra.mxu0 %v101
  %756 = vmatprep.subr.mxu0 0.0
  %757 = vmatpush2.msra.mxu0 %v100
  %758 = vmatprep.subr.mxu0 0.0
  %759 = vmatpush2.msra.mxu0 %v99
  %760 = vmatprep.subr.mxu0 0.0
  %761 = vmatpush2.msra.mxu0 %v98
  %762 = vmatprep.subr.mxu0 0.0
  %763 = vmatpush2.msra.mxu0 %v97
  %764 = vmatprep.subr.mxu0 0.0
  %765 = vmatpush2.msra.mxu0 %v96
  %766 = vmatprep.subr.mxu0 0.0
  %767 = vmatpush2.msra.mxu0 %v95
  %768 = vmatprep.subr.mxu0 0.0
  %769 = vmatpush2.msra.mxu0 %v94
  %770 = vmatprep.mubr.f32.mxu0 %v501
  %771 = vmatmul.mubr.f32.gmra.mxu0 %v500
  %v772 = vpop.f32.mrf.mxu0
  %v773 = vadd.f32 %v688, %v772
  %v774 = vpop.f32.mrf.mxu0
  %775 = vmatprep.mubr.f32.mxu0 %v508
  %776 = vmatmul.mubr.f32.gmra.mxu0 %v507
  %v777 = vpop.f32.mrf.mxu0
  %v778 = vadd.f32 %v693, %v777
  %v779 = vpop.f32.mrf.mxu0
  %780 = vmatprep.mubr.f32.mxu0 %v515
  %781 = vmatmul.mubr.f32.gmra.mxu0 %v514
  %v782 = vpop.f32.mrf.mxu0
  %v783 = vadd.f32 %v698, %v782
  %v784 = vpop.f32.mrf.mxu0
  %785 = vmatprep.mubr.f32.mxu0 %v522
  %786 = vmatmul.mubr.f32.gmra.mxu0 %v521
  %v787 = vpop.f32.mrf.mxu0
  %v788 = vadd.f32 %v703, %v787
  %v789 = vpop.f32.mrf.mxu0
  %790 = vdwg.mxu0
  %791 = vmatprep.subr.mxu0 0.0
  %792 = vmatpush1.msra.mxu0 0.0
  %793 = vmatprep.subr.mxu0 0.0
  %794 = vmatpush1.msra.mxu0 0.0
  %795 = vmatprep.subr.mxu0 0.0
  %796 = vmatpush1.msra.mxu0 0.0
  %797 = vmatprep.subr.mxu0 0.0
  %798 = vmatpush1.msra.mxu0 0.0
  %799 = vmatprep.subr.mxu0 0.0
  %800 = vmatpush1.msra.mxu0 0.0
  %801 = vmatprep.subr.mxu0 0.0
  %802 = vmatpush1.msra.mxu0 0.0
  %803 = vmatprep.subr.mxu0 0.0
  %804 = vmatpush1.msra.mxu0 0.0
  %805 = vmatprep.subr.mxu0 0.0
  %806 = vmatpush1.msra.mxu0 0.0
  %807 = vmatprep.subr.mxu0 0.0
  %808 = vmatpush1.msra.mxu0 0.0
  %809 = vmatprep.subr.mxu0 0.0
  %810 = vmatpush1.msra.mxu0 0.0
  %811 = vmatprep.subr.mxu0 0.0
  %812 = vmatpush1.msra.mxu0 0.0
  %813 = vmatprep.subr.mxu0 0.0
  %814 = vmatpush1.msra.mxu0 0.0
  %815 = vmatprep.subr.mxu0 0.0
  %816 = vmatpush1.msra.mxu0 %v113
  %817 = vmatprep.subr.mxu0 0.0
  %818 = vmatpush1.msra.mxu0 %v112
  %819 = vmatprep.subr.mxu0 0.0
  %820 = vmatpush1.msra.mxu0 %v111
  %821 = vmatprep.subr.mxu0 0.0
  %822 = vmatpush1.msra.mxu0 %v110
  %823 = vmatprep.subr.mxu0 0.0
  %824 = vmatpush2.msra.mxu0 0.0
  %825 = vmatprep.subr.mxu0 0.0
  %826 = vmatpush2.msra.mxu0 0.0
  %827 = vmatprep.subr.mxu0 0.0
  %828 = vmatpush2.msra.mxu0 0.0
  %829 = vmatprep.subr.mxu0 0.0
  %830 = vmatpush2.msra.mxu0 0.0
  %831 = vmatprep.subr.mxu0 0.0
  %832 = vmatpush2.msra.mxu0 0.0
  %833 = vmatprep.subr.mxu0 0.0
  %834 = vmatpush2.msra.mxu0 0.0
  %835 = vmatprep.subr.mxu0 0.0
  %836 = vmatpush2.msra.mxu0 0.0
  %837 = vmatprep.subr.mxu0 0.0
  %838 = vmatpush2.msra.mxu0 0.0
  %839 = vmatprep.subr.mxu0 0.0
  %840 = vmatpush2.msra.mxu0 0.0
  %841 = vmatprep.subr.mxu0 0.0
  %842 = vmatpush2.msra.mxu0 0.0
  %843 = vmatprep.subr.mxu0 0.0
  %844 = vmatpush2.msra.mxu0 0.0
  %845 = vmatprep.subr.mxu0 0.0
  %846 = vmatpush2.msra.mxu0 0.0
  %847 = vmatprep.subr.mxu0 0.0
  %848 = vmatpush2.msra.mxu0 0.0
  %849 = vmatprep.subr.mxu0 0.0
  %850 = vmatpush2.msra.mxu0 0.0
  %851 = vmatprep.subr.mxu0 0.0
  %852 = vmatpush2.msra.mxu0 0.0
  %853 = vmatprep.subr.mxu0 0.0
  %854 = vmatpush2.msra.mxu0 0.0
  %855 = vmatprep.mubr.f32.mxu0 0.0
  %856 = vmatmul.mubr.f32.gmra.mxu0 %v525
  %v857 = vpop.f32.mrf.mxu0
  %v858 = vadd.f32 %v773, %v857
  %v859 = vpop.f32.mrf.mxu0
  %860 = vmatprep.mubr.f32.mxu0 0.0
  %861 = vmatmul.mubr.f32.gmra.mxu0 %v528
  %v862 = vpop.f32.mrf.mxu0
  %v863 = vadd.f32 %v778, %v862
  %v864 = vpop.f32.mrf.mxu0
  %865 = vmatprep.mubr.f32.mxu0 0.0
  %866 = vmatmul.mubr.f32.gmra.mxu0 %v531
  %v867 = vpop.f32.mrf.mxu0
  %v868 = vadd.f32 %v783, %v867
  %v869 = vpop.f32.mrf.mxu0
  %870 = vmatprep.mubr.f32.mxu0 0.0
  %871 = vmatmul.mubr.f32.gmra.mxu0 %v534
  %v872 = vpop.f32.mrf.mxu0
  %v873 = vadd.f32 %v788, %v872
  %v874 = vpop.f32.mrf.mxu0
  %875 = vdwg.mxu0
  %s876 = scalar_lea.vmem %s0, 448
  %v877 = vld [vmem:[%s876] sm:$0xff]
  %v878 = vld [vmem:[%s876 + $0x8] sm:$0xff]
  %v879 = vld [vmem:[%s876 + $0x10] sm:$0xff]
  %v880 = vld [vmem:[%s876 + $0x18] sm:$0xff]
  %v881 = vld [vmem:[%s876 + $0x20] sm:$0xff]
  %v882 = vld [vmem:[%s876 + $0x28] sm:$0xff]
  %v883 = vld [vmem:[%s876 + $0x30] sm:$0xff]
  %v884 = vld [vmem:[%s876 + $0x38] sm:$0xff]
  %v885 = vld [vmem:[%s876 + $0x40] sm:$0xff]
  %v886 = vld [vmem:[%s876 + $0x48] sm:$0xff]
  %v887 = vld [vmem:[%s876 + $0x50] sm:$0xff]
  %v888 = vld [vmem:[%s876 + $0x58] sm:$0xff]
  %v889 = vld [vmem:[%s876 + $0x60] sm:$0xff]
  %v890 = vld [vmem:[%s876 + $0x68] sm:$0xff]
  %v891 = vld [vmem:[%s876 + $0x70] sm:$0xff]
  %v892 = vld [vmem:[%s876 + $0x78] sm:$0xff]
  %v893 = vld [vmem:[%s876 + $0x80] sm:$0xff]
  %v894 = vld [vmem:[%s876 + $0x88] sm:$0xff]
  %v895 = vld [vmem:[%s876 + $0x90] sm:$0xff]
  %v896 = vld [vmem:[%s876 + $0x98] sm:$0xff]
  %v897 = vld [vmem:[%s876 + $0xa0] sm:$0xff]
  %v898 = vld [vmem:[%s876 + $0xa8] sm:$0xff]
  %v899 = vld [vmem:[%s876 + $0xb0] sm:$0xff]
  %v900 = vld [vmem:[%s876 + $0xb8] sm:$0xff]
  %v901 = vld [vmem:[%s876 + $0xc0] sm:$0xff]
  %v902 = vld [vmem:[%s876 + $0xc8] sm:$0xff]
  %v903 = vld [vmem:[%s876 + $0xd0] sm:$0xff]
  %v904 = vld [vmem:[%s876 + $0xd8] sm:$0xff]
  %v906 = vsel %vm142, %v883, 0
  %v909 = vsel %vm142, %v890, 0
  %v912 = vsel %vm142, %v897, 0
  %v915 = vsel %vm142, %v904, 0
  %917 = vmatprep.subr.mxu0 0.0
  %918 = vmatpush1.msra.mxu0 %v29
  %919 = vmatprep.subr.mxu0 0.0
  %920 = vmatpush1.msra.mxu0 %v28
  %921 = vmatprep.subr.mxu0 0.0
  %922 = vmatpush1.msra.mxu0 %v27
  %923 = vmatprep.subr.mxu0 0.0
  %924 = vmatpush1.msra.mxu0 %v26
  %925 = vmatprep.subr.mxu0 0.0
  %926 = vmatpush1.msra.mxu0 %v25
  %927 = vmatprep.subr.mxu0 0.0
  %928 = vmatpush1.msra.mxu0 %v24
  %929 = vmatprep.subr.mxu0 0.0
  %930 = vmatpush1.msra.mxu0 %v23
  %931 = vmatprep.subr.mxu0 0.0
  %932 = vmatpush1.msra.mxu0 %v22
  %933 = vmatprep.subr.mxu0 0.0
  %934 = vmatpush1.msra.mxu0 %v21
  %935 = vmatprep.subr.mxu0 0.0
  %936 = vmatpush1.msra.mxu0 %v20
  %937 = vmatprep.subr.mxu0 0.0
  %938 = vmatpush1.msra.mxu0 %v19
  %939 = vmatprep.subr.mxu0 0.0
  %940 = vmatpush1.msra.mxu0 %v18
  %941 = vmatprep.subr.mxu0 0.0
  %942 = vmatpush1.msra.mxu0 %v17
  %943 = vmatprep.subr.mxu0 0.0
  %944 = vmatpush1.msra.mxu0 %v16
  %945 = vmatprep.subr.mxu0 0.0
  %946 = vmatpush1.msra.mxu0 %v15
  %947 = vmatprep.subr.mxu0 0.0
  %948 = vmatpush1.msra.mxu0 %v14
  %949 = vmatprep.subr.mxu0 0.0
  %950 = vmatpush2.msra.mxu0 %v45
  %951 = vmatprep.subr.mxu0 0.0
  %952 = vmatpush2.msra.mxu0 %v44
  %953 = vmatprep.subr.mxu0 0.0
  %954 = vmatpush2.msra.mxu0 %v43
  %955 = vmatprep.subr.mxu0 0.0
  %956 = vmatpush2.msra.mxu0 %v42
  %957 = vmatprep.subr.mxu0 0.0
  %958 = vmatpush2.msra.mxu0 %v41
  %959 = vmatprep.subr.mxu0 0.0
  %960 = vmatpush2.msra.mxu0 %v40
  %961 = vmatprep.subr.mxu0 0.0
  %962 = vmatpush2.msra.mxu0 %v39
  %963 = vmatprep.subr.mxu0 0.0
  %964 = vmatpush2.msra.mxu0 %v38
  %965 = vmatprep.subr.mxu0 0.0
  %966 = vmatpush2.msra.mxu0 %v37
  %967 = vmatprep.subr.mxu0 0.0
  %968 = vmatpush2.msra.mxu0 %v36
  %969 = vmatprep.subr.mxu0 0.0
  %970 = vmatpush2.msra.mxu0 %v35
  %971 = vmatprep.subr.mxu0 0.0
  %972 = vmatpush2.msra.mxu0 %v34
  %973 = vmatprep.subr.mxu0 0.0
  %974 = vmatpush2.msra.mxu0 %v33
  %975 = vmatprep.subr.mxu0 0.0
  %976 = vmatpush2.msra.mxu0 %v32
  %977 = vmatprep.subr.mxu0 0.0
  %978 = vmatpush2.msra.mxu0 %v31
  %979 = vmatprep.subr.mxu0 0.0
  %980 = vmatpush2.msra.mxu0 %v30
  %981 = vmatprep.mubr.f32.mxu0 %v878
  %982 = vmatmul.mubr.f32.gmra.mxu0 %v877
  %v983 = vpop.f32.mrf.mxu0
  %v984 = vadd.f32 0.0, %v983
  %v985 = vpop.f32.mrf.mxu0
  %986 = vmatprep.mubr.f32.mxu0 %v885
  %987 = vmatmul.mubr.f32.gmra.mxu0 %v884
  %v988 = vpop.f32.mrf.mxu0
  %v989 = vadd.f32 0.0, %v988
  %v990 = vpop.f32.mrf.mxu0
  %991 = vmatprep.mubr.f32.mxu0 %v892
  %992 = vmatmul.mubr.f32.gmra.mxu0 %v891
  %v993 = vpop.f32.mrf.mxu0
  %v994 = vadd.f32 0.0, %v993
  %v995 = vpop.f32.mrf.mxu0
  %996 = vmatprep.mubr.f32.mxu0 %v899
  %997 = vmatmul.mubr.f32.gmra.mxu0 %v898
  %v998 = vpop.f32.mrf.mxu0
  %v999 = vadd.f32 0.0, %v998
  %v1000 = vpop.f32.mrf.mxu0
  %1001 = vdwg.mxu0
  %1002 = vmatprep.subr.mxu0 0.0
  %1003 = vmatpush1.msra.mxu0 %v61
  %1004 = vmatprep.subr.mxu0 0.0
  %1005 = vmatpush1.msra.mxu0 %v60
  %1006 = vmatprep.subr.mxu0 0.0
  %1007 = vmatpush1.msra.mxu0 %v59
  %1008 = vmatprep.subr.mxu0 0.0
  %1009 = vmatpush1.msra.mxu0 %v58
  %1010 = vmatprep.subr.mxu0 0.0
  %1011 = vmatpush1.msra.mxu0 %v57
  %1012 = vmatprep.subr.mxu0 0.0
  %1013 = vmatpush1.msra.mxu0 %v56
  %1014 = vmatprep.subr.mxu0 0.0
  %1015 = vmatpush1.msra.mxu0 %v55
  %1016 = vmatprep.subr.mxu0 0.0
  %1017 = vmatpush1.msra.mxu0 %v54
  %1018 = vmatprep.subr.mxu0 0.0
  %1019 = vmatpush1.msra.mxu0 %v53
  %1020 = vmatprep.subr.mxu0 0.0
  %1021 = vmatpush1.msra.mxu0 %v52
  %1022 = vmatprep.subr.mxu0 0.0
  %1023 = vmatpush1.msra.mxu0 %v51
  %1024 = vmatprep.subr.mxu0 0.0
  %1025 = vmatpush1.msra.mxu0 %v50
  %1026 = vmatprep.subr.mxu0 0.0
  %1027 = vmatpush1.msra.mxu0 %v49
  %1028 = vmatprep.subr.mxu0 0.0
  %1029 = vmatpush1.msra.mxu0 %v48
  %1030 = vmatprep.subr.mxu0 0.0
  %1031 = vmatpush1.msra.mxu0 %v47
  %1032 = vmatprep.subr.mxu0 0.0
  %1033 = vmatpush1.msra.mxu0 %v46
  %1034 = vmatprep.subr.mxu0 0.0
  %1035 = vmatpush2.msra.mxu0 %v77
  %1036 = vmatprep.subr.mxu0 0.0
  %1037 = vmatpush2.msra.mxu0 %v76
  %1038 = vmatprep.subr.mxu0 0.0
  %1039 = vmatpush2.msra.mxu0 %v75
  %1040 = vmatprep.subr.mxu0 0.0
  %1041 = vmatpush2.msra.mxu0 %v74
  %1042 = vmatprep.subr.mxu0 0.0
  %1043 = vmatpush2.msra.mxu0 %v73
  %1044 = vmatprep.subr.mxu0 0.0
  %1045 = vmatpush2.msra.mxu0 %v72
  %1046 = vmatprep.subr.mxu0 0.0
  %1047 = vmatpush2.msra.mxu0 %v71
  %1048 = vmatprep.subr.mxu0 0.0
  %1049 = vmatpush2.msra.mxu0 %v70
  %1050 = vmatprep.subr.mxu0 0.0
  %1051 = vmatpush2.msra.mxu0 %v69
  %1052 = vmatprep.subr.mxu0 0.0
  %1053 = vmatpush2.msra.mxu0 %v68
  %1054 = vmatprep.subr.mxu0 0.0
  %1055 = vmatpush2.msra.mxu0 %v67
  %1056 = vmatprep.subr.mxu0 0.0
  %1057 = vmatpush2.msra.mxu0 %v66
  %1058 = vmatprep.subr.mxu0 0.0
  %1059 = vmatpush2.msra.mxu0 %v65
  %1060 = vmatprep.subr.mxu0 0.0
  %1061 = vmatpush2.msra.mxu0 %v64
  %1062 = vmatprep.subr.mxu0 0.0
  %1063 = vmatpush2.msra.mxu0 %v63
  %1064 = vmatprep.subr.mxu0 0.0
  %1065 = vmatpush2.msra.mxu0 %v62
  %1066 = vmatprep.mubr.f32.mxu0 %v880
  %1067 = vmatmul.mubr.f32.gmra.mxu0 %v879
  %v1068 = vpop.f32.mrf.mxu0
  %v1069 = vadd.f32 %v984, %v1068
  %v1070 = vpop.f32.mrf.mxu0
  %1071 = vmatprep.mubr.f32.mxu0 %v887
  %1072 = vmatmul.mubr.f32.gmra.mxu0 %v886
  %v1073 = vpop.f32.mrf.mxu0
  %v1074 = vadd.f32 %v989, %v1073
  %v1075 = vpop.f32.mrf.mxu0
  %1076 = vmatprep.mubr.f32.mxu0 %v894
  %1077 = vmatmul.mubr.f32.gmra.mxu0 %v893
  %v1078 = vpop.f32.mrf.mxu0
  %v1079 = vadd.f32 %v994, %v1078
  %v1080 = vpop.f32.mrf.mxu0
  %1081 = vmatprep.mubr.f32.mxu0 %v901
  %1082 = vmatmul.mubr.f32.gmra.mxu0 %v900
  %v1083 = vpop.f32.mrf.mxu0
  %v1084 = vadd.f32 %v999, %v1083
  %v1085 = vpop.f32.mrf.mxu0
  %1086 = vdwg.mxu0
  %1087 = vmatprep.subr.mxu0 0.0
  %1088 = vmatpush1.msra.mxu0 %v93
  %1089 = vmatprep.subr.mxu0 0.0
  %1090 = vmatpush1.msra.mxu0 %v92
  %1091 = vmatprep.subr.mxu0 0.0
  %1092 = vmatpush1.msra.mxu0 %v91
  %1093 = vmatprep.subr.mxu0 0.0
  %1094 = vmatpush1.msra.mxu0 %v90
  %1095 = vmatprep.subr.mxu0 0.0
  %1096 = vmatpush1.msra.mxu0 %v89
  %1097 = vmatprep.subr.mxu0 0.0
  %1098 = vmatpush1.msra.mxu0 %v88
  %1099 = vmatprep.subr.mxu0 0.0
  %1100 = vmatpush1.msra.mxu0 %v87
  %1101 = vmatprep.subr.mxu0 0.0
  %1102 = vmatpush1.msra.mxu0 %v86
  %1103 = vmatprep.subr.mxu0 0.0
  %1104 = vmatpush1.msra.mxu0 %v85
  %1105 = vmatprep.subr.mxu0 0.0
  %1106 = vmatpush1.msra.mxu0 %v84
  %1107 = vmatprep.subr.mxu0 0.0
  %1108 = vmatpush1.msra.mxu0 %v83
  %1109 = vmatprep.subr.mxu0 0.0
  %1110 = vmatpush1.msra.mxu0 %v82
  %1111 = vmatprep.subr.mxu0 0.0
  %1112 = vmatpush1.msra.mxu0 %v81
  %1113 = vmatprep.subr.mxu0 0.0
  %1114 = vmatpush1.msra.mxu0 %v80
  %1115 = vmatprep.subr.mxu0 0.0
  %1116 = vmatpush1.msra.mxu0 %v79
  %1117 = vmatprep.subr.mxu0 0.0
  %1118 = vmatpush1.msra.mxu0 %v78
  %1119 = vmatprep.subr.mxu0 0.0
  %1120 = vmatpush2.msra.mxu0 %v109
  %1121 = vmatprep.subr.mxu0 0.0
  %1122 = vmatpush2.msra.mxu0 %v108
  %1123 = vmatprep.subr.mxu0 0.0
  %1124 = vmatpush2.msra.mxu0 %v107
  %1125 = vmatprep.subr.mxu0 0.0
  %1126 = vmatpush2.msra.mxu0 %v106
  %1127 = vmatprep.subr.mxu0 0.0
  %1128 = vmatpush2.msra.mxu0 %v105
  %1129 = vmatprep.subr.mxu0 0.0
  %1130 = vmatpush2.msra.mxu0 %v104
  %1131 = vmatprep.subr.mxu0 0.0
  %1132 = vmatpush2.msra.mxu0 %v103
  %1133 = vmatprep.subr.mxu0 0.0
  %1134 = vmatpush2.msra.mxu0 %v102
  %1135 = vmatprep.subr.mxu0 0.0
  %1136 = vmatpush2.msra.mxu0 %v101
  %1137 = vmatprep.subr.mxu0 0.0
  %1138 = vmatpush2.msra.mxu0 %v100
  %1139 = vmatprep.subr.mxu0 0.0
  %1140 = vmatpush2.msra.mxu0 %v99
  %1141 = vmatprep.subr.mxu0 0.0
  %1142 = vmatpush2.msra.mxu0 %v98
  %1143 = vmatprep.subr.mxu0 0.0
  %1144 = vmatpush2.msra.mxu0 %v97
  %1145 = vmatprep.subr.mxu0 0.0
  %1146 = vmatpush2.msra.mxu0 %v96
  %1147 = vmatprep.subr.mxu0 0.0
  %1148 = vmatpush2.msra.mxu0 %v95
  %1149 = vmatprep.subr.mxu0 0.0
  %1150 = vmatpush2.msra.mxu0 %v94
  %1151 = vmatprep.mubr.f32.mxu0 %v882
  %1152 = vmatmul.mubr.f32.gmra.mxu0 %v881
  %v1153 = vpop.f32.mrf.mxu0
  %v1154 = vadd.f32 %v1069, %v1153
  %v1155 = vpop.f32.mrf.mxu0
  %1156 = vmatprep.mubr.f32.mxu0 %v889
  %1157 = vmatmul.mubr.f32.gmra.mxu0 %v888
  %v1158 = vpop.f32.mrf.mxu0
  %v1159 = vadd.f32 %v1074, %v1158
  %v1160 = vpop.f32.mrf.mxu0
  %1161 = vmatprep.mubr.f32.mxu0 %v896
  %1162 = vmatmul.mubr.f32.gmra.mxu0 %v895
  %v1163 = vpop.f32.mrf.mxu0
  %v1164 = vadd.f32 %v1079, %v1163
  %v1165 = vpop.f32.mrf.mxu0
  %1166 = vmatprep.mubr.f32.mxu0 %v903
  %1167 = vmatmul.mubr.f32.gmra.mxu0 %v902
  %v1168 = vpop.f32.mrf.mxu0
  %v1169 = vadd.f32 %v1084, %v1168
  %v1170 = vpop.f32.mrf.mxu0
  %1171 = vdwg.mxu0
  %1172 = vmatprep.subr.mxu0 0.0
  %1173 = vmatpush1.msra.mxu0 0.0
  %1174 = vmatprep.subr.mxu0 0.0
  %1175 = vmatpush1.msra.mxu0 0.0
  %1176 = vmatprep.subr.mxu0 0.0
  %1177 = vmatpush1.msra.mxu0 0.0
  %1178 = vmatprep.subr.mxu0 0.0
  %1179 = vmatpush1.msra.mxu0 0.0
  %1180 = vmatprep.subr.mxu0 0.0
  %1181 = vmatpush1.msra.mxu0 0.0
  %1182 = vmatprep.subr.mxu0 0.0
  %1183 = vmatpush1.msra.mxu0 0.0
  %1184 = vmatprep.subr.mxu0 0.0
  %1185 = vmatpush1.msra.mxu0 0.0
  %1186 = vmatprep.subr.mxu0 0.0
  %1187 = vmatpush1.msra.mxu0 0.0
  %1188 = vmatprep.subr.mxu0 0.0
  %1189 = vmatpush1.msra.mxu0 0.0
  %1190 = vmatprep.subr.mxu0 0.0
  %1191 = vmatpush1.msra.mxu0 0.0
  %1192 = vmatprep.subr.mxu0 0.0
  %1193 = vmatpush1.msra.mxu0 0.0
  %1194 = vmatprep.subr.mxu0 0.0
  %1195 = vmatpush1.msra.mxu0 0.0
  %1196 = vmatprep.subr.mxu0 0.0
  %1197 = vmatpush1.msra.mxu0 %v113
  %1198 = vmatprep.subr.mxu0 0.0
  %1199 = vmatpush1.msra.mxu0 %v112
  %1200 = vmatprep.subr.mxu0 0.0
  %1201 = vmatpush1.msra.mxu0 %v111
  %1202 = vmatprep.subr.mxu0 0.0
  %1203 = vmatpush1.msra.mxu0 %v110
  %1204 = vmatprep.subr.mxu0 0.0
  %1205 = vmatpush2.msra.mxu0 0.0
  %1206 = vmatprep.subr.mxu0 0.0
  %1207 = vmatpush2.msra.mxu0 0.0
  %1208 = vmatprep.subr.mxu0 0.0
  %1209 = vmatpush2.msra.mxu0 0.0
  %1210 = vmatprep.subr.mxu0 0.0
  %1211 = vmatpush2.msra.mxu0 0.0
  %1212 = vmatprep.subr.mxu0 0.0
  %1213 = vmatpush2.msra.mxu0 0.0
  %1214 = vmatprep.subr.mxu0 0.0
  %1215 = vmatpush2.msra.mxu0 0.0
  %1216 = vmatprep.subr.mxu0 0.0
  %1217 = vmatpush2.msra.mxu0 0.0
  %1218 = vmatprep.subr.mxu0 0.0
  %1219 = vmatpush2.msra.mxu0 0.0
  %1220 = vmatprep.subr.mxu0 0.0
  %1221 = vmatpush2.msra.mxu0 0.0
  %1222 = vmatprep.subr.mxu0 0.0
  %1223 = vmatpush2.msra.mxu0 0.0
  %1224 = vmatprep.subr.mxu0 0.0
  %1225 = vmatpush2.msra.mxu0 0.0
  %1226 = vmatprep.subr.mxu0 0.0
  %1227 = vmatpush2.msra.mxu0 0.0
  %1228 = vmatprep.subr.mxu0 0.0
  %1229 = vmatpush2.msra.mxu0 0.0
  %1230 = vmatprep.subr.mxu0 0.0
  %1231 = vmatpush2.msra.mxu0 0.0
  %1232 = vmatprep.subr.mxu0 0.0
  %1233 = vmatpush2.msra.mxu0 0.0
  %1234 = vmatprep.subr.mxu0 0.0
  %1235 = vmatpush2.msra.mxu0 0.0
  %1236 = vmatprep.mubr.f32.mxu0 0.0
  %1237 = vmatmul.mubr.f32.gmra.mxu0 %v906
  %v1238 = vpop.f32.mrf.mxu0
  %v1239 = vadd.f32 %v1154, %v1238
  %v1240 = vpop.f32.mrf.mxu0
  %1241 = vmatprep.mubr.f32.mxu0 0.0
  %1242 = vmatmul.mubr.f32.gmra.mxu0 %v909
  %v1243 = vpop.f32.mrf.mxu0
  %v1244 = vadd.f32 %v1159, %v1243
  %v1245 = vpop.f32.mrf.mxu0
  %1246 = vmatprep.mubr.f32.mxu0 0.0
  %1247 = vmatmul.mubr.f32.gmra.mxu0 %v912
  %v1248 = vpop.f32.mrf.mxu0
  %v1249 = vadd.f32 %v1164, %v1248
  %v1250 = vpop.f32.mrf.mxu0
  %1251 = vmatprep.mubr.f32.mxu0 0.0
  %1252 = vmatmul.mubr.f32.gmra.mxu0 %v915
  %v1253 = vpop.f32.mrf.mxu0
  %v1254 = vadd.f32 %v1169, %v1253
  %v1255 = vpop.f32.mrf.mxu0
  %1256 = vdwg.mxu0
  %s1257 = scalar_lea.vmem %s0, 672
  %v1258 = vld [vmem:[%s1257] sm:$0xff]
  %v1259 = vld [vmem:[%s1257 + $0x8] sm:$0xff]
  %v1260 = vld [vmem:[%s1257 + $0x10] sm:$0xff]
  %v1261 = vld [vmem:[%s1257 + $0x18] sm:$0xff]
  %v1262 = vld [vmem:[%s1257 + $0x20] sm:$0xff]
  %v1263 = vld [vmem:[%s1257 + $0x28] sm:$0xff]
  %v1264 = vld [vmem:[%s1257 + $0x30] sm:$0xff]
  %v1265 = vld [vmem:[%s1257 + $0x38] sm:$0xff]
  %v1266 = vld [vmem:[%s1257 + $0x40] sm:$0xff]
  %v1267 = vld [vmem:[%s1257 + $0x48] sm:$0xff]
  %v1268 = vld [vmem:[%s1257 + $0x50] sm:$0xff]
  %v1269 = vld [vmem:[%s1257 + $0x58] sm:$0xff]
  %v1270 = vld [vmem:[%s1257 + $0x60] sm:$0xff]
  %v1271 = vld [vmem:[%s1257 + $0x68] sm:$0xff]
  %v1272 = vld [vmem:[%s1257 + $0x70] sm:$0xff]
  %v1273 = vld [vmem:[%s1257 + $0x78] sm:$0xff]
  %v1274 = vld [vmem:[%s1257 + $0x80] sm:$0xff]
  %v1275 = vld [vmem:[%s1257 + $0x88] sm:$0xff]
  %v1276 = vld [vmem:[%s1257 + $0x90] sm:$0xff]
  %v1277 = vld [vmem:[%s1257 + $0x98] sm:$0xff]
  %v1278 = vld [vmem:[%s1257 + $0xa0] sm:$0xff]
  %v1279 = vld [vmem:[%s1257 + $0xa8] sm:$0xff]
  %v1280 = vld [vmem:[%s1257 + $0xb0] sm:$0xff]
  %v1281 = vld [vmem:[%s1257 + $0xb8] sm:$0xff]
  %v1282 = vld [vmem:[%s1257 + $0xc0] sm:$0xff]
  %v1283 = vld [vmem:[%s1257 + $0xc8] sm:$0xff]
  %v1284 = vld [vmem:[%s1257 + $0xd0] sm:$0xff]
  %v1285 = vld [vmem:[%s1257 + $0xd8] sm:$0xff]
  %v1287 = vsel %vm142, %v1264, 0
  %v1290 = vsel %vm142, %v1271, 0
  %v1293 = vsel %vm142, %v1278, 0
  %v1296 = vsel %vm142, %v1285, 0
  %1298 = vmatprep.subr.mxu0 0.0
  %1299 = vmatpush1.msra.mxu0 %v29
  %1300 = vmatprep.subr.mxu0 0.0
  %1301 = vmatpush1.msra.mxu0 %v28
  %1302 = vmatprep.subr.mxu0 0.0
  %1303 = vmatpush1.msra.mxu0 %v27
  %1304 = vmatprep.subr.mxu0 0.0
  %1305 = vmatpush1.msra.mxu0 %v26
  %1306 = vmatprep.subr.mxu0 0.0
  %1307 = vmatpush1.msra.mxu0 %v25
  %1308 = vmatprep.subr.mxu0 0.0
  %1309 = vmatpush1.msra.mxu0 %v24
  %1310 = vmatprep.subr.mxu0 0.0
  %1311 = vmatpush1.msra.mxu0 %v23
  %1312 = vmatprep.subr.mxu0 0.0
  %1313 = vmatpush1.msra.mxu0 %v22
  %1314 = vmatprep.subr.mxu0 0.0
  %1315 = vmatpush1.msra.mxu0 %v21
  %1316 = vmatprep.subr.mxu0 0.0
  %1317 = vmatpush1.msra.mxu0 %v20
  %1318 = vmatprep.subr.mxu0 0.0
  %1319 = vmatpush1.msra.mxu0 %v19
  %1320 = vmatprep.subr.mxu0 0.0
  %1321 = vmatpush1.msra.mxu0 %v18
  %1322 = vmatprep.subr.mxu0 0.0
  %1323 = vmatpush1.msra.mxu0 %v17
  %1324 = vmatprep.subr.mxu0 0.0
  %1325 = vmatpush1.msra.mxu0 %v16
  %1326 = vmatprep.subr.mxu0 0.0
  %1327 = vmatpush1.msra.mxu0 %v15
  %1328 = vmatprep.subr.mxu0 0.0
  %1329 = vmatpush1.msra.mxu0 %v14
  %1330 = vmatprep.subr.mxu0 0.0
  %1331 = vmatpush2.msra.mxu0 %v45
  %1332 = vmatprep.subr.mxu0 0.0
  %1333 = vmatpush2.msra.mxu0 %v44
  %1334 = vmatprep.subr.mxu0 0.0
  %1335 = vmatpush2.msra.mxu0 %v43
  %1336 = vmatprep.subr.mxu0 0.0
  %1337 = vmatpush2.msra.mxu0 %v42
  %1338 = vmatprep.subr.mxu0 0.0
  %1339 = vmatpush2.msra.mxu0 %v41
  %1340 = vmatprep.subr.mxu0 0.0
  %1341 = vmatpush2.msra.mxu0 %v40
  %1342 = vmatprep.subr.mxu0 0.0
  %1343 = vmatpush2.msra.mxu0 %v39
  %1344 = vmatprep.subr.mxu0 0.0
  %1345 = vmatpush2.msra.mxu0 %v38
  %1346 = vmatprep.subr.mxu0 0.0
  %1347 = vmatpush2.msra.mxu0 %v37
  %1348 = vmatprep.subr.mxu0 0.0
  %1349 = vmatpush2.msra.mxu0 %v36
  %1350 = vmatprep.subr.mxu0 0.0
  %1351 = vmatpush2.msra.mxu0 %v35
  %1352 = vmatprep.subr.mxu0 0.0
  %1353 = vmatpush2.msra.mxu0 %v34
  %1354 = vmatprep.subr.mxu0 0.0
  %1355 = vmatpush2.msra.mxu0 %v33
  %1356 = vmatprep.subr.mxu0 0.0
  %1357 = vmatpush2.msra.mxu0 %v32
  %1358 = vmatprep.subr.mxu0 0.0
  %1359 = vmatpush2.msra.mxu0 %v31
  %1360 = vmatprep.subr.mxu0 0.0
  %1361 = vmatpush2.msra.mxu0 %v30
  %1362 = vmatprep.mubr.f32.mxu0 %v1259
  %1363 = vmatmul.mubr.f32.gmra.mxu0 %v1258
  %v1364 = vpop.f32.mrf.mxu0
  %v1365 = vadd.f32 0.0, %v1364
  %v1366 = vpop.f32.mrf.mxu0
  %1367 = vmatprep.mubr.f32.mxu0 %v1266
  %1368 = vmatmul.mubr.f32.gmra.mxu0 %v1265
  %v1369 = vpop.f32.mrf.mxu0
  %v1370 = vadd.f32 0.0, %v1369
  %v1371 = vpop.f32.mrf.mxu0
  %1372 = vmatprep.mubr.f32.mxu0 %v1273
  %1373 = vmatmul.mubr.f32.gmra.mxu0 %v1272
  %v1374 = vpop.f32.mrf.mxu0
  %v1375 = vadd.f32 0.0, %v1374
  %v1376 = vpop.f32.mrf.mxu0
  %1377 = vmatprep.mubr.f32.mxu0 %v1280
  %1378 = vmatmul.mubr.f32.gmra.mxu0 %v1279
  %v1379 = vpop.f32.mrf.mxu0
  %v1380 = vadd.f32 0.0, %v1379
  %v1381 = vpop.f32.mrf.mxu0
  %1382 = vdwg.mxu0
  %1383 = vmatprep.subr.mxu0 0.0
  %1384 = vmatpush1.msra.mxu0 %v61
  %1385 = vmatprep.subr.mxu0 0.0
  %1386 = vmatpush1.msra.mxu0 %v60
  %1387 = vmatprep.subr.mxu0 0.0
  %1388 = vmatpush1.msra.mxu0 %v59
  %1389 = vmatprep.subr.mxu0 0.0
  %1390 = vmatpush1.msra.mxu0 %v58
  %1391 = vmatprep.subr.mxu0 0.0
  %1392 = vmatpush1.msra.mxu0 %v57
  %1393 = vmatprep.subr.mxu0 0.0
  %1394 = vmatpush1.msra.mxu0 %v56
  %1395 = vmatprep.subr.mxu0 0.0
  %1396 = vmatpush1.msra.mxu0 %v55
  %1397 = vmatprep.subr.mxu0 0.0
  %1398 = vmatpush1.msra.mxu0 %v54
  %1399 = vmatprep.subr.mxu0 0.0
  %1400 = vmatpush1.msra.mxu0 %v53
  %1401 = vmatprep.subr.mxu0 0.0
  %1402 = vmatpush1.msra.mxu0 %v52
  %1403 = vmatprep.subr.mxu0 0.0
  %1404 = vmatpush1.msra.mxu0 %v51
  %1405 = vmatprep.subr.mxu0 0.0
  %1406 = vmatpush1.msra.mxu0 %v50
  %1407 = vmatprep.subr.mxu0 0.0
  %1408 = vmatpush1.msra.mxu0 %v49
  %1409 = vmatprep.subr.mxu0 0.0
  %1410 = vmatpush1.msra.mxu0 %v48
  %1411 = vmatprep.subr.mxu0 0.0
  %1412 = vmatpush1.msra.mxu0 %v47
  %1413 = vmatprep.subr.mxu0 0.0
  %1414 = vmatpush1.msra.mxu0 %v46
  %1415 = vmatprep.subr.mxu0 0.0
  %1416 = vmatpush2.msra.mxu0 %v77
  %1417 = vmatprep.subr.mxu0 0.0
  %1418 = vmatpush2.msra.mxu0 %v76
  %1419 = vmatprep.subr.mxu0 0.0
  %1420 = vmatpush2.msra.mxu0 %v75
  %1421 = vmatprep.subr.mxu0 0.0
  %1422 = vmatpush2.msra.mxu0 %v74
  %1423 = vmatprep.subr.mxu0 0.0
  %1424 = vmatpush2.msra.mxu0 %v73
  %1425 = vmatprep.subr.mxu0 0.0
  %1426 = vmatpush2.msra.mxu0 %v72
  %1427 = vmatprep.subr.mxu0 0.0
  %1428 = vmatpush2.msra.mxu0 %v71
  %1429 = vmatprep.subr.mxu0 0.0
  %1430 = vmatpush2.msra.mxu0 %v70
  %1431 = vmatprep.subr.mxu0 0.0
  %1432 = vmatpush2.msra.mxu0 %v69
  %1433 = vmatprep.subr.mxu0 0.0
  %1434 = vmatpush2.msra.mxu0 %v68
  %1435 = vmatprep.subr.mxu0 0.0
  %1436 = vmatpush2.msra.mxu0 %v67
  %1437 = vmatprep.subr.mxu0 0.0
  %1438 = vmatpush2.msra.mxu0 %v66
  %1439 = vmatprep.subr.mxu0 0.0
  %1440 = vmatpush2.msra.mxu0 %v65
  %1441 = vmatprep.subr.mxu0 0.0
  %1442 = vmatpush2.msra.mxu0 %v64
  %1443 = vmatprep.subr.mxu0 0.0
  %1444 = vmatpush2.msra.mxu0 %v63
  %1445 = vmatprep.subr.mxu0 0.0
  %1446 = vmatpush2.msra.mxu0 %v62
  %1447 = vmatprep.mubr.f32.mxu0 %v1261
  %1448 = vmatmul.mubr.f32.gmra.mxu0 %v1260
  %v1449 = vpop.f32.mrf.mxu0
  %v1450 = vadd.f32 %v1365, %v1449
  %v1451 = vpop.f32.mrf.mxu0
  %1452 = vmatprep.mubr.f32.mxu0 %v1268
  %1453 = vmatmul.mubr.f32.gmra.mxu0 %v1267
  %v1454 = vpop.f32.mrf.mxu0
  %v1455 = vadd.f32 %v1370, %v1454
  %v1456 = vpop.f32.mrf.mxu0
  %1457 = vmatprep.mubr.f32.mxu0 %v1275
  %1458 = vmatmul.mubr.f32.gmra.mxu0 %v1274
  %v1459 = vpop.f32.mrf.mxu0
  %v1460 = vadd.f32 %v1375, %v1459
  %v1461 = vpop.f32.mrf.mxu0
  %1462 = vmatprep.mubr.f32.mxu0 %v1282
  %1463 = vmatmul.mubr.f32.gmra.mxu0 %v1281
  %v1464 = vpop.f32.mrf.mxu0
  %v1465 = vadd.f32 %v1380, %v1464
  %v1466 = vpop.f32.mrf.mxu0
  %1467 = vdwg.mxu0
  %1468 = vmatprep.subr.mxu0 0.0
  %1469 = vmatpush1.msra.mxu0 %v93
  %1470 = vmatprep.subr.mxu0 0.0
  %1471 = vmatpush1.msra.mxu0 %v92
  %1472 = vmatprep.subr.mxu0 0.0
  %1473 = vmatpush1.msra.mxu0 %v91
  %1474 = vmatprep.subr.mxu0 0.0
  %1475 = vmatpush1.msra.mxu0 %v90
  %1476 = vmatprep.subr.mxu0 0.0
  %1477 = vmatpush1.msra.mxu0 %v89
  %1478 = vmatprep.subr.mxu0 0.0
  %1479 = vmatpush1.msra.mxu0 %v88
  %1480 = vmatprep.subr.mxu0 0.0
  %1481 = vmatpush1.msra.mxu0 %v87
  %1482 = vmatprep.subr.mxu0 0.0
  %1483 = vmatpush1.msra.mxu0 %v86
  %1484 = vmatprep.subr.mxu0 0.0
  %1485 = vmatpush1.msra.mxu0 %v85
  %1486 = vmatprep.subr.mxu0 0.0
  %1487 = vmatpush1.msra.mxu0 %v84
  %1488 = vmatprep.subr.mxu0 0.0
  %1489 = vmatpush1.msra.mxu0 %v83
  %1490 = vmatprep.subr.mxu0 0.0
  %1491 = vmatpush1.msra.mxu0 %v82
  %1492 = vmatprep.subr.mxu0 0.0
  %1493 = vmatpush1.msra.mxu0 %v81
  %1494 = vmatprep.subr.mxu0 0.0
  %1495 = vmatpush1.msra.mxu0 %v80
  %1496 = vmatprep.subr.mxu0 0.0
  %1497 = vmatpush1.msra.mxu0 %v79
  %1498 = vmatprep.subr.mxu0 0.0
  %1499 = vmatpush1.msra.mxu0 %v78
  %1500 = vmatprep.subr.mxu0 0.0
  %1501 = vmatpush2.msra.mxu0 %v109
  %1502 = vmatprep.subr.mxu0 0.0
  %1503 = vmatpush2.msra.mxu0 %v108
  %1504 = vmatprep.subr.mxu0 0.0
  %1505 = vmatpush2.msra.mxu0 %v107
  %1506 = vmatprep.subr.mxu0 0.0
  %1507 = vmatpush2.msra.mxu0 %v106
  %1508 = vmatprep.subr.mxu0 0.0
  %1509 = vmatpush2.msra.mxu0 %v105
  %1510 = vmatprep.subr.mxu0 0.0
  %1511 = vmatpush2.msra.mxu0 %v104
  %1512 = vmatprep.subr.mxu0 0.0
  %1513 = vmatpush2.msra.mxu0 %v103
  %1514 = vmatprep.subr.mxu0 0.0
  %1515 = vmatpush2.msra.mxu0 %v102
  %1516 = vmatprep.subr.mxu0 0.0
  %1517 = vmatpush2.msra.mxu0 %v101
  %1518 = vmatprep.subr.mxu0 0.0
  %1519 = vmatpush2.msra.mxu0 %v100
  %1520 = vmatprep.subr.mxu0 0.0
  %1521 = vmatpush2.msra.mxu0 %v99
  %1522 = vmatprep.subr.mxu0 0.0
  %1523 = vmatpush2.msra.mxu0 %v98
  %1524 = vmatprep.subr.mxu0 0.0
  %1525 = vmatpush2.msra.mxu0 %v97
  %1526 = vmatprep.subr.mxu0 0.0
  %1527 = vmatpush2.msra.mxu0 %v96
  %1528 = vmatprep.subr.mxu0 0.0
  %1529 = vmatpush2.msra.mxu0 %v95
  %1530 = vmatprep.subr.mxu0 0.0
  %1531 = vmatpush2.msra.mxu0 %v94
  %1532 = vmatprep.mubr.f32.mxu0 %v1263
  %1533 = vmatmul.mubr.f32.gmra.mxu0 %v1262
  %v1534 = vpop.f32.mrf.mxu0
  %v1535 = vadd.f32 %v1450, %v1534
  %v1536 = vpop.f32.mrf.mxu0
  %1537 = vmatprep.mubr.f32.mxu0 %v1270
  %1538 = vmatmul.mubr.f32.gmra.mxu0 %v1269
  %v1539 = vpop.f32.mrf.mxu0
  %v1540 = vadd.f32 %v1455, %v1539
  %v1541 = vpop.f32.mrf.mxu0
  %1542 = vmatprep.mubr.f32.mxu0 %v1277
  %1543 = vmatmul.mubr.f32.gmra.mxu0 %v1276
  %v1544 = vpop.f32.mrf.mxu0
  %v1545 = vadd.f32 %v1460, %v1544
  %v1546 = vpop.f32.mrf.mxu0
  %1547 = vmatprep.mubr.f32.mxu0 %v1284
  %1548 = vmatmul.mubr.f32.gmra.mxu0 %v1283
  %v1549 = vpop.f32.mrf.mxu0
  %v1550 = vadd.f32 %v1465, %v1549
  %v1551 = vpop.f32.mrf.mxu0
  %1552 = vdwg.mxu0
  %1553 = vmatprep.subr.mxu0 0.0
  %1554 = vmatpush1.msra.mxu0 0.0
  %1555 = vmatprep.subr.mxu0 0.0
  %1556 = vmatpush1.msra.mxu0 0.0
  %1557 = vmatprep.subr.mxu0 0.0
  %1558 = vmatpush1.msra.mxu0 0.0
  %1559 = vmatprep.subr.mxu0 0.0
  %1560 = vmatpush1.msra.mxu0 0.0
  %1561 = vmatprep.subr.mxu0 0.0
  %1562 = vmatpush1.msra.mxu0 0.0
  %1563 = vmatprep.subr.mxu0 0.0
  %1564 = vmatpush1.msra.mxu0 0.0
  %1565 = vmatprep.subr.mxu0 0.0
  %1566 = vmatpush1.msra.mxu0 0.0
  %1567 = vmatprep.subr.mxu0 0.0
  %1568 = vmatpush1.msra.mxu0 0.0
  %1569 = vmatprep.subr.mxu0 0.0
  %1570 = vmatpush1.msra.mxu0 0.0
  %1571 = vmatprep.subr.mxu0 0.0
  %1572 = vmatpush1.msra.mxu0 0.0
  %1573 = vmatprep.subr.mxu0 0.0
  %1574 = vmatpush1.msra.mxu0 0.0
  %1575 = vmatprep.subr.mxu0 0.0
  %1576 = vmatpush1.msra.mxu0 0.0
  %1577 = vmatprep.subr.mxu0 0.0
  %1578 = vmatpush1.msra.mxu0 %v113
  %1579 = vmatprep.subr.mxu0 0.0
  %1580 = vmatpush1.msra.mxu0 %v112
  %1581 = vmatprep.subr.mxu0 0.0
  %1582 = vmatpush1.msra.mxu0 %v111
  %1583 = vmatprep.subr.mxu0 0.0
  %1584 = vmatpush1.msra.mxu0 %v110
  %1585 = vmatprep.subr.mxu0 0.0
  %1586 = vmatpush2.msra.mxu0 0.0
  %1587 = vmatprep.subr.mxu0 0.0
  %1588 = vmatpush2.msra.mxu0 0.0
  %1589 = vmatprep.subr.mxu0 0.0
  %1590 = vmatpush2.msra.mxu0 0.0
  %1591 = vmatprep.subr.mxu0 0.0
  %1592 = vmatpush2.msra.mxu0 0.0
  %1593 = vmatprep.subr.mxu0 0.0
  %1594 = vmatpush2.msra.mxu0 0.0
  %1595 = vmatprep.subr.mxu0 0.0
  %1596 = vmatpush2.msra.mxu0 0.0
  %1597 = vmatprep.subr.mxu0 0.0
  %1598 = vmatpush2.msra.mxu0 0.0
  %1599 = vmatprep.subr.mxu0 0.0
  %1600 = vmatpush2.msra.mxu0 0.0
  %1601 = vmatprep.subr.mxu0 0.0
  %1602 = vmatpush2.msra.mxu0 0.0
  %1603 = vmatprep.subr.mxu0 0.0
  %1604 = vmatpush2.msra.mxu0 0.0
  %1605 = vmatprep.subr.mxu0 0.0
  %1606 = vmatpush2.msra.mxu0 0.0
  %1607 = vmatprep.subr.mxu0 0.0
  %1608 = vmatpush2.msra.mxu0 0.0
  %1609 = vmatprep.subr.mxu0 0.0
  %1610 = vmatpush2.msra.mxu0 0.0
  %1611 = vmatprep.subr.mxu0 0.0
  %1612 = vmatpush2.msra.mxu0 0.0
  %1613 = vmatprep.subr.mxu0 0.0
  %1614 = vmatpush2.msra.mxu0 0.0
  %1615 = vmatprep.subr.mxu0 0.0
  %1616 = vmatpush2.msra.mxu0 0.0
  %1617 = vmatprep.mubr.f32.mxu0 0.0
  %1618 = vmatmul.mubr.f32.gmra.mxu0 %v1287
  %v1619 = vpop.f32.mrf.mxu0
  %v1620 = vadd.f32 %v1535, %v1619
  %v1621 = vpop.f32.mrf.mxu0
  %1622 = vmatprep.mubr.f32.mxu0 0.0
  %1623 = vmatmul.mubr.f32.gmra.mxu0 %v1290
  %v1624 = vpop.f32.mrf.mxu0
  %v1625 = vadd.f32 %v1540, %v1624
  %v1626 = vpop.f32.mrf.mxu0
  %1627 = vmatprep.mubr.f32.mxu0 0.0
  %1628 = vmatmul.mubr.f32.gmra.mxu0 %v1293
  %v1629 = vpop.f32.mrf.mxu0
  %v1630 = vadd.f32 %v1545, %v1629
  %v1631 = vpop.f32.mrf.mxu0
  %1632 = vmatprep.mubr.f32.mxu0 0.0
  %1633 = vmatmul.mubr.f32.gmra.mxu0 %v1296
  %v1634 = vpop.f32.mrf.mxu0
  %v1635 = vadd.f32 %v1550, %v1634
  %v1636 = vpop.f32.mrf.mxu0
  %1637 = vdwg.mxu0
  %v1638 = vmax.f32 %v477, %v858
  %v1639 = vmax.f32 %v482, %v863
  %v1640 = vmax.f32 %v487, %v868
  %v1641 = vmax.f32 %v492, %v873
  %v1642 = vmax.f32 %v1239, %v1620
  %v1643 = vmax.f32 %v1244, %v1625
  %v1644 = vmax.f32 %v1249, %v1630
  %v1645 = vmax.f32 %v1254, %v1635
  %v1646 = vmax.f32 %v1638, %v1642
  %v1647 = vmax.f32 %v1639, %v1643
  %v1648 = vmax.f32 %v1640, %v1644
  %v1649 = vmax.f32 %v1641, %v1645
  %v1650 = vld [vmem:[%s2] sm:$0x1]
  %v1652 = vlaneseq
  %v1653 = vshrl.u32 %v1652, 7
  %v1654 = vsub.s32 0, %v1653
  %v1655 = vrot.slane %v1650, %v1654
  %v1657 = vadd.f32 %v1646, %v1655
  %v1658 = vadd.f32 %v1647, %v1655
  %v1659 = vadd.f32 %v1648, %v1655
  %v1660 = vadd.f32 %v1649, %v1655
  %v1661 = vmax.f32 %v1657, 0.0
  %v1662 = vmax.f32 %v1658, 0.0
  %v1663 = vmax.f32 %v1659, 0.0
  %v1664 = vmax.f32 %v1660, 0.0
  %vm1665 = vcmask 523264
  %1666 = vst.msk [vmem:[%s3] sm:$0xff] %vm1665, %v1661
  %1667 = vst.msk [vmem:[%s3 + $0x8] sm:$0xff] %vm1665, %v1662
  %1668 = vst.msk [vmem:[%s3 + $0x10] sm:$0xff] %vm1665, %v1663
  %1669 = vst.msk [vmem:[%s3 + $0x18] sm:$0xff] %vm1665, %v1664
  // Predicated region
  $region14: #{simple_cnn_forward.4} parent=0 // pred_check
    _
  $region15: #{simple_cnn_forward.4} parent=0 // pred_check_branch
    %1671 = sbr.rel (0) target = $region17
  $region16: #{simple_cnn_forward.4} parent=0 // pred_region
    _
  $region17: #{simple_cnn_forward.4} parent=0 // pred_fallthru
    _
  // Predicated region
  $region18: #{simple_cnn_forward.4} parent=0 // pred_check
    _
  $region19: #{simple_cnn_forward.4} parent=0 // pred_check_branch
    %1673 = sbr.rel (0) target = $region21
  $region20: #{simple_cnn_forward.4} parent=0 // pred_region
    _
  $region21: #{simple_cnn_forward.4} parent=0 // pred_fallthru
    _

// kernel: simple_cnn_forward.5
$region0: #{simple_cnn_forward.5}
  #allocation0 [shape = 'u32[]', space=smem, size = 0x4, offset = 0x4, fixed_abs, tag = 'smem constant byte address 0x4 - core index']
  #allocation1 [shape = 'u32[144,128]{1,0:T(1,128)}', space=vmem, size = 0x12000, scoped, tag = 'internal scratch']
  %s0 = inlined_call_operand.vmem [shape: f32[2,1024], index: 0, kind: input, shape index: {}]
  %s1 = inlined_call_operand.vmem [shape: f32[1024,128], index: 1, kind: input, shape index: {}]
  %s2 = inlined_call_operand.vmem [shape: f32[1,128], index: 2, kind: input, shape index: {}]
  %s3 = inlined_call_operand.vmem [shape: f32[128,128], index: 3, kind: input, shape index: {}]
  %s4 = inlined_call_operand.vmem [shape: f32[1,128], index: 4, kind: input, shape index: {}]
  %s5 = inlined_call_operand.hbm [shape: f32[2,128], index: 5, kind: output, shape index: {}]
  %s6 = sld [smem:[#allocation0]]
  $region30: #{simple_cnn_forward.5} parent=0
    _
  %s8 = ssub.s32 1, %s6
  %s9 = scalar_select 0, %s8, %s6
  $region1: #{simple_cnn_forward.5} parent=0
    #allocation2 [shape = 'u8[1024]{0}', space=vmem, size = 0x400, scoped, tag = 'output window, operand 0, single buffered']
    #allocation3 [shape = 's32[1]{0}', space=sflag, size = 0x4, scoped, tag = 'scoped memory for simple_cnn_forward.5']
    %10 = vsyncpa [#allocation3], 0
    // Predicated region
    $region2: #{simple_cnn_forward.5} parent=1 // pred_check
      _
    $region3: #{simple_cnn_forward.5} parent=1 // pred_check_branch
      %12 = sbr.rel (0) target = $region5
    $region4: #{simple_cnn_forward.5} parent=1 // pred_region
      _
    $region5: #{simple_cnn_forward.5} parent=1 // pred_fallthru
      _
    // Predicated region
    $region6: #{simple_cnn_forward.5} parent=1 // pred_check
      _
    $region7: #{simple_cnn_forward.5} parent=1 // pred_check_branch
      %14 = sbr.rel (0) target = $region9
    $region8: #{simple_cnn_forward.5} parent=1 // pred_region
      _
    $region9: #{simple_cnn_forward.5} parent=1 // pred_fallthru
      _
    // Predicated region
    $region10: #{simple_cnn_forward.5} parent=1 // pred_check
      _
    $region11: #{simple_cnn_forward.5} parent=1 // pred_check_branch
      %16 = sbr.rel (0) target = $region13
    $region12: #{simple_cnn_forward.5} parent=1 // pred_region
      _
    $region13: #{simple_cnn_forward.5} parent=1 // pred_fallthru
      _
    // Predicated region
    $region14: #{simple_cnn_forward.5} parent=1 // pred_check
      _
    $region15: #{simple_cnn_forward.5} parent=1 // pred_check_branch
      %18 = sbr.rel (0) target = $region17
    $region16: #{simple_cnn_forward.5} parent=1 // pred_region
      _
    $region17: #{simple_cnn_forward.5} parent=1 // pred_fallthru
      _
    // Predicated region
    $region18: #{simple_cnn_forward.5} parent=1 // pred_check
      _
    $region19: #{simple_cnn_forward.5} parent=1 // pred_check_branch
      %20 = sbr.rel (0) target = $region21
    $region20: #{simple_cnn_forward.5} parent=1 // pred_region
      _
    $region21: #{simple_cnn_forward.5} parent=1 // pred_fallthru
      _
    %v21 = vld [vmem:[%s0] sm:$0xff]
    %v22 = vld [vmem:[%s0 + $0x8] sm:$0xff]
    %v23 = vld [vmem:[%s1] sm:$0xff]
    %v24 = vld [vmem:[%s1 + $0x8] sm:$0xff]
    %v25 = vld [vmem:[%s1 + $0x10] sm:$0xff]
    %v26 = vld [vmem:[%s1 + $0x18] sm:$0xff]
    %v27 = vld [vmem:[%s1 + $0x20] sm:$0xff]
    %v28 = vld [vmem:[%s1 + $0x28] sm:$0xff]
    %v29 = vld [vmem:[%s1 + $0x30] sm:$0xff]
    %v30 = vld [vmem:[%s1 + $0x38] sm:$0xff]
    %v31 = vld [vmem:[%s1 + $0x40] sm:$0xff]
    %v32 = vld [vmem:[%s1 + $0x48] sm:$0xff]
    %v33 = vld [vmem:[%s1 + $0x50] sm:$0xff]
    %v34 = vld [vmem:[%s1 + $0x58] sm:$0xff]
    %v35 = vld [vmem:[%s1 + $0x60] sm:$0xff]
    %v36 = vld [vmem:[%s1 + $0x68] sm:$0xff]
    %v37 = vld [vmem:[%s1 + $0x70] sm:$0xff]
    %v38 = vld [vmem:[%s1 + $0x78] sm:$0xff]
    %v39 = vld [vmem:[%s1 + $0x80] sm:$0xff]
    %v40 = vld [vmem:[%s1 + $0x88] sm:$0xff]
    %v41 = vld [vmem:[%s1 + $0x90] sm:$0xff]
    %v42 = vld [vmem:[%s1 + $0x98] sm:$0xff]
    %v43 = vld [vmem:[%s1 + $0xa0] sm:$0xff]
    %v44 = vld [vmem:[%s1 + $0xa8] sm:$0xff]
    %v45 = vld [vmem:[%s1 + $0xb0] sm:$0xff]
    %v46 = vld [vmem:[%s1 + $0xb8] sm:$0xff]
    %v47 = vld [vmem:[%s1 + $0xc0] sm:$0xff]
    %v48 = vld [vmem:[%s1 + $0xc8] sm:$0xff]
    %v49 = vld [vmem:[%s1 + $0xd0] sm:$0xff]
    %v50 = vld [vmem:[%s1 + $0xd8] sm:$0xff]
    %v51 = vld [vmem:[%s1 + $0xe0] sm:$0xff]
    %v52 = vld [vmem:[%s1 + $0xe8] sm:$0xff]
    %v53 = vld [vmem:[%s1 + $0xf0] sm:$0xff]
    %v54 = vld [vmem:[%s1 + $0xf8] sm:$0xff]
    %v55 = vld [vmem:[%s1 + $0x100] sm:$0xff]
    %v56 = vld [vmem:[%s1 + $0x108] sm:$0xff]
    %v57 = vld [vmem:[%s1 + $0x110] sm:$0xff]
    %v58 = vld [vmem:[%s1 + $0x118] sm:$0xff]
    %v59 = vld [vmem:[%s1 + $0x120] sm:$0xff]
    %v60 = vld [vmem:[%s1 + $0x128] sm:$0xff]
    %v61 = vld [vmem:[%s1 + $0x130] sm:$0xff]
    %v62 = vld [vmem:[%s1 + $0x138] sm:$0xff]
    %v63 = vld [vmem:[%s1 + $0x140] sm:$0xff]
    %v64 = vld [vmem:[%s1 + $0x148] sm:$0xff]
    %v65 = vld [vmem:[%s1 + $0x150] sm:$0xff]
    %v66 = vld [vmem:[%s1 + $0x158] sm:$0xff]
    %v67 = vld [vmem:[%s1 + $0x160] sm:$0xff]
    %v68 = vld [vmem:[%s1 + $0x168] sm:$0xff]
    %v69 = vld [vmem:[%s1 + $0x170] sm:$0xff]
    %v70 = vld [vmem:[%s1 + $0x178] sm:$0xff]
    %v71 = vld [vmem:[%s1 + $0x180] sm:$0xff]
    %v72 = vld [vmem:[%s1 + $0x188] sm:$0xff]
    %v73 = vld [vmem:[%s1 + $0x190] sm:$0xff]
    %v74 = vld [vmem:[%s1 + $0x198] sm:$0xff]
    %v75 = vld [vmem:[%s1 + $0x1a0] sm:$0xff]
    %v76 = vld [vmem:[%s1 + $0x1a8] sm:$0xff]
    %v77 = vld [vmem:[%s1 + $0x1b0] sm:$0xff]
    %v78 = vld [vmem:[%s1 + $0x1b8] sm:$0xff]
    %v79 = vld [vmem:[%s1 + $0x1c0] sm:$0xff]
    %v80 = vld [vmem:[%s1 + $0x1c8] sm:$0xff]
    %v81 = vld [vmem:[%s1 + $0x1d0] sm:$0xff]
    %v82 = vld [vmem:[%s1 + $0x1d8] sm:$0xff]
    %v83 = vld [vmem:[%s1 + $0x1e0] sm:$0xff]
    %v84 = vld [vmem:[%s1 + $0x1e8] sm:$0xff]
    %v85 = vld [vmem:[%s1 + $0x1f0] sm:$0xff]
    %v86 = vld [vmem:[%s1 + $0x1f8] sm:$0xff]
    %v87 = vld [vmem:[%s1 + $0x200] sm:$0xff]
    %v88 = vld [vmem:[%s1 + $0x208] sm:$0xff]
    %v89 = vld [vmem:[%s1 + $0x210] sm:$0xff]
    %v90 = vld [vmem:[%s1 + $0x218] sm:$0xff]
    %v91 = vld [vmem:[%s1 + $0x220] sm:$0xff]
    %v92 = vld [vmem:[%s1 + $0x228] sm:$0xff]
    %v93 = vld [vmem:[%s1 + $0x230] sm:$0xff]
    %v94 = vld [vmem:[%s1 + $0x238] sm:$0xff]
    %v95 = vld [vmem:[%s1 + $0x240] sm:$0xff]
    %v96 = vld [vmem:[%s1 + $0x248] sm:$0xff]
    %v97 = vld [vmem:[%s1 + $0x250] sm:$0xff]
    %v98 = vld [vmem:[%s1 + $0x258] sm:$0xff]
    %v99 = vld [vmem:[%s1 + $0x260] sm:$0xff]
    %v100 = vld [vmem:[%s1 + $0x268] sm:$0xff]
    %v101 = vld [vmem:[%s1 + $0x270] sm:$0xff]
    %v102 = vld [vmem:[%s1 + $0x278] sm:$0xff]
    %v103 = vld [vmem:[%s1 + $0x280] sm:$0xff]
    %v104 = vld [vmem:[%s1 + $0x288] sm:$0xff]
    %v105 = vld [vmem:[%s1 + $0x290] sm:$0xff]
    %v106 = vld [vmem:[%s1 + $0x298] sm:$0xff]
    %v107 = vld [vmem:[%s1 + $0x2a0] sm:$0xff]
    %v108 = vld [vmem:[%s1 + $0x2a8] sm:$0xff]
    %v109 = vld [vmem:[%s1 + $0x2b0] sm:$0xff]
    %v110 = vld [vmem:[%s1 + $0x2b8] sm:$0xff]
    %v111 = vld [vmem:[%s1 + $0x2c0] sm:$0xff]
    %v112 = vld [vmem:[%s1 + $0x2c8] sm:$0xff]
    %v113 = vld [vmem:[%s1 + $0x2d0] sm:$0xff]
    %v114 = vld [vmem:[%s1 + $0x2d8] sm:$0xff]
    %v115 = vld [vmem:[%s1 + $0x2e0] sm:$0xff]
    %v116 = vld [vmem:[%s1 + $0x2e8] sm:$0xff]
    %v117 = vld [vmem:[%s1 + $0x2f0] sm:$0xff]
    %v118 = vld [vmem:[%s1 + $0x2f8] sm:$0xff]
    %v119 = vld [vmem:[%s1 + $0x300] sm:$0xff]
    %v120 = vld [vmem:[%s1 + $0x308] sm:$0xff]
    %v121 = vld [vmem:[%s1 + $0x310] sm:$0xff]
    %v122 = vld [vmem:[%s1 + $0x318] sm:$0xff]
    %v123 = vld [vmem:[%s1 + $0x320] sm:$0xff]
    %v124 = vld [vmem:[%s1 + $0x328] sm:$0xff]
    %v125 = vld [vmem:[%s1 + $0x330] sm:$0xff]
    %v126 = vld [vmem:[%s1 + $0x338] sm:$0xff]
    %v127 = vld [vmem:[%s1 + $0x340] sm:$0xff]
    %v128 = vld [vmem:[%s1 + $0x348] sm:$0xff]
    %v129 = vld [vmem:[%s1 + $0x350] sm:$0xff]
    %v130 = vld [vmem:[%s1 + $0x358] sm:$0xff]
    %v131 = vld [vmem:[%s1 + $0x360] sm:$0xff]
    %v132 = vld [vmem:[%s1 + $0x368] sm:$0xff]
    %v133 = vld [vmem:[%s1 + $0x370] sm:$0xff]
    %v134 = vld [vmem:[%s1 + $0x378] sm:$0xff]
    %v135 = vld [vmem:[%s1 + $0x380] sm:$0xff]
    %v136 = vld [vmem:[%s1 + $0x388] sm:$0xff]
    %v137 = vld [vmem:[%s1 + $0x390] sm:$0xff]
    %v138 = vld [vmem:[%s1 + $0x398] sm:$0xff]
    %v139 = vld [vmem:[%s1 + $0x3a0] sm:$0xff]
    %v140 = vld [vmem:[%s1 + $0x3a8] sm:$0xff]
    %v141 = vld [vmem:[%s1 + $0x3b0] sm:$0xff]
    %v142 = vld [vmem:[%s1 + $0x3b8] sm:$0xff]
    %v143 = vld [vmem:[%s1 + $0x3c0] sm:$0xff]
    %v144 = vld [vmem:[%s1 + $0x3c8] sm:$0xff]
    %v145 = vld [vmem:[%s1 + $0x3d0] sm:$0xff]
    %v146 = vld [vmem:[%s1 + $0x3d8] sm:$0xff]
    %v147 = vld [vmem:[%s1 + $0x3e0] sm:$0xff]
    %v148 = vld [vmem:[%s1 + $0x3e8] sm:$0xff]
    %v149 = vld [vmem:[%s1 + $0x3f0] sm:$0xff]
    %v150 = vld [vmem:[%s1 + $0x3f8] sm:$0xff]
    %v151 = vld [vmem:[%s2] sm:$0x1]
    %v153 = vlaneseq
    %v154 = vshrl.u32 %v153, 7
    %v155 = vsub.s32 0, %v154
    %v156 = vrot.slane %v151, %v155
    %v160 = vcombine.high %v21, %v21
    %v162 = vunpack.c.l.s4 1983009808
    %v163 = vunpack.c.0.s8 %v162
    %v164 = vlaneseq
    %v165 = vshrl.u32 %v164, 7
    %v166 = vsub.s32 %v163, %v165
    %v167 = vrot.slane %v21, %v166
    %v169 = vunpack.c.l.s4 1983009808
    %v170 = vunpack.c.0.s8 %v169
    %v171 = vlaneseq
    %v172 = vshrl.u32 %v171, 7
    %v173 = vsub.s32 %v170, %v172
    %v174 = vrot.slane %v160, %v173
    %v175 = vcombine.high %v167, %v167
    %v176 = vcombine.high %v174, %v174
    %v177 = vcombine.high %v22, %v22
    %v179 = vunpack.c.l.s4 1983009808
    %v180 = vunpack.c.0.s8 %v179
    %v181 = vlaneseq
    %v182 = vshrl.u32 %v181, 7
    %v183 = vsub.s32 %v180, %v182
    %v184 = vrot.slane %v22, %v183
    %v186 = vunpack.c.l.s4 1983009808
    %v187 = vunpack.c.0.s8 %v186
    %v188 = vlaneseq
    %v189 = vshrl.u32 %v188, 7
    %v190 = vsub.s32 %v187, %v189
    %v191 = vrot.slane %v177, %v190
    %v192 = vcombine.high %v184, %v184
    %v193 = vcombine.high %v191, %v191
    %202 = vmatprep.subr.mxu0 0.0
    %203 = vmatpush1.msra.mxu0 %v38
    %204 = vmatprep.subr.mxu0 0.0
    %205 = vmatpush1.msra.mxu0 %v37
    %206 = vmatprep.subr.mxu0 0.0
    %207 = vmatpush1.msra.mxu0 %v36
    %208 = vmatprep.subr.mxu0 0.0
    %209 = vmatpush1.msra.mxu0 %v35
    %210 = vmatprep.subr.mxu0 0.0
    %211 = vmatpush1.msra.mxu0 %v34
    %212 = vmatprep.subr.mxu0 0.0
    %213 = vmatpush1.msra.mxu0 %v33
    %214 = vmatprep.subr.mxu0 0.0
    %215 = vmatpush1.msra.mxu0 %v32
    %216 = vmatprep.subr.mxu0 0.0
    %217 = vmatpush1.msra.mxu0 %v31
    %218 = vmatprep.subr.mxu0 0.0
    %219 = vmatpush1.msra.mxu0 %v30
    %220 = vmatprep.subr.mxu0 0.0
    %221 = vmatpush1.msra.mxu0 %v29
    %222 = vmatprep.subr.mxu0 0.0
    %223 = vmatpush1.msra.mxu0 %v28
    %224 = vmatprep.subr.mxu0 0.0
    %225 = vmatpush1.msra.mxu0 %v27
    %226 = vmatprep.subr.mxu0 0.0
    %227 = vmatpush1.msra.mxu0 %v26
    %228 = vmatprep.subr.mxu0 0.0
    %229 = vmatpush1.msra.mxu0 %v25
    %230 = vmatprep.subr.mxu0 0.0
    %231 = vmatpush1.msra.mxu0 %v24
    %232 = vmatprep.subr.mxu0 0.0
    %233 = vmatpush1.msra.mxu0 %v23
    %234 = vmatprep.subr.mxu0 0.0
    %235 = vmatpush2.msra.mxu0 %v54
    %236 = vmatprep.subr.mxu0 0.0
    %237 = vmatpush2.msra.mxu0 %v53
    %238 = vmatprep.subr.mxu0 0.0
    %239 = vmatpush2.msra.mxu0 %v52
    %240 = vmatprep.subr.mxu0 0.0
    %241 = vmatpush2.msra.mxu0 %v51
    %242 = vmatprep.subr.mxu0 0.0
    %243 = vmatpush2.msra.mxu0 %v50
    %244 = vmatprep.subr.mxu0 0.0
    %245 = vmatpush2.msra.mxu0 %v49
    %246 = vmatprep.subr.mxu0 0.0
    %247 = vmatpush2.msra.mxu0 %v48
    %248 = vmatprep.subr.mxu0 0.0
    %249 = vmatpush2.msra.mxu0 %v47
    %250 = vmatprep.subr.mxu0 0.0
    %251 = vmatpush2.msra.mxu0 %v46
    %252 = vmatprep.subr.mxu0 0.0
    %253 = vmatpush2.msra.mxu0 %v45
    %254 = vmatprep.subr.mxu0 0.0
    %255 = vmatpush2.msra.mxu0 %v44
    %256 = vmatprep.subr.mxu0 0.0
    %257 = vmatpush2.msra.mxu0 %v43
    %258 = vmatprep.subr.mxu0 0.0
    %259 = vmatpush2.msra.mxu0 %v42
    %260 = vmatprep.subr.mxu0 0.0
    %261 = vmatpush2.msra.mxu0 %v41
    %262 = vmatprep.subr.mxu0 0.0
    %263 = vmatpush2.msra.mxu0 %v40
    %264 = vmatprep.subr.mxu0 0.0
    %265 = vmatpush2.msra.mxu0 %v39
    %266 = vmatprep.mubr.f32.mxu0 %v175
    %267 = vmatmul.mubr.f32.gmra.mxu0 %v167
    %v268 = vpop.f32.mrf.mxu0
    %v269 = vadd.f32 %v156, %v268
    %v270 = vpop.f32.mrf.mxu0
    %271 = vdwg.mxu0
    %272 = vmatprep.subr.mxu0 0.0
    %273 = vmatpush1.msra.mxu0 %v70
    %274 = vmatprep.subr.mxu0 0.0
    %275 = vmatpush1.msra.mxu0 %v69
    %276 = vmatprep.subr.mxu0 0.0
    %277 = vmatpush1.msra.mxu0 %v68
    %278 = vmatprep.subr.mxu0 0.0
    %279 = vmatpush1.msra.mxu0 %v67
    %280 = vmatprep.subr.mxu0 0.0
    %281 = vmatpush1.msra.mxu0 %v66
    %282 = vmatprep.subr.mxu0 0.0
    %283 = vmatpush1.msra.mxu0 %v65
    %284 = vmatprep.subr.mxu0 0.0
    %285 = vmatpush1.msra.mxu0 %v64
    %286 = vmatprep.subr.mxu0 0.0
    %287 = vmatpush1.msra.mxu0 %v63
    %288 = vmatprep.subr.mxu0 0.0
    %289 = vmatpush1.msra.mxu0 %v62
    %290 = vmatprep.subr.mxu0 0.0
    %291 = vmatpush1.msra.mxu0 %v61
    %292 = vmatprep.subr.mxu0 0.0
    %293 = vmatpush1.msra.mxu0 %v60
    %294 = vmatprep.subr.mxu0 0.0
    %295 = vmatpush1.msra.mxu0 %v59
    %296 = vmatprep.subr.mxu0 0.0
    %297 = vmatpush1.msra.mxu0 %v58
    %298 = vmatprep.subr.mxu0 0.0
    %299 = vmatpush1.msra.mxu0 %v57
    %300 = vmatprep.subr.mxu0 0.0
    %301 = vmatpush1.msra.mxu0 %v56
    %302 = vmatprep.subr.mxu0 0.0
    %303 = vmatpush1.msra.mxu0 %v55
    %304 = vmatprep.subr.mxu0 0.0
    %305 = vmatpush2.msra.mxu0 %v86
    %306 = vmatprep.subr.mxu0 0.0
    %307 = vmatpush2.msra.mxu0 %v85
    %308 = vmatprep.subr.mxu0 0.0
    %309 = vmatpush2.msra.mxu0 %v84
    %310 = vmatprep.subr.mxu0 0.0
    %311 = vmatpush2.msra.mxu0 %v83
    %312 = vmatprep.subr.mxu0 0.0
    %313 = vmatpush2.msra.mxu0 %v82
    %314 = vmatprep.subr.mxu0 0.0
    %315 = vmatpush2.msra.mxu0 %v81
    %316 = vmatprep.subr.mxu0 0.0
    %317 = vmatpush2.msra.mxu0 %v80
    %318 = vmatprep.subr.mxu0 0.0
    %319 = vmatpush2.msra.mxu0 %v79
    %320 = vmatprep.subr.mxu0 0.0
    %321 = vmatpush2.msra.mxu0 %v78
    %322 = vmatprep.subr.mxu0 0.0
    %323 = vmatpush2.msra.mxu0 %v77
    %324 = vmatprep.subr.mxu0 0.0
    %325 = vmatpush2.msra.mxu0 %v76
    %326 = vmatprep.subr.mxu0 0.0
    %327 = vmatpush2.msra.mxu0 %v75
    %328 = vmatprep.subr.mxu0 0.0
    %329 = vmatpush2.msra.mxu0 %v74
    %330 = vmatprep.subr.mxu0 0.0
    %331 = vmatpush2.msra.mxu0 %v73
    %332 = vmatprep.subr.mxu0 0.0
    %333 = vmatpush2.msra.mxu0 %v72
    %334 = vmatprep.subr.mxu0 0.0
    %335 = vmatpush2.msra.mxu0 %v71
    %336 = vmatprep.mubr.f32.mxu0 %v176
    %337 = vmatmul.mubr.f32.gmra.mxu0 %v174
    %v338 = vpop.f32.mrf.mxu0
    %v339 = vadd.f32 %v269, %v338
    %v340 = vpop.f32.mrf.mxu0
    %341 = vdwg.mxu0
    %342 = vmatprep.subr.mxu0 0.0
    %343 = vmatpush1.msra.mxu0 %v102
    %344 = vmatprep.subr.mxu0 0.0
    %345 = vmatpush1.msra.mxu0 %v101
    %346 = vmatprep.subr.mxu0 0.0
    %347 = vmatpush1.msra.mxu0 %v100
    %348 = vmatprep.subr.mxu0 0.0
    %349 = vmatpush1.msra.mxu0 %v99
    %350 = vmatprep.subr.mxu0 0.0
    %351 = vmatpush1.msra.mxu0 %v98
    %352 = vmatprep.subr.mxu0 0.0
    %353 = vmatpush1.msra.mxu0 %v97
    %354 = vmatprep.subr.mxu0 0.0
    %355 = vmatpush1.msra.mxu0 %v96
    %356 = vmatprep.subr.mxu0 0.0
    %357 = vmatpush1.msra.mxu0 %v95
    %358 = vmatprep.subr.mxu0 0.0
    %359 = vmatpush1.msra.mxu0 %v94
    %360 = vmatprep.subr.mxu0 0.0
    %361 = vmatpush1.msra.mxu0 %v93
    %362 = vmatprep.subr.mxu0 0.0
    %363 = vmatpush1.msra.mxu0 %v92
    %364 = vmatprep.subr.mxu0 0.0
    %365 = vmatpush1.msra.mxu0 %v91
    %366 = vmatprep.subr.mxu0 0.0
    %367 = vmatpush1.msra.mxu0 %v90
    %368 = vmatprep.subr.mxu0 0.0
    %369 = vmatpush1.msra.mxu0 %v89
    %370 = vmatprep.subr.mxu0 0.0
    %371 = vmatpush1.msra.mxu0 %v88
    %372 = vmatprep.subr.mxu0 0.0
    %373 = vmatpush1.msra.mxu0 %v87
    %374 = vmatprep.subr.mxu0 0.0
    %375 = vmatpush2.msra.mxu0 %v118
    %376 = vmatprep.subr.mxu0 0.0
    %377 = vmatpush2.msra.mxu0 %v117
    %378 = vmatprep.subr.mxu0 0.0
    %379 = vmatpush2.msra.mxu0 %v116
    %380 = vmatprep.subr.mxu0 0.0
    %381 = vmatpush2.msra.mxu0 %v115
    %382 = vmatprep.subr.mxu0 0.0
    %383 = vmatpush2.msra.mxu0 %v114
    %384 = vmatprep.subr.mxu0 0.0
    %385 = vmatpush2.msra.mxu0 %v113
    %386 = vmatprep.subr.mxu0 0.0
    %387 = vmatpush2.msra.mxu0 %v112
    %388 = vmatprep.subr.mxu0 0.0
    %389 = vmatpush2.msra.mxu0 %v111
    %390 = vmatprep.subr.mxu0 0.0
    %391 = vmatpush2.msra.mxu0 %v110
    %392 = vmatprep.subr.mxu0 0.0
    %393 = vmatpush2.msra.mxu0 %v109
    %394 = vmatprep.subr.mxu0 0.0
    %395 = vmatpush2.msra.mxu0 %v108
    %396 = vmatprep.subr.mxu0 0.0
    %397 = vmatpush2.msra.mxu0 %v107
    %398 = vmatprep.subr.mxu0 0.0
    %399 = vmatpush2.msra.mxu0 %v106
    %400 = vmatprep.subr.mxu0 0.0
    %401 = vmatpush2.msra.mxu0 %v105
    %402 = vmatprep.subr.mxu0 0.0
    %403 = vmatpush2.msra.mxu0 %v104
    %404 = vmatprep.subr.mxu0 0.0
    %405 = vmatpush2.msra.mxu0 %v103
    %406 = vmatprep.mubr.f32.mxu0 %v192
    %407 = vmatmul.mubr.f32.gmra.mxu0 %v184
    %v408 = vpop.f32.mrf.mxu0
    %v409 = vadd.f32 %v339, %v408
    %v410 = vpop.f32.mrf.mxu0
    %411 = vdwg.mxu0
    %412 = vmatprep.subr.mxu0 0.0
    %413 = vmatpush1.msra.mxu0 %v134
    %414 = vmatprep.subr.mxu0 0.0
    %415 = vmatpush1.msra.mxu0 %v133
    %416 = vmatprep.subr.mxu0 0.0
    %417 = vmatpush1.msra.mxu0 %v132
    %418 = vmatprep.subr.mxu0 0.0
    %419 = vmatpush1.msra.mxu0 %v131
    %420 = vmatprep.subr.mxu0 0.0
    %421 = vmatpush1.msra.mxu0 %v130
    %422 = vmatprep.subr.mxu0 0.0
    %423 = vmatpush1.msra.mxu0 %v129
    %424 = vmatprep.subr.mxu0 0.0
    %425 = vmatpush1.msra.mxu0 %v128
    %426 = vmatprep.subr.mxu0 0.0
    %427 = vmatpush1.msra.mxu0 %v127
    %428 = vmatprep.subr.mxu0 0.0
    %429 = vmatpush1.msra.mxu0 %v126
    %430 = vmatprep.subr.mxu0 0.0
    %431 = vmatpush1.msra.mxu0 %v125
    %432 = vmatprep.subr.mxu0 0.0
    %433 = vmatpush1.msra.mxu0 %v124
    %434 = vmatprep.subr.mxu0 0.0
    %435 = vmatpush1.msra.mxu0 %v123
    %436 = vmatprep.subr.mxu0 0.0
    %437 = vmatpush1.msra.mxu0 %v122
    %438 = vmatprep.subr.mxu0 0.0
    %439 = vmatpush1.msra.mxu0 %v121
    %440 = vmatprep.subr.mxu0 0.0
    %441 = vmatpush1.msra.mxu0 %v120
    %442 = vmatprep.subr.mxu0 0.0
    %443 = vmatpush1.msra.mxu0 %v119
    %444 = vmatprep.subr.mxu0 0.0
    %445 = vmatpush2.msra.mxu0 %v150
    %446 = vmatprep.subr.mxu0 0.0
    %447 = vmatpush2.msra.mxu0 %v149
    %448 = vmatprep.subr.mxu0 0.0
    %449 = vmatpush2.msra.mxu0 %v148
    %450 = vmatprep.subr.mxu0 0.0
    %451 = vmatpush2.msra.mxu0 %v147
    %452 = vmatprep.subr.mxu0 0.0
    %453 = vmatpush2.msra.mxu0 %v146
    %454 = vmatprep.subr.mxu0 0.0
    %455 = vmatpush2.msra.mxu0 %v145
    %456 = vmatprep.subr.mxu0 0.0
    %457 = vmatpush2.msra.mxu0 %v144
    %458 = vmatprep.subr.mxu0 0.0
    %459 = vmatpush2.msra.mxu0 %v143
    %460 = vmatprep.subr.mxu0 0.0
    %461 = vmatpush2.msra.mxu0 %v142
    %462 = vmatprep.subr.mxu0 0.0
    %463 = vmatpush2.msra.mxu0 %v141
    %464 = vmatprep.subr.mxu0 0.0
    %465 = vmatpush2.msra.mxu0 %v140
    %466 = vmatprep.subr.mxu0 0.0
    %467 = vmatpush2.msra.mxu0 %v139
    %468 = vmatprep.subr.mxu0 0.0
    %469 = vmatpush2.msra.mxu0 %v138
    %470 = vmatprep.subr.mxu0 0.0
    %471 = vmatpush2.msra.mxu0 %v137
    %472 = vmatprep.subr.mxu0 0.0
    %473 = vmatpush2.msra.mxu0 %v136
    %474 = vmatprep.subr.mxu0 0.0
    %475 = vmatpush2.msra.mxu0 %v135
    %476 = vmatprep.mubr.f32.mxu0 %v193
    %477 = vmatmul.mubr.f32.gmra.mxu0 %v191
    %v478 = vpop.f32.mrf.mxu0
    %v479 = vadd.f32 %v409, %v478
    %v480 = vpop.f32.mrf.mxu0
    %481 = vdwg.mxu0
    %v482 = vmax.f32 %v479, 0.0
    %v483 = vld [vmem:[%s3] sm:$0xff]
    %v484 = vld [vmem:[%s3 + $0x8] sm:$0xff]
    %v485 = vld [vmem:[%s3 + $0x10] sm:$0xff]
    %v486 = vld [vmem:[%s3 + $0x18] sm:$0xff]
    %v487 = vld [vmem:[%s3 + $0x20] sm:$0xff]
    %v488 = vld [vmem:[%s3 + $0x28] sm:$0xff]
    %v489 = vld [vmem:[%s3 + $0x30] sm:$0xff]
    %v490 = vld [vmem:[%s3 + $0x38] sm:$0xff]
    %v491 = vld [vmem:[%s3 + $0x40] sm:$0xff]
    %v492 = vld [vmem:[%s3 + $0x48] sm:$0xff]
    %v493 = vld [vmem:[%s3 + $0x50] sm:$0xff]
    %v494 = vld [vmem:[%s3 + $0x58] sm:$0xff]
    %v495 = vld [vmem:[%s3 + $0x60] sm:$0xff]
    %v496 = vld [vmem:[%s3 + $0x68] sm:$0xff]
    %v497 = vld [vmem:[%s3 + $0x70] sm:$0xff]
    %v498 = vld [vmem:[%s3 + $0x78] sm:$0xff]
    %v499 = vld [vmem:[%s4] sm:$0x1]
    %v501 = vlaneseq
    %v502 = vshrl.u32 %v501, 7
    %v503 = vsub.s32 0, %v502
    %v504 = vrot.slane %v499, %v503
    %506 = vmatprep.subr.mxu0 0.0
    %507 = vmatpush1.msra.mxu0 %v498
    %508 = vmatprep.subr.mxu0 0.0
    %509 = vmatpush1.msra.mxu0 %v497
    %510 = vmatprep.subr.mxu0 0.0
    %511 = vmatpush1.msra.mxu0 %v496
    %512 = vmatprep.subr.mxu0 0.0
    %513 = vmatpush1.msra.mxu0 %v495
    %514 = vmatprep.subr.mxu0 0.0
    %515 = vmatpush1.msra.mxu0 %v494
    %516 = vmatprep.subr.mxu0 0.0
    %517 = vmatpush1.msra.mxu0 %v493
    %518 = vmatprep.subr.mxu0 0.0
    %519 = vmatpush1.msra.mxu0 %v492
    %520 = vmatprep.subr.mxu0 0.0
    %521 = vmatpush1.msra.mxu0 %v491
    %522 = vmatprep.subr.mxu0 0.0
    %523 = vmatpush1.msra.mxu0 %v490
    %524 = vmatprep.subr.mxu0 0.0
    %525 = vmatpush1.msra.mxu0 %v489
    %526 = vmatprep.subr.mxu0 0.0
    %527 = vmatpush1.msra.mxu0 %v488
    %528 = vmatprep.subr.mxu0 0.0
    %529 = vmatpush1.msra.mxu0 %v487
    %530 = vmatprep.subr.mxu0 0.0
    %531 = vmatpush1.msra.mxu0 %v486
    %532 = vmatprep.subr.mxu0 0.0
    %533 = vmatpush1.msra.mxu0 %v485
    %534 = vmatprep.subr.mxu0 0.0
    %535 = vmatpush1.msra.mxu0 %v484
    %536 = vmatprep.subr.mxu0 0.0
    %537 = vmatpush1.msra.mxu0 %v483
    %538 = vmatprep.subr.mxu0 0.0
    %539 = vmatpush2.msra.mxu0 0.0
    %540 = vmatprep.subr.mxu0 0.0
    %541 = vmatpush2.msra.mxu0 0.0
    %542 = vmatprep.subr.mxu0 0.0
    %543 = vmatpush2.msra.mxu0 0.0
    %544 = vmatprep.subr.mxu0 0.0
    %545 = vmatpush2.msra.mxu0 0.0
    %546 = vmatprep.subr.mxu0 0.0
    %547 = vmatpush2.msra.mxu0 0.0
    %548 = vmatprep.subr.mxu0 0.0
    %549 = vmatpush2.msra.mxu0 0.0
    %550 = vmatprep.subr.mxu0 0.0
    %551 = vmatpush2.msra.mxu0 0.0
    %552 = vmatprep.subr.mxu0 0.0
    %553 = vmatpush2.msra.mxu0 0.0
    %554 = vmatprep.subr.mxu0 0.0
    %555 = vmatpush2.msra.mxu0 0.0
    %556 = vmatprep.subr.mxu0 0.0
    %557 = vmatpush2.msra.mxu0 0.0
    %558 = vmatprep.subr.mxu0 0.0
    %559 = vmatpush2.msra.mxu0 0.0
    %560 = vmatprep.subr.mxu0 0.0
    %561 = vmatpush2.msra.mxu0 0.0
    %562 = vmatprep.subr.mxu0 0.0
    %563 = vmatpush2.msra.mxu0 0.0
    %564 = vmatprep.subr.mxu0 0.0
    %565 = vmatpush2.msra.mxu0 0.0
    %566 = vmatprep.subr.mxu0 0.0
    %567 = vmatpush2.msra.mxu0 0.0
    %568 = vmatprep.subr.mxu0 0.0
    %569 = vmatpush2.msra.mxu0 0.0
    %570 = vmatprep.mubr.f32.mxu0 0.0
    %571 = vmatmul.mubr.f32.gmra.mxu0 %v482
    %v572 = vpop.f32.mrf.mxu0
    %v573 = vadd.f32 %v504, %v572
    %v574 = vpop.f32.mrf.mxu0
    %575 = vdwg.mxu0
    %vm576 = vcmask 1041408
    %v577 = vsel %vm576, %v573, -inf
    %578 = vmax.xlane.f32.xlu0 %v577
    %v579 = vpop.xlane.xlu0 %578
    %v580 = vsub.f32 %v573, %v579
    %v581 = vmul.f32 %v580, 1.442695
    %v582 = vpow.pop %v581
    %v583 = vsel %vm576, %v582, 0.0
    %584 = vadd.xlane.f32.xlu0 %v583
    %v585 = vpop.xlane.xlu0 %584
    %v586 = vlog2.pop %v585
    %v587 = vmul.f32 %v586, 0.6931472
    %v588 = vsub.f32 %v580, %v587
    %589 = vst [vmem:[#allocation2] sm:$0x3] %v588
    // Predicated region
    $region22: #{simple_cnn_forward.5} parent=1 // pred_check
      _
    $region23: #{simple_cnn_forward.5} parent=1 // pred_check_branch
      %591 = sbr.rel (0) target = $region25
    $region24: #{simple_cnn_forward.5} parent=1 // pred_region
      %s593 = ssub.s32 32, 32
      %594 = vsyncadd [#allocation3], %s593
      %s596 = sshll.u32 [#allocation2], 4
      %s597 = int_to_ptr.vmem [resolvable:$true] %s596
      %599 = dma.vmem_to_hbm [thread:$0]  %s597, 32, %s5, [#allocation3]
    $region25: #{simple_cnn_forward.5} parent=1 // pred_fallthru
      _
    // Predicated region
    $region26: #{simple_cnn_forward.5} parent=1 // pred_check
      _
    $region27: #{simple_cnn_forward.5} parent=1 // pred_check_branch
      %601 = sbr.rel (0) target = $region29
    $region28: #{simple_cnn_forward.5} parent=1 // pred_region
      %602 = dma.done [#allocation3], 32
    $region29: #{simple_cnn_forward.5} parent=1 // pred_fallthru
      _
    %603 = vsyncpa [#allocation3], 1

</llo_original>
